<compile_context>
chip_gen: v7x
topology: tpu7x:2x2x1
jax: 0.10.0
libtpu: 0.0.40
codegen_flags: <defaults>
</compile_context>

<pallas_src>
import jax
import jax.numpy as jnp
import numpy as np
from jax.experimental import pallas as pl
from jax.experimental.pallas import tpu as pltpu

H, W = 14, 14             # spatial size fixed by LayerNorm([C, 14, 14])
HP, WP = 16, 16           # padded spatial size (zero ring)
PXL = HP * WP             # 256 lanes = exactly two 128-lane vreg passes
C = 32                    # input_ch
NC = 8                    # num_classes
NBR = 3                   # three adversary branches (r, g, b)
EPS = 1e-5                # PyTorch LayerNorm default eps
INV_CNT = 1.0 / (C * H * W)   # LayerNorm normalizes over C*14*14 elements


def _tap_shift(t):
    """Lane-roll amount for kernel tap t=(ky,kx): result[q] = x[(q + dy*16 + dx) % 256]."""
    dy, dx = t // 3 - 1, t % 3 - 1
    return (-(dy * WP + dx)) % PXL


def adversery_kernel(x_ref, w1_ref, b1_ref, g_ref, bt_ref, w2_ref, b2_ref,
                     ring_ref, o_ref, rhs1_ref, rhs2_ref):
    """TB samples per program; the 3 branches are fused along the channel axis.

    x_ref   : (TB, C, 256)  f32   zero-ring padded input, pixels on lanes
    w1_ref  : (96, 288)     bf16  fused conv1 weights (row = br*C + cout)
    b1_ref  : (96, 1)       f32
    g_ref   : (96, 256)     f32   LayerNorm gamma (zero on the ring)
    bt_ref  : (96, 256)     f32   LayerNorm beta  (zero on the ring)
    w2_ref  : (24, 864)     bf16  block-diagonal fused conv2 weights
    b2_ref  : (24, 1)       f32
    ring_ref: (1, 256)      f32   1 on the 14x14 interior, 0 on the ring
    o_ref   : (TB, 24, 256) f32   softmax probabilities (ring columns = junk)
    rhs1_ref: (288, 256)    bf16  conv1 im2col scratch
    rhs2_ref: (864, 256)    bf16  conv2 im2col scratch
    """
    ring = ring_ref[...]                                        # (1, 256)

    def body(i, carry):
        xp = x_ref[i]                                           # (C, 256) f32

        # ---- conv1 im2col: 9 lane rolls written straight into VMEM scratch ----
        for t in range(9):
            s = _tap_shift(t)
            tap = xp if s == 0 else pltpu.roll(xp, shift=s, axis=1)
            rhs1_ref[t * C:(t + 1) * C, :] = tap.astype(jnp.bfloat16)

        y = jnp.dot(w1_ref[...], rhs1_ref[...],
                    preferred_element_type=jnp.float32)         # (96, 256) f32
        y = (y + b1_ref[...]) * ring                            # zero the ring

        # ---- per-branch LayerNorm + affine + ReLU -> rolled conv2 taps ----
        for b in range(NBR):
            blk = y[b * C:(b + 1) * C, :]                       # (32, 256)
            s1 = jnp.sum(blk)                                   # ring is zero,
            s2 = jnp.sum(blk * blk)                             # so sums = interior
            mean = s1 * INV_CNT
            var = s2 * INV_CNT - mean * mean
            inv = jax.lax.rsqrt(var + EPS)
            # gamma/beta are zero on the ring -> hb's ring stays exactly 0,
            # which provides conv2's zero padding without an extra mask pass.
            hb = jnp.maximum((blk - mean) * inv * g_ref[b * C:(b + 1) * C, :]
                             + bt_ref[b * C:(b + 1) * C, :], 0.0)
            for t in range(9):
                s = _tap_shift(t)
                tap = hb if s == 0 else pltpu.roll(hb, shift=s, axis=1)
                r0 = t * NBR * C + b * C
                rhs2_ref[r0:r0 + C, :] = tap.astype(jnp.bfloat16)

        logits = jnp.dot(w2_ref[...], rhs2_ref[...],
                         preferred_element_type=jnp.float32)    # (24, 256) f32
        logits = logits + b2_ref[...]

        # ---- per-branch softmax over the NC class rows, stored directly ----
        for b in range(NBR):
            blk = logits[b * NC:(b + 1) * NC, :]                # (8, 256)
            mx = jnp.max(blk, axis=0, keepdims=True)
            e = jnp.exp(blk - mx)
            denom = jnp.sum(e, axis=0, keepdims=True)
            o_ref[i, b * NC:(b + 1) * NC, :] = e * pl.reciprocal(denom, approx=True)
        return carry

    jax.lax.fori_loop(0, x_ref.shape[0], body, 0)


@jax.jit
def adversery_forward(x_nchw, w1f, b1f, gf, btf, w2f, b2f, ring):
    """Runs all 3 branches; parameters already fused/laid out by prepare_params."""
    N = x_nchw.shape[0]
    TB = max(1, min(32, (N + 1) // 2))      # >=2 grid steps when N >= 2 (megacore/2 TCs)
    G = (N + TB - 1) // TB
    Np = G * TB

    x = x_nchw.astype(jnp.float32)
    xpad = jnp.pad(x, ((0, Np - N), (0, 0), (1, 1), (1, 1)))    # (Np, C, 16, 16)
    xflat = xpad.reshape(Np, C, PXL)

    flops = 2 * Np * PXL * (NBR * C * 9 * C + NBR * NC * 9 * NBR * C)
    bytes_accessed = (Np * C * PXL * 4 + Np * NBR * NC * PXL * 4
                      + (NBR * C * 9 * C + NBR * NC * 9 * NBR * C) * 2
                      + 2 * NBR * C * PXL * 4)

    out = pl.pallas_call(
        adversery_kernel,
        out_shape=jax.ShapeDtypeStruct((Np, NBR * NC, PXL), jnp.float32),
        grid_spec=pltpu.PrefetchScalarGridSpec(
            num_scalar_prefetch=0,
            grid=(G,),
            in_specs=[
                pl.BlockSpec((TB, C, PXL),            lambda g: (g, 0, 0)),
                pl.BlockSpec((NBR * C, 9 * C),        lambda g: (0, 0)),
                pl.BlockSpec((NBR * C, 1),            lambda g: (0, 0)),
                pl.BlockSpec((NBR * C, PXL),          lambda g: (0, 0)),
                pl.BlockSpec((NBR * C, PXL),          lambda g: (0, 0)),
                pl.BlockSpec((NBR * NC, 9 * NBR * C), lambda g: (0, 0)),
                pl.BlockSpec((NBR * NC, 1),           lambda g: (0, 0)),
                pl.BlockSpec((1, PXL),                lambda g: (0, 0)),
            ],
            out_specs=pl.BlockSpec((TB, NBR * NC, PXL), lambda g: (g, 0, 0)),
            scratch_shapes=[pltpu.VMEM((9 * C, PXL), jnp.bfloat16),
                            pltpu.VMEM((9 * NBR * C, PXL), jnp.bfloat16)],
        ),
        compiler_params=pltpu.CompilerParams(
            dimension_semantics=("parallel",)),
        cost_estimate=pl.CostEstimate(
            flops=int(flops),
            transcendentals=int(Np * NBR * NC * PXL),
            bytes_accessed=int(bytes_accessed)),
    )(xflat, w1f, b1f, gf, btf, w2f, b2f, ring)

    # (Np, 24, 256) -> (N, 3, 8, 14, 14); keep the torch unsqueeze(1) per branch
    out = out.reshape(Np, NBR, NC, HP, WP)[:N, :, :, 1:1 + H, 1:1 + W]
    return out[:, 0:1], out[:, 1:2], out[:, 2:3]


def make_ring_mask():
    """(1, 256) f32 mask: 1 on the 14x14 interior of the 16x16 grid, 0 on the ring."""
    m = np.zeros((1, HP, WP), np.float32)
    m[0, 1:1 + H, 1:1 + W] = 1.0
    return jnp.asarray(m.reshape(1, PXL))


def prepare_params(torch_style_params):
    """Fuse the 3 branches' parameters and convert to the kernel layout.

    torch layouts: conv weight (Cout, Cin, 3, 3), conv bias (Cout,),
                   LayerNorm weight/bias (C, H, W).
    kernel layouts: w1 (96, 288) bf16 (col = tap*C + cin), b1 (96,1) f32,
                    gamma/beta (96, 256) f32 zero-padded to the 16x16 ring,
                    w2 (24, 864) bf16 block-diagonal (col = tap*96 + br*C + cin),
                    b2 (24, 1) f32.
    """
    w1s, b1s, gs, bts, b2s = [], [], [], [], []
    for p in torch_style_params:
        # (cout, cin, ky, kx) -> (cout, ky, kx, cin) -> (C, 9*C): col = t*C + cin
        w1s.append(jnp.transpose(p["w1"], (0, 2, 3, 1)).reshape(C, 9 * C))
        b1s.append(p["b1"])
        gs.append(jnp.pad(p["g"], ((0, 0), (1, 1), (1, 1))).reshape(C, PXL))
        bts.append(jnp.pad(p["bt"], ((0, 0), (1, 1), (1, 1))).reshape(C, PXL))
        b2s.append(p["b2"])
    w1f = jnp.concatenate(w1s, axis=0).astype(jnp.bfloat16)             # (96, 288)
    b1f = jnp.concatenate(b1s).reshape(NBR * C, 1).astype(jnp.float32)
    gf = jnp.concatenate(gs, axis=0).astype(jnp.float32)                # (96, 256)
    btf = jnp.concatenate(bts, axis=0).astype(jnp.float32)
    b2f = jnp.concatenate(b2s).reshape(NBR * NC, 1).astype(jnp.float32)

    # conv2 fused block-diagonal weights: col = t*(NBR*C) + b*C + cin
    tap_blocks = []
    for t in range(9):
        ky, kx = t // 3, t % 3
        blk = jnp.zeros((NBR * NC, NBR * C), jnp.float32)
        for b, p in enumerate(torch_style_params):
            blk = blk.at[b * NC:(b + 1) * NC, b * C:(b + 1) * C].set(
                p["w2"][:, :, ky, kx])
        tap_blocks.append(blk)
    w2f = jnp.concatenate(tap_blocks, axis=1).astype(jnp.bfloat16)      # (24, 864)

    return w1f, b1f, gf, btf, w2f, b2f


def reference_single(x_nchw, p):
    """Pure-JAX reference for one SingleAdversery branch (torch semantics)."""
    dn = ("NCHW", "OIHW", "NCHW")
    y = jax.lax.conv_general_dilated(x_nchw, p["w1"], (1, 1), "SAME",
                                     dimension_numbers=dn)
    y = y + p["b1"][None, :, None, None]
    mean = jnp.mean(y, axis=(1, 2, 3), keepdims=True)
    var = jnp.mean((y - mean) ** 2, axis=(1, 2, 3), keepdims=True)
    y = (y - mean) / jnp.sqrt(var + EPS)
    y = y * p["g"][None] + p["bt"][None]
    y = jnp.maximum(y, 0.0)
    z = jax.lax.conv_general_dilated(y, p["w2"], (1, 1), "SAME",
                                     dimension_numbers=dn)
    z = z + p["b2"][None, :, None, None]
    return jax.nn.softmax(z, axis=1)


if __name__ == "__main__":
    key = jax.random.PRNGKey(0)
    kx, *pkeys = jax.random.split(key, 1 + NBR * 6)

    N = 2
    x = jax.random.normal(kx, (N, C, H, W), dtype=jnp.float32)

    torch_style_params = []
    it = iter(pkeys)
    for _ in range(NBR):
        torch_style_params.append({
            "w1": 0.05 * jax.random.normal(next(it), (C, C, 3, 3), jnp.float32),
            "b1": 0.05 * jax.random.normal(next(it), (C,), jnp.float32),
            "g":  1.0 + 0.1 * jax.random.normal(next(it), (C, H, W), jnp.float32),
            "bt": 0.1 * jax.random.normal(next(it), (C, H, W), jnp.float32),
            "w2": 0.05 * jax.random.normal(next(it), (NC, C, 3, 3), jnp.float32),
            "b2": 0.05 * jax.random.normal(next(it), (NC,), jnp.float32),
        })

    params = prepare_params(torch_style_params)
    ring = make_ring_mask()

    px_r, px_g, px_b = adversery_forward(x, *params, ring)
    jax.block_until_ready((px_r, px_g, px_b))

    assert px_r.shape == (N, 1, NC, H, W)
    assert px_g.shape == (N, 1, NC, H, W)
    assert px_b.shape == (N, 1, NC, H, W)

    # numerical check against a pure-JAX reference of the torch forward pass
    for out, p in zip((px_r, px_g, px_b), torch_style_params):
        ref = reference_single(x, p)[:, None]
        np.testing.assert_allclose(np.asarray(out), np.asarray(ref),
                                   atol=5e-3, rtol=5e-2)

    print("KERNEL_OK")
</pallas_src>

<mosaic_0001>
module attributes {stable_mosaic.version = 11 : i64} {
  func.func @adversery_kernel(%arg0: i32, %arg1: memref<1x32x256xf32, #tpu.memory_space<vmem>>, %arg2: memref<96x288xbf16, #tpu.memory_space<vmem>>, %arg3: memref<96x1xf32, #tpu.memory_space<vmem>>, %arg4: memref<96x256xf32, #tpu.memory_space<vmem>>, %arg5: memref<96x256xf32, #tpu.memory_space<vmem>>, %arg6: memref<24x864xbf16, #tpu.memory_space<vmem>>, %arg7: memref<24x1xf32, #tpu.memory_space<vmem>>, %arg8: memref<1x256xf32, #tpu.memory_space<vmem>>, %arg9: memref<1x24x256xf32, #tpu.memory_space<vmem>>, %arg10: memref<288x256xbf16, #tpu.memory_space<vmem>>, %arg11: memref<864x256xbf16, #tpu.memory_space<vmem>>) attributes {dimension_semantics = [#tpu.dimension_semantics<parallel>], iteration_bounds = array<i64: 2>, scalar_prefetch = 0 : i64, scratch_operands = 2 : i64, tpu.core_type = #tpu.core_type<tc>, window_params = [{transform_indices = @transform_0, window_bounds = array<i64: 1, 32, 256>}, {pipeline_mode = #tpu.pipeline_mode<synchronous>, transform_indices = @transform_1, window_bounds = array<i64: 96, 288>}, {pipeline_mode = #tpu.pipeline_mode<synchronous>, transform_indices = @transform_2, window_bounds = array<i64: 96, 1>}, {pipeline_mode = #tpu.pipeline_mode<synchronous>, transform_indices = @transform_3, window_bounds = array<i64: 96, 256>}, {pipeline_mode = #tpu.pipeline_mode<synchronous>, transform_indices = @transform_4, window_bounds = array<i64: 96, 256>}, {pipeline_mode = #tpu.pipeline_mode<synchronous>, transform_indices = @transform_5, window_bounds = array<i64: 24, 864>}, {pipeline_mode = #tpu.pipeline_mode<synchronous>, transform_indices = @transform_6, window_bounds = array<i64: 24, 1>}, {pipeline_mode = #tpu.pipeline_mode<synchronous>, transform_indices = @transform_7, window_bounds = array<i64: 1, 256>}, {transform_indices = @transform_8, window_bounds = array<i64: 1, 24, 256>}]} {
    %c0 = arith.constant 0 : index
    %c0_0 = arith.constant 0 : index
    %0 = vector.load %arg8[%c0, %c0_0] : memref<1x256xf32, #tpu.memory_space<vmem>>, vector<1x256xf32>
    %c0_i32 = arith.constant 0 : i32
    %1 = arith.index_cast %c0_i32 : i32 to index
    %c0_1 = arith.constant 0 : index
    %c0_2 = arith.constant 0 : index
    %2 = vector.load %arg1[%1, %c0_1, %c0_2] : memref<1x32x256xf32, #tpu.memory_space<vmem>>, vector<1x32x256xf32>
    %3 = vector.shape_cast %2 : vector<1x32x256xf32> to vector<32x256xf32>
    %c17_i32 = arith.constant 17 : i32
    %4 = tpu.dynamic_rotate %3 by %c17_i32 dim 1 : vector<32x256xf32>, i32 -> vector<32x256xf32>
    %5 = arith.truncf %4 : vector<32x256xf32> to vector<32x256xbf16>
    %c0_3 = arith.constant 0 : index
    %c0_4 = arith.constant 0 : index
    %6 = vector.load %arg10[%c0_3, %c0_4] : memref<288x256xbf16, #tpu.memory_space<vmem>>, vector<32x256xbf16>
    tpu.vector_store %arg10[%c0_3, %c0_4], %5 {strides = array<i32>} : memref<288x256xbf16, #tpu.memory_space<vmem>>, vector<32x256xbf16>,
    %c16_i32 = arith.constant 16 : i32
    %7 = tpu.dynamic_rotate %3 by %c16_i32 dim 1 : vector<32x256xf32>, i32 -> vector<32x256xf32>
    %8 = arith.truncf %7 : vector<32x256xf32> to vector<32x256xbf16>
    %c32 = arith.constant 32 : index
    %c0_5 = arith.constant 0 : index
    %9 = vector.load %arg10[%c32, %c0_5] : memref<288x256xbf16, #tpu.memory_space<vmem>>, vector<32x256xbf16>
    tpu.vector_store %arg10[%c32, %c0_5], %8 {strides = array<i32>} : memref<288x256xbf16, #tpu.memory_space<vmem>>, vector<32x256xbf16>,
    %c15_i32 = arith.constant 15 : i32
    %10 = tpu.dynamic_rotate %3 by %c15_i32 dim 1 : vector<32x256xf32>, i32 -> vector<32x256xf32>
    %11 = arith.truncf %10 : vector<32x256xf32> to vector<32x256xbf16>
    %c64 = arith.constant 64 : index
    %c0_6 = arith.constant 0 : index
    %12 = vector.load %arg10[%c64, %c0_6] : memref<288x256xbf16, #tpu.memory_space<vmem>>, vector<32x256xbf16>
    tpu.vector_store %arg10[%c64, %c0_6], %11 {strides = array<i32>} : memref<288x256xbf16, #tpu.memory_space<vmem>>, vector<32x256xbf16>,
    %c1_i32 = arith.constant 1 : i32
    %13 = tpu.dynamic_rotate %3 by %c1_i32 dim 1 : vector<32x256xf32>, i32 -> vector<32x256xf32>
    %14 = arith.truncf %13 : vector<32x256xf32> to vector<32x256xbf16>
    %c96 = arith.constant 96 : index
    %c0_7 = arith.constant 0 : index
    %15 = vector.load %arg10[%c96, %c0_7] : memref<288x256xbf16, #tpu.memory_space<vmem>>, vector<32x256xbf16>
    tpu.vector_store %arg10[%c96, %c0_7], %14 {strides = array<i32>} : memref<288x256xbf16, #tpu.memory_space<vmem>>, vector<32x256xbf16>,
    %16 = arith.truncf %3 : vector<32x256xf32> to vector<32x256xbf16>
    %c128 = arith.constant 128 : index
    %c0_8 = arith.constant 0 : index
    %17 = vector.load %arg10[%c128, %c0_8] : memref<288x256xbf16, #tpu.memory_space<vmem>>, vector<32x256xbf16>
    tpu.vector_store %arg10[%c128, %c0_8], %16 {strides = array<i32>} : memref<288x256xbf16, #tpu.memory_space<vmem>>, vector<32x256xbf16>,
    %c255_i32 = arith.constant 255 : i32
    %18 = tpu.dynamic_rotate %3 by %c255_i32 dim 1 : vector<32x256xf32>, i32 -> vector<32x256xf32>
    %19 = arith.truncf %18 : vector<32x256xf32> to vector<32x256xbf16>
    %c160 = arith.constant 160 : index
    %c0_9 = arith.constant 0 : index
    %20 = vector.load %arg10[%c160, %c0_9] : memref<288x256xbf16, #tpu.memory_space<vmem>>, vector<32x256xbf16>
    tpu.vector_store %arg10[%c160, %c0_9], %19 {strides = array<i32>} : memref<288x256xbf16, #tpu.memory_space<vmem>>, vector<32x256xbf16>,
    %c241_i32 = arith.constant 241 : i32
    %21 = tpu.dynamic_rotate %3 by %c241_i32 dim 1 : vector<32x256xf32>, i32 -> vector<32x256xf32>
    %22 = arith.truncf %21 : vector<32x256xf32> to vector<32x256xbf16>
    %c192 = arith.constant 192 : index
    %c0_10 = arith.constant 0 : index
    %23 = vector.load %arg10[%c192, %c0_10] : memref<288x256xbf16, #tpu.memory_space<vmem>>, vector<32x256xbf16>
    tpu.vector_store %arg10[%c192, %c0_10], %22 {strides = array<i32>} : memref<288x256xbf16, #tpu.memory_space<vmem>>, vector<32x256xbf16>,
    %c240_i32 = arith.constant 240 : i32
    %24 = tpu.dynamic_rotate %3 by %c240_i32 dim 1 : vector<32x256xf32>, i32 -> vector<32x256xf32>
    %25 = arith.truncf %24 : vector<32x256xf32> to vector<32x256xbf16>
    %c224 = arith.constant 224 : index
    %c0_11 = arith.constant 0 : index
    %26 = vector.load %arg10[%c224, %c0_11] : memref<288x256xbf16, #tpu.memory_space<vmem>>, vector<32x256xbf16>
    tpu.vector_store %arg10[%c224, %c0_11], %25 {strides = array<i32>} : memref<288x256xbf16, #tpu.memory_space<vmem>>, vector<32x256xbf16>,
    %c239_i32 = arith.constant 239 : i32
    %27 = tpu.dynamic_rotate %3 by %c239_i32 dim 1 : vector<32x256xf32>, i32 -> vector<32x256xf32>
    %28 = arith.truncf %27 : vector<32x256xf32> to vector<32x256xbf16>
    %c256 = arith.constant 256 : index
    %c0_12 = arith.constant 0 : index
    %29 = vector.load %arg10[%c256, %c0_12] : memref<288x256xbf16, #tpu.memory_space<vmem>>, vector<32x256xbf16>
    tpu.vector_store %arg10[%c256, %c0_12], %28 {strides = array<i32>} : memref<288x256xbf16, #tpu.memory_space<vmem>>, vector<32x256xbf16>,
    %c0_13 = arith.constant 0 : index
    %c0_14 = arith.constant 0 : index
    %30 = vector.load %arg2[%c0_13, %c0_14] : memref<96x288xbf16, #tpu.memory_space<vmem>>, vector<96x288xbf16>
    %c0_15 = arith.constant 0 : index
    %c0_16 = arith.constant 0 : index
    %31 = vector.load %arg10[%c0_15, %c0_16] : memref<288x256xbf16, #tpu.memory_space<vmem>>, vector<288x256xbf16>
    %cst = arith.constant dense<0.000000e+00> : vector<96x256xf32>
    %32 = tpu.matmul %30, %31, %cst {dimension_numbers = #tpu.dot_dimension_numbers<[1], [0], [0], [1], [0, 0, 1, 1], [], []>} : vector<96x288xbf16>, vector<288x256xbf16>, vector<96x256xf32> -> vector<96x256xf32>
    %c0_17 = arith.constant 0 : index
    %c0_18 = arith.constant 0 : index
    %33 = vector.load %arg3[%c0_17, %c0_18] : memref<96x1xf32, #tpu.memory_space<vmem>>, vector<96x1xf32>
    %34 = vector.broadcast %33 : vector<96x1xf32> to vector<96x256xf32>
    %35 = arith.addf %32, %34 : vector<96x256xf32>
    %36 = vector.broadcast %0 : vector<1x256xf32> to vector<96x256xf32>
    %37 = arith.mulf %35, %36 : vector<96x256xf32>
    %38 = vector.extract_strided_slice %37 {offsets = [0, 0], sizes = [32, 256], strides = [1, 1]} : vector<96x256xf32> to vector<32x256xf32>
    %39 = vector.shape_cast %38 : vector<32x256xf32> to vector<1x32x256xf32>
    %cst_19 = arith.constant dense<0.000000e+00> : vector<1xf32>
    %40 = vector.multi_reduction <add>, %39, %cst_19 [1, 2] : vector<1x32x256xf32> to vector<1xf32>
    %41 = vector.shape_cast %40 : vector<1xf32> to vector<1x1x1xf32>
    %42 = vector.extract %41[0, 0, 0] : f32 from vector<1x1x1xf32>
    %43 = arith.mulf %38, %38 : vector<32x256xf32>
    %44 = vector.shape_cast %43 : vector<32x256xf32> to vector<1x32x256xf32>
    %cst_20 = arith.constant dense<0.000000e+00> : vector<1xf32>
    %45 = vector.multi_reduction <add>, %44, %cst_20 [1, 2] : vector<1x32x256xf32> to vector<1xf32>
    %46 = vector.shape_cast %45 : vector<1xf32> to vector<1x1x1xf32>
    %47 = vector.extract %46[0, 0, 0] : f32 from vector<1x1x1xf32>
    %cst_21 = arith.constant 1.59438772E-4 : f32
    %48 = arith.mulf %42, %cst_21 : f32
    %cst_22 = arith.constant 1.59438772E-4 : f32
    %49 = arith.mulf %47, %cst_22 : f32
    %50 = arith.mulf %48, %48 : f32
    %51 = arith.subf %49, %50 : f32
    %cst_23 = arith.constant 9.99999974E-6 : f32
    %52 = arith.addf %51, %cst_23 : f32
    %53 = math.rsqrt %52 : f32
    %54 = vector.broadcast %48 : f32 to vector<32x256xf32>
    %55 = arith.subf %38, %54 : vector<32x256xf32>
    %56 = vector.broadcast %53 : f32 to vector<32x256xf32>
    %57 = arith.mulf %55, %56 : vector<32x256xf32>
    %c0_24 = arith.constant 0 : index
    %c0_25 = arith.constant 0 : index
    %58 = vector.load %arg4[%c0_24, %c0_25] : memref<96x256xf32, #tpu.memory_space<vmem>>, vector<32x256xf32>
    %59 = arith.mulf %57, %58 : vector<32x256xf32>
    %c0_26 = arith.constant 0 : index
    %c0_27 = arith.constant 0 : index
    %60 = vector.load %arg5[%c0_26, %c0_27] : memref<96x256xf32, #tpu.memory_space<vmem>>, vector<32x256xf32>
    %61 = arith.addf %59, %60 : vector<32x256xf32>
    %cst_28 = arith.constant 0.000000e+00 : f32
    %62 = vector.broadcast %cst_28 : f32 to vector<32x256xf32>
    %63 = arith.maximumf %61, %62 : vector<32x256xf32>
    %c17_i32_29 = arith.constant 17 : i32
    %64 = tpu.dynamic_rotate %63 by %c17_i32_29 dim 1 : vector<32x256xf32>, i32 -> vector<32x256xf32>
    %65 = arith.truncf %64 : vector<32x256xf32> to vector<32x256xbf16>
    %c0_30 = arith.constant 0 : index
    %c0_31 = arith.constant 0 : index
    %66 = vector.load %arg11[%c0_30, %c0_31] : memref<864x256xbf16, #tpu.memory_space<vmem>>, vector<32x256xbf16>
    tpu.vector_store %arg11[%c0_30, %c0_31], %65 {strides = array<i32>} : memref<864x256xbf16, #tpu.memory_space<vmem>>, vector<32x256xbf16>,
    %c16_i32_32 = arith.constant 16 : i32
    %67 = tpu.dynamic_rotate %63 by %c16_i32_32 dim 1 : vector<32x256xf32>, i32 -> vector<32x256xf32>
    %68 = arith.truncf %67 : vector<32x256xf32> to vector<32x256xbf16>
    %c96_33 = arith.constant 96 : index
    %c0_34 = arith.constant 0 : index
    %69 = vector.load %arg11[%c96_33, %c0_34] : memref<864x256xbf16, #tpu.memory_space<vmem>>, vector<32x256xbf16>
    tpu.vector_store %arg11[%c96_33, %c0_34], %68 {strides = array<i32>} : memref<864x256xbf16, #tpu.memory_space<vmem>>, vector<32x256xbf16>,
    %c15_i32_35 = arith.constant 15 : i32
    %70 = tpu.dynamic_rotate %63 by %c15_i32_35 dim 1 : vector<32x256xf32>, i32 -> vector<32x256xf32>
    %71 = arith.truncf %70 : vector<32x256xf32> to vector<32x256xbf16>
    %c192_36 = arith.constant 192 : index
    %c0_37 = arith.constant 0 : index
    %72 = vector.load %arg11[%c192_36, %c0_37] : memref<864x256xbf16, #tpu.memory_space<vmem>>, vector<32x256xbf16>
    tpu.vector_store %arg11[%c192_36, %c0_37], %71 {strides = array<i32>} : memref<864x256xbf16, #tpu.memory_space<vmem>>, vector<32x256xbf16>,
    %c1_i32_38 = arith.constant 1 : i32
    %73 = tpu.dynamic_rotate %63 by %c1_i32_38 dim 1 : vector<32x256xf32>, i32 -> vector<32x256xf32>
    %74 = arith.truncf %73 : vector<32x256xf32> to vector<32x256xbf16>
    %c288 = arith.constant 288 : index
    %c0_39 = arith.constant 0 : index
    %75 = vector.load %arg11[%c288, %c0_39] : memref<864x256xbf16, #tpu.memory_space<vmem>>, vector<32x256xbf16>
    tpu.vector_store %arg11[%c288, %c0_39], %74 {strides = array<i32>} : memref<864x256xbf16, #tpu.memory_space<vmem>>, vector<32x256xbf16>,
    %76 = arith.truncf %63 : vector<32x256xf32> to vector<32x256xbf16>
    %c384 = arith.constant 384 : index
    %c0_40 = arith.constant 0 : index
    %77 = vector.load %arg11[%c384, %c0_40] : memref<864x256xbf16, #tpu.memory_space<vmem>>, vector<32x256xbf16>
    tpu.vector_store %arg11[%c384, %c0_40], %76 {strides = array<i32>} : memref<864x256xbf16, #tpu.memory_space<vmem>>, vector<32x256xbf16>,
    %c255_i32_41 = arith.constant 255 : i32
    %78 = tpu.dynamic_rotate %63 by %c255_i32_41 dim 1 : vector<32x256xf32>, i32 -> vector<32x256xf32>
    %79 = arith.truncf %78 : vector<32x256xf32> to vector<32x256xbf16>
    %c480 = arith.constant 480 : index
    %c0_42 = arith.constant 0 : index
    %80 = vector.load %arg11[%c480, %c0_42] : memref<864x256xbf16, #tpu.memory_space<vmem>>, vector<32x256xbf16>
    tpu.vector_store %arg11[%c480, %c0_42], %79 {strides = array<i32>} : memref<864x256xbf16, #tpu.memory_space<vmem>>, vector<32x256xbf16>,
    %c241_i32_43 = arith.constant 241 : i32
    %81 = tpu.dynamic_rotate %63 by %c241_i32_43 dim 1 : vector<32x256xf32>, i32 -> vector<32x256xf32>
    %82 = arith.truncf %81 : vector<32x256xf32> to vector<32x256xbf16>
    %c576 = arith.constant 576 : index
    %c0_44 = arith.constant 0 : index
    %83 = vector.load %arg11[%c576, %c0_44] : memref<864x256xbf16, #tpu.memory_space<vmem>>, vector<32x256xbf16>
    tpu.vector_store %arg11[%c576, %c0_44], %82 {strides = array<i32>} : memref<864x256xbf16, #tpu.memory_space<vmem>>, vector<32x256xbf16>,
    %c240_i32_45 = arith.constant 240 : i32
    %84 = tpu.dynamic_rotate %63 by %c240_i32_45 dim 1 : vector<32x256xf32>, i32 -> vector<32x256xf32>
    %85 = arith.truncf %84 : vector<32x256xf32> to vector<32x256xbf16>
    %c672 = arith.constant 672 : index
    %c0_46 = arith.constant 0 : index
    %86 = vector.load %arg11[%c672, %c0_46] : memref<864x256xbf16, #tpu.memory_space<vmem>>, vector<32x256xbf16>
    tpu.vector_store %arg11[%c672, %c0_46], %85 {strides = array<i32>} : memref<864x256xbf16, #tpu.memory_space<vmem>>, vector<32x256xbf16>,
    %c239_i32_47 = arith.constant 239 : i32
    %87 = tpu.dynamic_rotate %63 by %c239_i32_47 dim 1 : vector<32x256xf32>, i32 -> vector<32x256xf32>
    %88 = arith.truncf %87 : vector<32x256xf32> to vector<32x256xbf16>
    %c768 = arith.constant 768 : index
    %c0_48 = arith.constant 0 : index
    %89 = vector.load %arg11[%c768, %c0_48] : memref<864x256xbf16, #tpu.memory_space<vmem>>, vector<32x256xbf16>
    tpu.vector_store %arg11[%c768, %c0_48], %88 {strides = array<i32>} : memref<864x256xbf16, #tpu.memory_space<vmem>>, vector<32x256xbf16>,
    %90 = vector.extract_strided_slice %37 {offsets = [32, 0], sizes = [32, 256], strides = [1, 1]} : vector<96x256xf32> to vector<32x256xf32>
    %91 = vector.shape_cast %90 : vector<32x256xf32> to vector<1x32x256xf32>
    %cst_49 = arith.constant dense<0.000000e+00> : vector<1xf32>
    %92 = vector.multi_reduction <add>, %91, %cst_49 [1, 2] : vector<1x32x256xf32> to vector<1xf32>
    %93 = vector.shape_cast %92 : vector<1xf32> to vector<1x1x1xf32>
    %94 = vector.extract %93[0, 0, 0] : f32 from vector<1x1x1xf32>
    %95 = arith.mulf %90, %90 : vector<32x256xf32>
    %96 = vector.shape_cast %95 : vector<32x256xf32> to vector<1x32x256xf32>
    %cst_50 = arith.constant dense<0.000000e+00> : vector<1xf32>
    %97 = vector.multi_reduction <add>, %96, %cst_50 [1, 2] : vector<1x32x256xf32> to vector<1xf32>
    %98 = vector.shape_cast %97 : vector<1xf32> to vector<1x1x1xf32>
    %99 = vector.extract %98[0, 0, 0] : f32 from vector<1x1x1xf32>
    %cst_51 = arith.constant 1.59438772E-4 : f32
    %100 = arith.mulf %94, %cst_51 : f32
    %cst_52 = arith.constant 1.59438772E-4 : f32
    %101 = arith.mulf %99, %cst_52 : f32
    %102 = arith.mulf %100, %100 : f32
    %103 = arith.subf %101, %102 : f32
    %cst_53 = arith.constant 9.99999974E-6 : f32
    %104 = arith.addf %103, %cst_53 : f32
    %105 = math.rsqrt %104 : f32
    %106 = vector.broadcast %100 : f32 to vector<32x256xf32>
    %107 = arith.subf %90, %106 : vector<32x256xf32>
    %108 = vector.broadcast %105 : f32 to vector<32x256xf32>
    %109 = arith.mulf %107, %108 : vector<32x256xf32>
    %c32_54 = arith.constant 32 : index
    %c0_55 = arith.constant 0 : index
    %110 = vector.load %arg4[%c32_54, %c0_55] : memref<96x256xf32, #tpu.memory_space<vmem>>, vector<32x256xf32>
    %111 = arith.mulf %109, %110 : vector<32x256xf32>
    %c32_56 = arith.constant 32 : index
    %c0_57 = arith.constant 0 : index
    %112 = vector.load %arg5[%c32_56, %c0_57] : memref<96x256xf32, #tpu.memory_space<vmem>>, vector<32x256xf32>
    %113 = arith.addf %111, %112 : vector<32x256xf32>
    %cst_58 = arith.constant 0.000000e+00 : f32
    %114 = vector.broadcast %cst_58 : f32 to vector<32x256xf32>
    %115 = arith.maximumf %113, %114 : vector<32x256xf32>
    %c17_i32_59 = arith.constant 17 : i32
    %116 = tpu.dynamic_rotate %115 by %c17_i32_59 dim 1 : vector<32x256xf32>, i32 -> vector<32x256xf32>
    %117 = arith.truncf %116 : vector<32x256xf32> to vector<32x256xbf16>
    %c32_60 = arith.constant 32 : index
    %c0_61 = arith.constant 0 : index
    %118 = vector.load %arg11[%c32_60, %c0_61] : memref<864x256xbf16, #tpu.memory_space<vmem>>, vector<32x256xbf16>
    tpu.vector_store %arg11[%c32_60, %c0_61], %117 {strides = array<i32>} : memref<864x256xbf16, #tpu.memory_space<vmem>>, vector<32x256xbf16>,
    %c16_i32_62 = arith.constant 16 : i32
    %119 = tpu.dynamic_rotate %115 by %c16_i32_62 dim 1 : vector<32x256xf32>, i32 -> vector<32x256xf32>
    %120 = arith.truncf %119 : vector<32x256xf32> to vector<32x256xbf16>
    %c128_63 = arith.constant 128 : index
    %c0_64 = arith.constant 0 : index
    %121 = vector.load %arg11[%c128_63, %c0_64] : memref<864x256xbf16, #tpu.memory_space<vmem>>, vector<32x256xbf16>
    tpu.vector_store %arg11[%c128_63, %c0_64], %120 {strides = array<i32>} : memref<864x256xbf16, #tpu.memory_space<vmem>>, vector<32x256xbf16>,
    %c15_i32_65 = arith.constant 15 : i32
    %122 = tpu.dynamic_rotate %115 by %c15_i32_65 dim 1 : vector<32x256xf32>, i32 -> vector<32x256xf32>
    %123 = arith.truncf %122 : vector<32x256xf32> to vector<32x256xbf16>
    %c224_66 = arith.constant 224 : index
    %c0_67 = arith.constant 0 : index
    %124 = vector.load %arg11[%c224_66, %c0_67] : memref<864x256xbf16, #tpu.memory_space<vmem>>, vector<32x256xbf16>
    tpu.vector_store %arg11[%c224_66, %c0_67], %123 {strides = array<i32>} : memref<864x256xbf16, #tpu.memory_space<vmem>>, vector<32x256xbf16>,
    %c1_i32_68 = arith.constant 1 : i32
    %125 = tpu.dynamic_rotate %115 by %c1_i32_68 dim 1 : vector<32x256xf32>, i32 -> vector<32x256xf32>
    %126 = arith.truncf %125 : vector<32x256xf32> to vector<32x256xbf16>
    %c320 = arith.constant 320 : index
    %c0_69 = arith.constant 0 : index
    %127 = vector.load %arg11[%c320, %c0_69] : memref<864x256xbf16, #tpu.memory_space<vmem>>, vector<32x256xbf16>
    tpu.vector_store %arg11[%c320, %c0_69], %126 {strides = array<i32>} : memref<864x256xbf16, #tpu.memory_space<vmem>>, vector<32x256xbf16>,
    %128 = arith.truncf %115 : vector<32x256xf32> to vector<32x256xbf16>
    %c416 = arith.constant 416 : index
    %c0_70 = arith.constant 0 : index
    %129 = vector.load %arg11[%c416, %c0_70] : memref<864x256xbf16, #tpu.memory_space<vmem>>, vector<32x256xbf16>
    tpu.vector_store %arg11[%c416, %c0_70], %128 {strides = array<i32>} : memref<864x256xbf16, #tpu.memory_space<vmem>>, vector<32x256xbf16>,
    %c255_i32_71 = arith.constant 255 : i32
    %130 = tpu.dynamic_rotate %115 by %c255_i32_71 dim 1 : vector<32x256xf32>, i32 -> vector<32x256xf32>
    %131 = arith.truncf %130 : vector<32x256xf32> to vector<32x256xbf16>
    %c512 = arith.constant 512 : index
    %c0_72 = arith.constant 0 : index
    %132 = vector.load %arg11[%c512, %c0_72] : memref<864x256xbf16, #tpu.memory_space<vmem>>, vector<32x256xbf16>
    tpu.vector_store %arg11[%c512, %c0_72], %131 {strides = array<i32>} : memref<864x256xbf16, #tpu.memory_space<vmem>>, vector<32x256xbf16>,
    %c241_i32_73 = arith.constant 241 : i32
    %133 = tpu.dynamic_rotate %115 by %c241_i32_73 dim 1 : vector<32x256xf32>, i32 -> vector<32x256xf32>
    %134 = arith.truncf %133 : vector<32x256xf32> to vector<32x256xbf16>
    %c608 = arith.constant 608 : index
    %c0_74 = arith.constant 0 : index
    %135 = vector.load %arg11[%c608, %c0_74] : memref<864x256xbf16, #tpu.memory_space<vmem>>, vector<32x256xbf16>
    tpu.vector_store %arg11[%c608, %c0_74], %134 {strides = array<i32>} : memref<864x256xbf16, #tpu.memory_space<vmem>>, vector<32x256xbf16>,
    %c240_i32_75 = arith.constant 240 : i32
    %136 = tpu.dynamic_rotate %115 by %c240_i32_75 dim 1 : vector<32x256xf32>, i32 -> vector<32x256xf32>
    %137 = arith.truncf %136 : vector<32x256xf32> to vector<32x256xbf16>
    %c704 = arith.constant 704 : index
    %c0_76 = arith.constant 0 : index
    %138 = vector.load %arg11[%c704, %c0_76] : memref<864x256xbf16, #tpu.memory_space<vmem>>, vector<32x256xbf16>
    tpu.vector_store %arg11[%c704, %c0_76], %137 {strides = array<i32>} : memref<864x256xbf16, #tpu.memory_space<vmem>>, vector<32x256xbf16>,
    %c239_i32_77 = arith.constant 239 : i32
    %139 = tpu.dynamic_rotate %115 by %c239_i32_77 dim 1 : vector<32x256xf32>, i32 -> vector<32x256xf32>
    %140 = arith.truncf %139 : vector<32x256xf32> to vector<32x256xbf16>
    %c800 = arith.constant 800 : index
    %c0_78 = arith.constant 0 : index
    %141 = vector.load %arg11[%c800, %c0_78] : memref<864x256xbf16, #tpu.memory_space<vmem>>, vector<32x256xbf16>
    tpu.vector_store %arg11[%c800, %c0_78], %140 {strides = array<i32>} : memref<864x256xbf16, #tpu.memory_space<vmem>>, vector<32x256xbf16>,
    %142 = vector.extract_strided_slice %37 {offsets = [64, 0], sizes = [32, 256], strides = [1, 1]} : vector<96x256xf32> to vector<32x256xf32>
    %143 = vector.shape_cast %142 : vector<32x256xf32> to vector<1x32x256xf32>
    %cst_79 = arith.constant dense<0.000000e+00> : vector<1xf32>
    %144 = vector.multi_reduction <add>, %143, %cst_79 [1, 2] : vector<1x32x256xf32> to vector<1xf32>
    %145 = vector.shape_cast %144 : vector<1xf32> to vector<1x1x1xf32>
    %146 = vector.extract %145[0, 0, 0] : f32 from vector<1x1x1xf32>
    %147 = arith.mulf %142, %142 : vector<32x256xf32>
    %148 = vector.shape_cast %147 : vector<32x256xf32> to vector<1x32x256xf32>
    %cst_80 = arith.constant dense<0.000000e+00> : vector<1xf32>
    %149 = vector.multi_reduction <add>, %148, %cst_80 [1, 2] : vector<1x32x256xf32> to vector<1xf32>
    %150 = vector.shape_cast %149 : vector<1xf32> to vector<1x1x1xf32>
    %151 = vector.extract %150[0, 0, 0] : f32 from vector<1x1x1xf32>
    %cst_81 = arith.constant 1.59438772E-4 : f32
    %152 = arith.mulf %146, %cst_81 : f32
    %cst_82 = arith.constant 1.59438772E-4 : f32
    %153 = arith.mulf %151, %cst_82 : f32
    %154 = arith.mulf %152, %152 : f32
    %155 = arith.subf %153, %154 : f32
    %cst_83 = arith.constant 9.99999974E-6 : f32
    %156 = arith.addf %155, %cst_83 : f32
    %157 = math.rsqrt %156 : f32
    %158 = vector.broadcast %152 : f32 to vector<32x256xf32>
    %159 = arith.subf %142, %158 : vector<32x256xf32>
    %160 = vector.broadcast %157 : f32 to vector<32x256xf32>
    %161 = arith.mulf %159, %160 : vector<32x256xf32>
    %c64_84 = arith.constant 64 : index
    %c0_85 = arith.constant 0 : index
    %162 = vector.load %arg4[%c64_84, %c0_85] : memref<96x256xf32, #tpu.memory_space<vmem>>, vector<32x256xf32>
    %163 = arith.mulf %161, %162 : vector<32x256xf32>
    %c64_86 = arith.constant 64 : index
    %c0_87 = arith.constant 0 : index
    %164 = vector.load %arg5[%c64_86, %c0_87] : memref<96x256xf32, #tpu.memory_space<vmem>>, vector<32x256xf32>
    %165 = arith.addf %163, %164 : vector<32x256xf32>
    %cst_88 = arith.constant 0.000000e+00 : f32
    %166 = vector.broadcast %cst_88 : f32 to vector<32x256xf32>
    %167 = arith.maximumf %165, %166 : vector<32x256xf32>
    %c17_i32_89 = arith.constant 17 : i32
    %168 = tpu.dynamic_rotate %167 by %c17_i32_89 dim 1 : vector<32x256xf32>, i32 -> vector<32x256xf32>
    %169 = arith.truncf %168 : vector<32x256xf32> to vector<32x256xbf16>
    %c64_90 = arith.constant 64 : index
    %c0_91 = arith.constant 0 : index
    %170 = vector.load %arg11[%c64_90, %c0_91] : memref<864x256xbf16, #tpu.memory_space<vmem>>, vector<32x256xbf16>
    tpu.vector_store %arg11[%c64_90, %c0_91], %169 {strides = array<i32>} : memref<864x256xbf16, #tpu.memory_space<vmem>>, vector<32x256xbf16>,
    %c16_i32_92 = arith.constant 16 : i32
    %171 = tpu.dynamic_rotate %167 by %c16_i32_92 dim 1 : vector<32x256xf32>, i32 -> vector<32x256xf32>
    %172 = arith.truncf %171 : vector<32x256xf32> to vector<32x256xbf16>
    %c160_93 = arith.constant 160 : index
    %c0_94 = arith.constant 0 : index
    %173 = vector.load %arg11[%c160_93, %c0_94] : memref<864x256xbf16, #tpu.memory_space<vmem>>, vector<32x256xbf16>
    tpu.vector_store %arg11[%c160_93, %c0_94], %172 {strides = array<i32>} : memref<864x256xbf16, #tpu.memory_space<vmem>>, vector<32x256xbf16>,
    %c15_i32_95 = arith.constant 15 : i32
    %174 = tpu.dynamic_rotate %167 by %c15_i32_95 dim 1 : vector<32x256xf32>, i32 -> vector<32x256xf32>
    %175 = arith.truncf %174 : vector<32x256xf32> to vector<32x256xbf16>
    %c256_96 = arith.constant 256 : index
    %c0_97 = arith.constant 0 : index
    %176 = vector.load %arg11[%c256_96, %c0_97] : memref<864x256xbf16, #tpu.memory_space<vmem>>, vector<32x256xbf16>
    tpu.vector_store %arg11[%c256_96, %c0_97], %175 {strides = array<i32>} : memref<864x256xbf16, #tpu.memory_space<vmem>>, vector<32x256xbf16>,
    %c1_i32_98 = arith.constant 1 : i32
    %177 = tpu.dynamic_rotate %167 by %c1_i32_98 dim 1 : vector<32x256xf32>, i32 -> vector<32x256xf32>
    %178 = arith.truncf %177 : vector<32x256xf32> to vector<32x256xbf16>
    %c352 = arith.constant 352 : index
    %c0_99 = arith.constant 0 : index
    %179 = vector.load %arg11[%c352, %c0_99] : memref<864x256xbf16, #tpu.memory_space<vmem>>, vector<32x256xbf16>
    tpu.vector_store %arg11[%c352, %c0_99], %178 {strides = array<i32>} : memref<864x256xbf16, #tpu.memory_space<vmem>>, vector<32x256xbf16>,
    %180 = arith.truncf %167 : vector<32x256xf32> to vector<32x256xbf16>
    %c448 = arith.constant 448 : index
    %c0_100 = arith.constant 0 : index
    %181 = vector.load %arg11[%c448, %c0_100] : memref<864x256xbf16, #tpu.memory_space<vmem>>, vector<32x256xbf16>
    tpu.vector_store %arg11[%c448, %c0_100], %180 {strides = array<i32>} : memref<864x256xbf16, #tpu.memory_space<vmem>>, vector<32x256xbf16>,
    %c255_i32_101 = arith.constant 255 : i32
    %182 = tpu.dynamic_rotate %167 by %c255_i32_101 dim 1 : vector<32x256xf32>, i32 -> vector<32x256xf32>
    %183 = arith.truncf %182 : vector<32x256xf32> to vector<32x256xbf16>
    %c544 = arith.constant 544 : index
    %c0_102 = arith.constant 0 : index
    %184 = vector.load %arg11[%c544, %c0_102] : memref<864x256xbf16, #tpu.memory_space<vmem>>, vector<32x256xbf16>
    tpu.vector_store %arg11[%c544, %c0_102], %183 {strides = array<i32>} : memref<864x256xbf16, #tpu.memory_space<vmem>>, vector<32x256xbf16>,
    %c241_i32_103 = arith.constant 241 : i32
    %185 = tpu.dynamic_rotate %167 by %c241_i32_103 dim 1 : vector<32x256xf32>, i32 -> vector<32x256xf32>
    %186 = arith.truncf %185 : vector<32x256xf32> to vector<32x256xbf16>
    %c640 = arith.constant 640 : index
    %c0_104 = arith.constant 0 : index
    %187 = vector.load %arg11[%c640, %c0_104] : memref<864x256xbf16, #tpu.memory_space<vmem>>, vector<32x256xbf16>
    tpu.vector_store %arg11[%c640, %c0_104], %186 {strides = array<i32>} : memref<864x256xbf16, #tpu.memory_space<vmem>>, vector<32x256xbf16>,
    %c240_i32_105 = arith.constant 240 : i32
    %188 = tpu.dynamic_rotate %167 by %c240_i32_105 dim 1 : vector<32x256xf32>, i32 -> vector<32x256xf32>
    %189 = arith.truncf %188 : vector<32x256xf32> to vector<32x256xbf16>
    %c736 = arith.constant 736 : index
    %c0_106 = arith.constant 0 : index
    %190 = vector.load %arg11[%c736, %c0_106] : memref<864x256xbf16, #tpu.memory_space<vmem>>, vector<32x256xbf16>
    tpu.vector_store %arg11[%c736, %c0_106], %189 {strides = array<i32>} : memref<864x256xbf16, #tpu.memory_space<vmem>>, vector<32x256xbf16>,
    %c239_i32_107 = arith.constant 239 : i32
    %191 = tpu.dynamic_rotate %167 by %c239_i32_107 dim 1 : vector<32x256xf32>, i32 -> vector<32x256xf32>
    %192 = arith.truncf %191 : vector<32x256xf32> to vector<32x256xbf16>
    %c832 = arith.constant 832 : index
    %c0_108 = arith.constant 0 : index
    %193 = vector.load %arg11[%c832, %c0_108] : memref<864x256xbf16, #tpu.memory_space<vmem>>, vector<32x256xbf16>
    tpu.vector_store %arg11[%c832, %c0_108], %192 {strides = array<i32>} : memref<864x256xbf16, #tpu.memory_space<vmem>>, vector<32x256xbf16>,
    %c0_109 = arith.constant 0 : index
    %c0_110 = arith.constant 0 : index
    %194 = vector.load %arg6[%c0_109, %c0_110] : memref<24x864xbf16, #tpu.memory_space<vmem>>, vector<24x864xbf16>
    %c0_111 = arith.constant 0 : index
    %c0_112 = arith.constant 0 : index
    %195 = vector.load %arg11[%c0_111, %c0_112] : memref<864x256xbf16, #tpu.memory_space<vmem>>, vector<864x256xbf16>
    %cst_113 = arith.constant dense<0.000000e+00> : vector<24x256xf32>
    %196 = tpu.matmul %194, %195, %cst_113 {dimension_numbers = #tpu.dot_dimension_numbers<[1], [0], [0], [1], [0, 0, 1, 1], [], []>} : vector<24x864xbf16>, vector<864x256xbf16>, vector<24x256xf32> -> vector<24x256xf32>
    %c0_114 = arith.constant 0 : index
    %c0_115 = arith.constant 0 : index
    %197 = vector.load %arg7[%c0_114, %c0_115] : memref<24x1xf32, #tpu.memory_space<vmem>>, vector<24x1xf32>
    %198 = vector.broadcast %197 : vector<24x1xf32> to vector<24x256xf32>
    %199 = arith.addf %196, %198 : vector<24x256xf32>
    %200 = vector.extract_strided_slice %199 {offsets = [0, 0], sizes = [8, 256], strides = [1, 1]} : vector<24x256xf32> to vector<8x256xf32>
    %cst_116 = arith.constant dense<0xFF800000> : vector<256xf32>
    %201 = vector.multi_reduction <maximumf>, %200, %cst_116 [0] : vector<8x256xf32> to vector<256xf32>
    %202 = vector.shape_cast %201 : vector<256xf32> to vector<1x256xf32>
    %203 = vector.broadcast %202 : vector<1x256xf32> to vector<8x256xf32>
    %204 = arith.subf %200, %203 : vector<8x256xf32>
    %205 = math.exp %204 : vector<8x256xf32>
    %cst_117 = arith.constant dense<0.000000e+00> : vector<256xf32>
    %206 = vector.multi_reduction <add>, %205, %cst_117 [0] : vector<8x256xf32> to vector<256xf32>
    %207 = vector.shape_cast %206 : vector<256xf32> to vector<1x256xf32>
    %208 = tpu.reciprocal %207 {approx = true} : vector<1x256xf32> -> vector<1x256xf32>
    %209 = vector.broadcast %208 : vector<1x256xf32> to vector<8x256xf32>
    %210 = arith.mulf %205, %209 : vector<8x256xf32>
    %211 = arith.index_cast %c0_i32 : i32 to index
    %c0_118 = arith.constant 0 : index
    %c0_119 = arith.constant 0 : index
    %212 = vector.load %arg9[%211, %c0_118, %c0_119] : memref<1x24x256xf32, #tpu.memory_space<vmem>>, vector<1x8x256xf32>
    %213 = vector.shape_cast %212 : vector<1x8x256xf32> to vector<8x256xf32>
    %214 = vector.shape_cast %210 : vector<8x256xf32> to vector<1x8x256xf32>
    tpu.vector_store %arg9[%211, %c0_118, %c0_119], %214 {strides = array<i32>} : memref<1x24x256xf32, #tpu.memory_space<vmem>>, vector<1x8x256xf32>,
    %215 = vector.extract_strided_slice %199 {offsets = [8, 0], sizes = [8, 256], strides = [1, 1]} : vector<24x256xf32> to vector<8x256xf32>
    %cst_120 = arith.constant dense<0xFF800000> : vector<256xf32>
    %216 = vector.multi_reduction <maximumf>, %215, %cst_120 [0] : vector<8x256xf32> to vector<256xf32>
    %217 = vector.shape_cast %216 : vector<256xf32> to vector<1x256xf32>
    %218 = vector.broadcast %217 : vector<1x256xf32> to vector<8x256xf32>
    %219 = arith.subf %215, %218 : vector<8x256xf32>
    %220 = math.exp %219 : vector<8x256xf32>
    %cst_121 = arith.constant dense<0.000000e+00> : vector<256xf32>
    %221 = vector.multi_reduction <add>, %220, %cst_121 [0] : vector<8x256xf32> to vector<256xf32>
    %222 = vector.shape_cast %221 : vector<256xf32> to vector<1x256xf32>
    %223 = tpu.reciprocal %222 {approx = true} : vector<1x256xf32> -> vector<1x256xf32>
    %224 = vector.broadcast %223 : vector<1x256xf32> to vector<8x256xf32>
    %225 = arith.mulf %220, %224 : vector<8x256xf32>
    %226 = arith.index_cast %c0_i32 : i32 to index
    %c8 = arith.constant 8 : index
    %c0_122 = arith.constant 0 : index
    %227 = vector.load %arg9[%226, %c8, %c0_122] : memref<1x24x256xf32, #tpu.memory_space<vmem>>, vector<1x8x256xf32>
    %228 = vector.shape_cast %227 : vector<1x8x256xf32> to vector<8x256xf32>
    %229 = vector.shape_cast %225 : vector<8x256xf32> to vector<1x8x256xf32>
    tpu.vector_store %arg9[%226, %c8, %c0_122], %229 {strides = array<i32>} : memref<1x24x256xf32, #tpu.memory_space<vmem>>, vector<1x8x256xf32>,
    %230 = vector.extract_strided_slice %199 {offsets = [16, 0], sizes = [8, 256], strides = [1, 1]} : vector<24x256xf32> to vector<8x256xf32>
    %cst_123 = arith.constant dense<0xFF800000> : vector<256xf32>
    %231 = vector.multi_reduction <maximumf>, %230, %cst_123 [0] : vector<8x256xf32> to vector<256xf32>
    %232 = vector.shape_cast %231 : vector<256xf32> to vector<1x256xf32>
    %233 = vector.broadcast %232 : vector<1x256xf32> to vector<8x256xf32>
    %234 = arith.subf %230, %233 : vector<8x256xf32>
    %235 = math.exp %234 : vector<8x256xf32>
    %cst_124 = arith.constant dense<0.000000e+00> : vector<256xf32>
    %236 = vector.multi_reduction <add>, %235, %cst_124 [0] : vector<8x256xf32> to vector<256xf32>
    %237 = vector.shape_cast %236 : vector<256xf32> to vector<1x256xf32>
    %238 = tpu.reciprocal %237 {approx = true} : vector<1x256xf32> -> vector<1x256xf32>
    %239 = vector.broadcast %238 : vector<1x256xf32> to vector<8x256xf32>
    %240 = arith.mulf %235, %239 : vector<8x256xf32>
    %241 = arith.index_cast %c0_i32 : i32 to index
    %c16 = arith.constant 16 : index
    %c0_125 = arith.constant 0 : index
    %242 = vector.load %arg9[%241, %c16, %c0_125] : memref<1x24x256xf32, #tpu.memory_space<vmem>>, vector<1x8x256xf32>
    %243 = vector.shape_cast %242 : vector<1x8x256xf32> to vector<8x256xf32>
    %244 = vector.shape_cast %240 : vector<8x256xf32> to vector<1x8x256xf32>
    tpu.vector_store %arg9[%241, %c16, %c0_125], %244 {strides = array<i32>} : memref<1x24x256xf32, #tpu.memory_space<vmem>>, vector<1x8x256xf32>,
    %c1_i32_126 = arith.constant 1 : i32
    return
  }
  func.func @transform_0(%arg0: i32) -> (i32, i32, i32) {
    %c0_i32 = arith.constant 0 : i32
    %c0_i32_0 = arith.constant 0 : i32
    %c0_i32_1 = arith.constant 0 : i32
    return %arg0, %c0_i32, %c0_i32_0 : i32, i32, i32
  }
  func.func @transform_1(%arg0: i32) -> (i32, i32) {
    %c0_i32 = arith.constant 0 : i32
    %c0_i32_0 = arith.constant 0 : i32
    %c0_i32_1 = arith.constant 0 : i32
    return %c0_i32, %c0_i32_0 : i32, i32
  }
  func.func @transform_2(%arg0: i32) -> (i32, i32) {
    %c0_i32 = arith.constant 0 : i32
    %c0_i32_0 = arith.constant 0 : i32
    %c0_i32_1 = arith.constant 0 : i32
    return %c0_i32, %c0_i32_0 : i32, i32
  }
  func.func @transform_3(%arg0: i32) -> (i32, i32) {
    %c0_i32 = arith.constant 0 : i32
    %c0_i32_0 = arith.constant 0 : i32
    %c0_i32_1 = arith.constant 0 : i32
    return %c0_i32, %c0_i32_0 : i32, i32
  }
  func.func @transform_4(%arg0: i32) -> (i32, i32) {
    %c0_i32 = arith.constant 0 : i32
    %c0_i32_0 = arith.constant 0 : i32
    %c0_i32_1 = arith.constant 0 : i32
    return %c0_i32, %c0_i32_0 : i32, i32
  }
  func.func @transform_5(%arg0: i32) -> (i32, i32) {
    %c0_i32 = arith.constant 0 : i32
    %c0_i32_0 = arith.constant 0 : i32
    %c0_i32_1 = arith.constant 0 : i32
    return %c0_i32, %c0_i32_0 : i32, i32
  }
  func.func @transform_6(%arg0: i32) -> (i32, i32) {
    %c0_i32 = arith.constant 0 : i32
    %c0_i32_0 = arith.constant 0 : i32
    %c0_i32_1 = arith.constant 0 : i32
    return %c0_i32, %c0_i32_0 : i32, i32
  }
  func.func @transform_7(%arg0: i32) -> (i32, i32) {
    %c0_i32 = arith.constant 0 : i32
    %c0_i32_0 = arith.constant 0 : i32
    %c0_i32_1 = arith.constant 0 : i32
    return %c0_i32, %c0_i32_0 : i32, i32
  }
  func.func @transform_8(%arg0: i32) -> (i32, i32, i32) {
    %c0_i32 = arith.constant 0 : i32
    %c0_i32_0 = arith.constant 0 : i32
    %c0_i32_1 = arith.constant 0 : i32
    return %arg0, %c0_i32, %c0_i32_0 : i32, i32, i32
  }
}

</mosaic_0001>

<llo_original>
// kernel: adversery_forward.1
$region0: #{adversery_forward.1}
  #allocation0 [shape = 'u32[]', space=smem, size = 0x4, offset = 0x4, fixed_abs, tag = 'smem constant byte address 0x4 - core index']
  #allocation1 [shape = 'u32[144,128]{1,0:T(1,128)}', space=vmem, size = 0x12000, scoped, tag = 'internal scratch']
  #allocation2 [shape = 'bf16[288,256]{1,0:T(16,128)(2,1)}', space=vmem, size = 0x24000, scoped, tag = 'scratch operand']
  #allocation3 [shape = 'bf16[864,256]{1,0:T(16,128)(2,1)}', space=vmem, size = 0x6c000, scoped, tag = 'scratch operand']
  %s0 = inlined_call_operand.vmem [shape: f32[2,32,256], index: 0, kind: input, shape index: {}]
  %s1 = inlined_call_operand.vmem [shape: bf16[96,288], index: 1, kind: input, shape index: {}]
  %s2 = inlined_call_operand.vmem [shape: f32[96,1], index: 2, kind: input, shape index: {}]
  %s3 = inlined_call_operand.vmem [shape: f32[96,256], index: 3, kind: input, shape index: {}]
  %s4 = inlined_call_operand.vmem [shape: f32[96,256], index: 4, kind: input, shape index: {}]
  %s5 = inlined_call_operand.vmem [shape: bf16[24,864], index: 5, kind: input, shape index: {}]
  %s6 = inlined_call_operand.vmem [shape: f32[24,1], index: 6, kind: input, shape index: {}]
  %s7 = inlined_call_operand.vmem [shape: f32[1,256], index: 7, kind: input, shape index: {}]
  %s8 = inlined_call_operand.vmem [shape: f32[2,24,256], index: 8, kind: output, shape index: {}]
  %s9 = sld [smem:[#allocation0]]
  $region65: #{adversery_forward.1} parent=0
    _
  %s11 = ssub.s32 1, %s9
  %s12 = scalar_select 0, %s11, %s9
  loop: start=0, step=1, limit=4
  $region2: #{adversery_forward.1} parent=0 // loop_pre_header
    _
  $region3: #{adversery_forward.1} parent=0 // loop_header
    %s14 = sphi 0, %s18
    %p15 = scmp.ge.s32.totalorder %s14, 4
    %s24 = sphi 0, %s26
    %s27 = sphi 0, %s24
    %s28 = sphi 0, %s27
    %s44 = sphi 0, %s28
    %s48 = sphi 0, %s48
    %s50 = sphi 0, %s48
    %s51 = sphi 0, %s50
    %s65 = sphi 0, %s51
    %s69 = sphi 0, %s69
    %s71 = sphi 0, %s69
    %s72 = sphi 0, %s71
    %s86 = sphi 0, %s72
    %s90 = sphi 0, %s90
    %s92 = sphi 0, %s90
    %s93 = sphi 0, %s92
    %s107 = sphi 0, %s93
    %s111 = sphi 0, %s111
    %s113 = sphi 0, %s111
    %s114 = sphi 0, %s113
    %s128 = sphi 0, %s114
    %s132 = sphi 0, %s132
    %s134 = sphi 0, %s132
    %s135 = sphi 0, %s134
    %s149 = sphi 0, %s135
    %s153 = sphi 0, %s153
    %s155 = sphi 0, %s153
    %s156 = sphi 0, %s155
    %s170 = sphi 0, %s156
    %s174 = sphi 0, %s174
    %s176 = sphi 0, %s174
    %s177 = sphi 0, %s176
    %s191 = sphi 0, %s177
    %s197 = sphi 0, %s199
    %s200 = sphi 0, %s197
    %s201 = sphi 0, %s200
    %s217 = sphi 0, %s201
  $region4: #{adversery_forward.1} parent=0 // loop_header_branch
    %17 = sbr.rel (%p15) target = $region8
  $region5: #{adversery_forward.1} parent=0 // loop_body
    %s19 = ssub.s32 %s14, 1
    %s20 = ssub.s32 %s14, 2
    %s21 = sadd.s32 %s14, 1
    %s22 = ssub.s32 %s14, %s21
    %p23 = scmp.eq.s32.totalorder %s22, 0
    %s25 = sadd.s32 %s24, 1
    %s26 = scalar_select %p23, %s24, %s25
    %p29 = pneg %p23
    %p30 = scmp.eq.s32.totalorder %s14, 1
    %p31 = por %p29, %p30
    %p32 = scmp.ne.s32.totalorder %s24, %s27
    %p33 = scmp.eq.s32.totalorder %s14, 0
    %p34 = por %p32, %p33
    %p35 = scmp.ne.s32.totalorder %s24, %s27
    %p36 = scmp.eq.s32.totalorder %s19, 1
    %p37 = por %p35, %p36
    %p38 = scmp.ne.s32.totalorder %s27, %s28
    %p39 = scmp.eq.s32.totalorder %s19, 0
    %p40 = por %p38, %p39
    %p41 = scmp.ne.s32.totalorder %s27, %s28
    %p42 = scmp.eq.s32.totalorder %s20, 1
    %p43 = por %p41, %p42
    %p45 = scmp.ne.s32.totalorder %s28, %s44
    %p46 = scmp.eq.s32.totalorder %s20, 0
    %p47 = por %p45, %p46
    %s49 = sadd.s32 %s48, 1
    %p52 = scmp.eq.s32.totalorder %s14, 1
    %p53 = scmp.ne.s32.totalorder %s48, %s50
    %p54 = scmp.eq.s32.totalorder %s14, 0
    %p55 = por %p53, %p54
    %p56 = scmp.ne.s32.totalorder %s48, %s50
    %p57 = scmp.eq.s32.totalorder %s19, 1
    %p58 = por %p56, %p57
    %p59 = scmp.ne.s32.totalorder %s50, %s51
    %p60 = scmp.eq.s32.totalorder %s19, 0
    %p61 = por %p59, %p60
    %p62 = scmp.ne.s32.totalorder %s50, %s51
    %p63 = scmp.eq.s32.totalorder %s20, 1
    %p64 = por %p62, %p63
    %p66 = scmp.ne.s32.totalorder %s51, %s65
    %p67 = scmp.eq.s32.totalorder %s20, 0
    %p68 = por %p66, %p67
    %s70 = sadd.s32 %s69, 1
    %p73 = scmp.eq.s32.totalorder %s14, 1
    %p74 = scmp.ne.s32.totalorder %s69, %s71
    %p75 = scmp.eq.s32.totalorder %s14, 0
    %p76 = por %p74, %p75
    %p77 = scmp.ne.s32.totalorder %s69, %s71
    %p78 = scmp.eq.s32.totalorder %s19, 1
    %p79 = por %p77, %p78
    %p80 = scmp.ne.s32.totalorder %s71, %s72
    %p81 = scmp.eq.s32.totalorder %s19, 0
    %p82 = por %p80, %p81
    %p83 = scmp.ne.s32.totalorder %s71, %s72
    %p84 = scmp.eq.s32.totalorder %s20, 1
    %p85 = por %p83, %p84
    %p87 = scmp.ne.s32.totalorder %s72, %s86
    %p88 = scmp.eq.s32.totalorder %s20, 0
    %p89 = por %p87, %p88
    %s91 = sadd.s32 %s90, 1
    %p94 = scmp.eq.s32.totalorder %s14, 1
    %p95 = scmp.ne.s32.totalorder %s90, %s92
    %p96 = scmp.eq.s32.totalorder %s14, 0
    %p97 = por %p95, %p96
    %p98 = scmp.ne.s32.totalorder %s90, %s92
    %p99 = scmp.eq.s32.totalorder %s19, 1
    %p100 = por %p98, %p99
    %p101 = scmp.ne.s32.totalorder %s92, %s93
    %p102 = scmp.eq.s32.totalorder %s19, 0
    %p103 = por %p101, %p102
    %p104 = scmp.ne.s32.totalorder %s92, %s93
    %p105 = scmp.eq.s32.totalorder %s20, 1
    %p106 = por %p104, %p105
    %p108 = scmp.ne.s32.totalorder %s93, %s107
    %p109 = scmp.eq.s32.totalorder %s20, 0
    %p110 = por %p108, %p109
    %s112 = sadd.s32 %s111, 1
    %p115 = scmp.eq.s32.totalorder %s14, 1
    %p116 = scmp.ne.s32.totalorder %s111, %s113
    %p117 = scmp.eq.s32.totalorder %s14, 0
    %p118 = por %p116, %p117
    %p119 = scmp.ne.s32.totalorder %s111, %s113
    %p120 = scmp.eq.s32.totalorder %s19, 1
    %p121 = por %p119, %p120
    %p122 = scmp.ne.s32.totalorder %s113, %s114
    %p123 = scmp.eq.s32.totalorder %s19, 0
    %p124 = por %p122, %p123
    %p125 = scmp.ne.s32.totalorder %s113, %s114
    %p126 = scmp.eq.s32.totalorder %s20, 1
    %p127 = por %p125, %p126
    %p129 = scmp.ne.s32.totalorder %s114, %s128
    %p130 = scmp.eq.s32.totalorder %s20, 0
    %p131 = por %p129, %p130
    %s133 = sadd.s32 %s132, 1
    %p136 = scmp.eq.s32.totalorder %s14, 1
    %p137 = scmp.ne.s32.totalorder %s132, %s134
    %p138 = scmp.eq.s32.totalorder %s14, 0
    %p139 = por %p137, %p138
    %p140 = scmp.ne.s32.totalorder %s132, %s134
    %p141 = scmp.eq.s32.totalorder %s19, 1
    %p142 = por %p140, %p141
    %p143 = scmp.ne.s32.totalorder %s134, %s135
    %p144 = scmp.eq.s32.totalorder %s19, 0
    %p145 = por %p143, %p144
    %p146 = scmp.ne.s32.totalorder %s134, %s135
    %p147 = scmp.eq.s32.totalorder %s20, 1
    %p148 = por %p146, %p147
    %p150 = scmp.ne.s32.totalorder %s135, %s149
    %p151 = scmp.eq.s32.totalorder %s20, 0
    %p152 = por %p150, %p151
    %s154 = sadd.s32 %s153, 1
    %p157 = scmp.eq.s32.totalorder %s14, 1
    %p158 = scmp.ne.s32.totalorder %s153, %s155
    %p159 = scmp.eq.s32.totalorder %s14, 0
    %p160 = por %p158, %p159
    %p161 = scmp.ne.s32.totalorder %s153, %s155
    %p162 = scmp.eq.s32.totalorder %s19, 1
    %p163 = por %p161, %p162
    %p164 = scmp.ne.s32.totalorder %s155, %s156
    %p165 = scmp.eq.s32.totalorder %s19, 0
    %p166 = por %p164, %p165
    %p167 = scmp.ne.s32.totalorder %s155, %s156
    %p168 = scmp.eq.s32.totalorder %s20, 1
    %p169 = por %p167, %p168
    %p171 = scmp.ne.s32.totalorder %s156, %s170
    %p172 = scmp.eq.s32.totalorder %s20, 0
    %p173 = por %p171, %p172
    %s175 = sadd.s32 %s174, 1
    %p178 = scmp.eq.s32.totalorder %s14, 1
    %p179 = scmp.ne.s32.totalorder %s174, %s176
    %p180 = scmp.eq.s32.totalorder %s14, 0
    %p181 = por %p179, %p180
    %p182 = scmp.ne.s32.totalorder %s174, %s176
    %p183 = scmp.eq.s32.totalorder %s19, 1
    %p184 = por %p182, %p183
    %p185 = scmp.ne.s32.totalorder %s176, %s177
    %p186 = scmp.eq.s32.totalorder %s19, 0
    %p187 = por %p185, %p186
    %p188 = scmp.ne.s32.totalorder %s176, %s177
    %p189 = scmp.eq.s32.totalorder %s20, 1
    %p190 = por %p188, %p189
    %p192 = scmp.ne.s32.totalorder %s177, %s191
    %p193 = scmp.eq.s32.totalorder %s20, 0
    %p194 = por %p192, %p193
    %s195 = ssub.s32 %s14, %s21
    %p196 = scmp.eq.s32.totalorder %s195, 0
    %s198 = sadd.s32 %s197, 1
    %s199 = scalar_select %p196, %s197, %s198
    %p202 = pneg %p196
    %p203 = scmp.eq.s32.totalorder %s14, 1
    %p204 = por %p202, %p203
    %p205 = scmp.ne.s32.totalorder %s197, %s200
    %p206 = scmp.eq.s32.totalorder %s14, 0
    %p207 = por %p205, %p206
    %p208 = scmp.ne.s32.totalorder %s197, %s200
    %p209 = scmp.eq.s32.totalorder %s19, 1
    %p210 = por %p208, %p209
    %p211 = scmp.ne.s32.totalorder %s200, %s201
    %p212 = scmp.eq.s32.totalorder %s19, 0
    %p213 = por %p211, %p212
    %p214 = scmp.ne.s32.totalorder %s200, %s201
    %p215 = scmp.eq.s32.totalorder %s20, 1
    %p216 = por %p214, %p215
    %p218 = scmp.ne.s32.totalorder %s201, %s217
    %p219 = scmp.eq.s32.totalorder %s20, 0
    %p220 = por %p218, %p219
    %p221 = scmp.le.s32.totalorder 1, %s14
    %p222 = scmp.lt.s32.totalorder %s14, 3
    %p223 = pnand %p221, %p222
    %p224 = pneg %p223
    // Predicated region
    $region9: #{adversery_forward.1} parent=5 // pred_check
      _
    $region10: #{adversery_forward.1} parent=5 // pred_check_branch
      %226 = sbr.rel (%p223) target = $region12
    $region11: #{adversery_forward.1} parent=5 // pred_region
      %s227 = ssub.s32 %s14, 1
      // Predicated region
      $region13: #{adversery_forward.1} parent=11 // pred_check
        %p228 = pneg %p61
      $region14: #{adversery_forward.1} parent=11 // pred_check_branch
        %230 = sbr.rel (%p228) target = $region16
      $region15: #{adversery_forward.1} parent=11 // pred_region
        _
      $region16: #{adversery_forward.1} parent=11 // pred_fallthru
        _
      // Predicated region
      $region17: #{adversery_forward.1} parent=11 // pred_check
        %p231 = pneg %p82
      $region18: #{adversery_forward.1} parent=11 // pred_check_branch
        %233 = sbr.rel (%p231) target = $region20
      $region19: #{adversery_forward.1} parent=11 // pred_region
        _
      $region20: #{adversery_forward.1} parent=11 // pred_fallthru
        _
      // Predicated region
      $region21: #{adversery_forward.1} parent=11 // pred_check
        %p234 = pneg %p103
      $region22: #{adversery_forward.1} parent=11 // pred_check_branch
        %236 = sbr.rel (%p234) target = $region24
      $region23: #{adversery_forward.1} parent=11 // pred_region
        _
      $region24: #{adversery_forward.1} parent=11 // pred_fallthru
        _
      // Predicated region
      $region25: #{adversery_forward.1} parent=11 // pred_check
        %p237 = pneg %p124
      $region26: #{adversery_forward.1} parent=11 // pred_check_branch
        %239 = sbr.rel (%p237) target = $region28
      $region27: #{adversery_forward.1} parent=11 // pred_region
        _
      $region28: #{adversery_forward.1} parent=11 // pred_fallthru
        _
      // Predicated region
      $region29: #{adversery_forward.1} parent=11 // pred_check
        %p240 = pneg %p145
      $region30: #{adversery_forward.1} parent=11 // pred_check_branch
        %242 = sbr.rel (%p240) target = $region32
      $region31: #{adversery_forward.1} parent=11 // pred_region
        _
      $region32: #{adversery_forward.1} parent=11 // pred_fallthru
        _
      // Predicated region
      $region33: #{adversery_forward.1} parent=11 // pred_check
        %p243 = pneg %p166
      $region34: #{adversery_forward.1} parent=11 // pred_check_branch
        %245 = sbr.rel (%p243) target = $region36
      $region35: #{adversery_forward.1} parent=11 // pred_region
        _
      $region36: #{adversery_forward.1} parent=11 // pred_fallthru
        _
      // Predicated region
      $region37: #{adversery_forward.1} parent=11 // pred_check
        %p246 = pneg %p187
      $region38: #{adversery_forward.1} parent=11 // pred_check_branch
        %248 = sbr.rel (%p246) target = $region40
      $region39: #{adversery_forward.1} parent=11 // pred_region
        _
      $region40: #{adversery_forward.1} parent=11 // pred_fallthru
        _
    $region12: #{adversery_forward.1} parent=5 // pred_fallthru
      _
    %p249 = scmp.lt.s32.totalorder %s14, 2
    // Predicated region
    $region41: #{adversery_forward.1} parent=5 // pred_check
      %p250 = pneg %p249
    $region42: #{adversery_forward.1} parent=5 // pred_check_branch
      %252 = sbr.rel (%p250) target = $region44
    $region43: #{adversery_forward.1} parent=5 // pred_region
      // Predicated region
      $region45: #{adversery_forward.1} parent=43 // pred_check
        %p253 = pneg %p34
      $region46: #{adversery_forward.1} parent=43 // pred_check_branch
        %255 = sbr.rel (%p253) target = $region48
      $region47: #{adversery_forward.1} parent=43 // pred_region
        %p256 = scmp.lt.s32.totalorder %s14, 1
        %s257 = scalar_select %p256, %s14, 1
        %s258 = smul.addr %s257, 8
        %s259 = smul.addr %s258, 8
        %s260 = scalar_lea.vmem %s0, %s259
      $region48: #{adversery_forward.1} parent=43 // pred_fallthru
        _
    $region44: #{adversery_forward.1} parent=5 // pred_fallthru
      _
    %p261 = scmp.le.s32.totalorder 1, %s14
    %p262 = scmp.lt.s32.totalorder %s14, 3
    %p263 = pnand %p261, %p262
    %p264 = pneg %p263
    // Predicated region
    $region49: #{adversery_forward.1} parent=5 // pred_check
      _
    $region50: #{adversery_forward.1} parent=5 // pred_check_branch
      %266 = sbr.rel (%p263) target = $region52
    $region51: #{adversery_forward.1} parent=5 // pred_region
      %s267 = ssub.s32 %s14, 1
      %p268 = scmp.lt.s32.totalorder %s19, 1
      %s269 = scalar_select %p268, %s19, 1
      %s270 = smul.addr %s269, 8
      %s271 = smul.addr %s270, 8
      %s272 = scalar_lea.vmem %s0, %s271
      %p273 = pneg %p40
      %p274 = pneg %p37
      %p275 = pneg %p61
      %p276 = pneg %p58
      %p277 = pneg %p82
      %p278 = pneg %p79
      %p279 = pneg %p103
      %p280 = pneg %p100
      %p281 = pneg %p124
      %p282 = pneg %p121
      %p283 = pneg %p145
      %p284 = pneg %p142
      %p285 = pneg %p166
      %p286 = pneg %p163
      %p287 = pneg %p187
      %p288 = pneg %p184
      %p289 = pneg %p213
      %p290 = pneg %p210
      %p291 = scmp.lt.s32.totalorder %s19, 1
      %s292 = scalar_select %p291, %s19, 1
      %s293 = smul.addr %s292, 6
      %s294 = smul.addr %s293, 8
      %s295 = scalar_lea.vmem %s8, %s294
      %p296 = scmp.lt.s32.totalorder %s19, 1
      %s297 = scalar_select %p296, %s19, 1
      %s298 = smul.addr %s297, 8
      %s299 = smul.addr %s298, 8
      %s300 = scalar_lea.vmem %s0, %s299
      %p301 = scmp.lt.s32.totalorder %s19, 1
      %s302 = scalar_select %p301, %s19, 1
      %s303 = smul.addr %s302, 6
      %s304 = smul.addr %s303, 8
      %s305 = scalar_lea.vmem %s8, %s304
      %v307 = vld [vmem:[%s7] sm:$0x3]
      %v308 = vld [vmem:[%s300] sm:$0xff]
      %v309 = vld [vmem:[%s300 + $0x8] sm:$0xff]
      %v310 = vld [vmem:[%s300 + $0x10] sm:$0xff]
      %v311 = vld [vmem:[%s300 + $0x18] sm:$0xff]
      %v312 = vld [vmem:[%s300 + $0x20] sm:$0xff]
      %v313 = vld [vmem:[%s300 + $0x28] sm:$0xff]
      %v314 = vld [vmem:[%s300 + $0x30] sm:$0xff]
      %v315 = vld [vmem:[%s300 + $0x38] sm:$0xff]
      %316 = vrot.lane.b32.xlu0 %v308, 17
      %v317 = vpop.permute.xlu0 %316
      %318 = vrot.lane.b32.xlu0 %v310, 17
      %v319 = vpop.permute.xlu0 %318
      %320 = vrot.lane.b32.xlu0 %v312, 17
      %v321 = vpop.permute.xlu0 %320
      %322 = vrot.lane.b32.xlu0 %v314, 17
      %v323 = vpop.permute.xlu0 %322
      %324 = vrot.lane.b32.xlu0 %v309, 17
      %v325 = vpop.permute.xlu0 %324
      %326 = vrot.lane.b32.xlu0 %v311, 17
      %v327 = vpop.permute.xlu0 %326
      %328 = vrot.lane.b32.xlu0 %v313, 17
      %v329 = vpop.permute.xlu0 %328
      %330 = vrot.lane.b32.xlu0 %v315, 17
      %v331 = vpop.permute.xlu0 %330
      %v332 = vlaneseq
      %v333 = vand.u32 %v332, 127
      %vm334 = vcmp.lt.s32.totalorder %v333, 17
      %v335 = vsel %vm334, %v317, %v325
      %v336 = vsel %vm334, %v319, %v327
      %v337 = vsel %vm334, %v321, %v329
      %v338 = vsel %vm334, %v323, %v331
      %v339 = vsel %vm334, %v325, %v317
      %v340 = vsel %vm334, %v327, %v319
      %v341 = vsel %vm334, %v329, %v321
      %v342 = vsel %vm334, %v331, %v323
      %v343 = vpack.c.bf16 %v340, %v339
      %v344 = vpack.c.bf16 %v336, %v335
      %v345 = vpack.c.bf16 %v342, %v341
      %v346 = vpack.c.bf16 %v338, %v337
      %347 = vst [vmem:[#allocation2] sm:$0xff] %v343
      %348 = vst [vmem:[#allocation2 + $0x8] sm:$0xff] %v344
      %349 = vst [vmem:[#allocation2 + $0x10] sm:$0xff] %v345
      %350 = vst [vmem:[#allocation2 + $0x18] sm:$0xff] %v346
      %351 = vrot.lane.b32.xlu0 %v308, 16
      %v352 = vpop.permute.xlu0 %351
      %353 = vrot.lane.b32.xlu0 %v310, 16
      %v354 = vpop.permute.xlu0 %353
      %355 = vrot.lane.b32.xlu0 %v312, 16
      %v356 = vpop.permute.xlu0 %355
      %357 = vrot.lane.b32.xlu0 %v314, 16
      %v358 = vpop.permute.xlu0 %357
      %359 = vrot.lane.b32.xlu0 %v309, 16
      %v360 = vpop.permute.xlu0 %359
      %361 = vrot.lane.b32.xlu0 %v311, 16
      %v362 = vpop.permute.xlu0 %361
      %363 = vrot.lane.b32.xlu0 %v313, 16
      %v364 = vpop.permute.xlu0 %363
      %365 = vrot.lane.b32.xlu0 %v315, 16
      %v366 = vpop.permute.xlu0 %365
      %vm367 = vcmp.lt.s32.totalorder %v333, 16
      %v368 = vsel %vm367, %v352, %v360
      %v369 = vsel %vm367, %v354, %v362
      %v370 = vsel %vm367, %v356, %v364
      %v371 = vsel %vm367, %v358, %v366
      %v372 = vsel %vm367, %v360, %v352
      %v373 = vsel %vm367, %v362, %v354
      %v374 = vsel %vm367, %v364, %v356
      %v375 = vsel %vm367, %v366, %v358
      %v376 = vpack.c.bf16 %v373, %v372
      %v377 = vpack.c.bf16 %v369, %v368
      %v378 = vpack.c.bf16 %v375, %v374
      %v379 = vpack.c.bf16 %v371, %v370
      %380 = vst [vmem:[#allocation2 + $0x20] sm:$0xff] %v376
      %381 = vst [vmem:[#allocation2 + $0x28] sm:$0xff] %v377
      %382 = vst [vmem:[#allocation2 + $0x30] sm:$0xff] %v378
      %383 = vst [vmem:[#allocation2 + $0x38] sm:$0xff] %v379
      %384 = vrot.lane.b32.xlu0 %v308, 15
      %v385 = vpop.permute.xlu0 %384
      %386 = vrot.lane.b32.xlu0 %v310, 15
      %v387 = vpop.permute.xlu0 %386
      %388 = vrot.lane.b32.xlu0 %v312, 15
      %v389 = vpop.permute.xlu0 %388
      %390 = vrot.lane.b32.xlu0 %v314, 15
      %v391 = vpop.permute.xlu0 %390
      %392 = vrot.lane.b32.xlu0 %v309, 15
      %v393 = vpop.permute.xlu0 %392
      %394 = vrot.lane.b32.xlu0 %v311, 15
      %v395 = vpop.permute.xlu0 %394
      %396 = vrot.lane.b32.xlu0 %v313, 15
      %v397 = vpop.permute.xlu0 %396
      %398 = vrot.lane.b32.xlu0 %v315, 15
      %v399 = vpop.permute.xlu0 %398
      %vm400 = vcmp.lt.s32.totalorder %v333, 15
      %v401 = vsel %vm400, %v385, %v393
      %v402 = vsel %vm400, %v387, %v395
      %v403 = vsel %vm400, %v389, %v397
      %v404 = vsel %vm400, %v391, %v399
      %v405 = vsel %vm400, %v393, %v385
      %v406 = vsel %vm400, %v395, %v387
      %v407 = vsel %vm400, %v397, %v389
      %v408 = vsel %vm400, %v399, %v391
      %v409 = vpack.c.bf16 %v406, %v405
      %v410 = vpack.c.bf16 %v402, %v401
      %v411 = vpack.c.bf16 %v408, %v407
      %v412 = vpack.c.bf16 %v404, %v403
      %413 = vst [vmem:[#allocation2 + $0x40] sm:$0xff] %v409
      %414 = vst [vmem:[#allocation2 + $0x48] sm:$0xff] %v410
      %415 = vst [vmem:[#allocation2 + $0x50] sm:$0xff] %v411
      %416 = vst [vmem:[#allocation2 + $0x58] sm:$0xff] %v412
      %417 = vrot.lane.b32.xlu0 %v308, 1
      %v418 = vpop.permute.xlu0 %417
      %419 = vrot.lane.b32.xlu0 %v310, 1
      %v420 = vpop.permute.xlu0 %419
      %421 = vrot.lane.b32.xlu0 %v312, 1
      %v422 = vpop.permute.xlu0 %421
      %423 = vrot.lane.b32.xlu0 %v314, 1
      %v424 = vpop.permute.xlu0 %423
      %425 = vrot.lane.b32.xlu0 %v309, 1
      %v426 = vpop.permute.xlu0 %425
      %427 = vrot.lane.b32.xlu0 %v311, 1
      %v428 = vpop.permute.xlu0 %427
      %429 = vrot.lane.b32.xlu0 %v313, 1
      %v430 = vpop.permute.xlu0 %429
      %431 = vrot.lane.b32.xlu0 %v315, 1
      %v432 = vpop.permute.xlu0 %431
      %vm433 = vcmp.lt.s32.totalorder %v333, 1
      %v434 = vsel %vm433, %v418, %v426
      %v435 = vsel %vm433, %v420, %v428
      %v436 = vsel %vm433, %v422, %v430
      %v437 = vsel %vm433, %v424, %v432
      %v438 = vsel %vm433, %v426, %v418
      %v439 = vsel %vm433, %v428, %v420
      %v440 = vsel %vm433, %v430, %v422
      %v441 = vsel %vm433, %v432, %v424
      %v442 = vpack.c.bf16 %v439, %v438
      %v443 = vpack.c.bf16 %v435, %v434
      %v444 = vpack.c.bf16 %v441, %v440
      %v445 = vpack.c.bf16 %v437, %v436
      %446 = vst [vmem:[#allocation2 + $0x60] sm:$0xff] %v442
      %447 = vst [vmem:[#allocation2 + $0x68] sm:$0xff] %v443
      %448 = vst [vmem:[#allocation2 + $0x70] sm:$0xff] %v444
      %449 = vst [vmem:[#allocation2 + $0x78] sm:$0xff] %v445
      %v450 = vpack.c.bf16 %v310, %v308
      %v451 = vpack.c.bf16 %v311, %v309
      %v452 = vpack.c.bf16 %v314, %v312
      %v453 = vpack.c.bf16 %v315, %v313
      %454 = vst [vmem:[#allocation2 + $0x80] sm:$0xff] %v450
      %455 = vst [vmem:[#allocation2 + $0x88] sm:$0xff] %v451
      %456 = vst [vmem:[#allocation2 + $0x90] sm:$0xff] %v452
      %457 = vst [vmem:[#allocation2 + $0x98] sm:$0xff] %v453
      %458 = vrot.lane.b32.xlu0 %v308, 127
      %v459 = vpop.permute.xlu0 %458
      %460 = vrot.lane.b32.xlu0 %v310, 127
      %v461 = vpop.permute.xlu0 %460
      %462 = vrot.lane.b32.xlu0 %v312, 127
      %v463 = vpop.permute.xlu0 %462
      %464 = vrot.lane.b32.xlu0 %v314, 127
      %v465 = vpop.permute.xlu0 %464
      %466 = vrot.lane.b32.xlu0 %v309, 127
      %v467 = vpop.permute.xlu0 %466
      %468 = vrot.lane.b32.xlu0 %v311, 127
      %v469 = vpop.permute.xlu0 %468
      %470 = vrot.lane.b32.xlu0 %v313, 127
      %v471 = vpop.permute.xlu0 %470
      %472 = vrot.lane.b32.xlu0 %v315, 127
      %v473 = vpop.permute.xlu0 %472
      %vm474 = vcmp.lt.s32.totalorder %v333, 127
      %v475 = vsel %vm474, %v459, %v467
      %v476 = vsel %vm474, %v461, %v469
      %v477 = vsel %vm474, %v463, %v471
      %v478 = vsel %vm474, %v465, %v473
      %v479 = vsel %vm474, %v467, %v459
      %v480 = vsel %vm474, %v469, %v461
      %v481 = vsel %vm474, %v471, %v463
      %v482 = vsel %vm474, %v473, %v465
      %v483 = vpack.c.bf16 %v476, %v475
      %v484 = vpack.c.bf16 %v480, %v479
      %v485 = vpack.c.bf16 %v478, %v477
      %v486 = vpack.c.bf16 %v482, %v481
      %487 = vst [vmem:[#allocation2 + $0xa0] sm:$0xff] %v483
      %488 = vst [vmem:[#allocation2 + $0xa8] sm:$0xff] %v484
      %489 = vst [vmem:[#allocation2 + $0xb0] sm:$0xff] %v485
      %490 = vst [vmem:[#allocation2 + $0xb8] sm:$0xff] %v486
      %491 = vrot.lane.b32.xlu0 %v308, 113
      %v492 = vpop.permute.xlu0 %491
      %493 = vrot.lane.b32.xlu0 %v310, 113
      %v494 = vpop.permute.xlu0 %493
      %495 = vrot.lane.b32.xlu0 %v312, 113
      %v496 = vpop.permute.xlu0 %495
      %497 = vrot.lane.b32.xlu0 %v314, 113
      %v498 = vpop.permute.xlu0 %497
      %499 = vrot.lane.b32.xlu0 %v309, 113
      %v500 = vpop.permute.xlu0 %499
      %501 = vrot.lane.b32.xlu0 %v311, 113
      %v502 = vpop.permute.xlu0 %501
      %503 = vrot.lane.b32.xlu0 %v313, 113
      %v504 = vpop.permute.xlu0 %503
      %505 = vrot.lane.b32.xlu0 %v315, 113
      %v506 = vpop.permute.xlu0 %505
      %vm507 = vcmp.lt.s32.totalorder %v333, 113
      %v508 = vsel %vm507, %v492, %v500
      %v509 = vsel %vm507, %v494, %v502
      %v510 = vsel %vm507, %v496, %v504
      %v511 = vsel %vm507, %v498, %v506
      %v512 = vsel %vm507, %v500, %v492
      %v513 = vsel %vm507, %v502, %v494
      %v514 = vsel %vm507, %v504, %v496
      %v515 = vsel %vm507, %v506, %v498
      %v516 = vpack.c.bf16 %v509, %v508
      %v517 = vpack.c.bf16 %v513, %v512
      %v518 = vpack.c.bf16 %v511, %v510
      %v519 = vpack.c.bf16 %v515, %v514
      %520 = vst [vmem:[#allocation2 + $0xc0] sm:$0xff] %v516
      %521 = vst [vmem:[#allocation2 + $0xc8] sm:$0xff] %v517
      %522 = vst [vmem:[#allocation2 + $0xd0] sm:$0xff] %v518
      %523 = vst [vmem:[#allocation2 + $0xd8] sm:$0xff] %v519
      %524 = vrot.lane.b32.xlu0 %v308, 112
      %v525 = vpop.permute.xlu0 %524
      %526 = vrot.lane.b32.xlu0 %v310, 112
      %v527 = vpop.permute.xlu0 %526
      %528 = vrot.lane.b32.xlu0 %v312, 112
      %v529 = vpop.permute.xlu0 %528
      %530 = vrot.lane.b32.xlu0 %v314, 112
      %v531 = vpop.permute.xlu0 %530
      %532 = vrot.lane.b32.xlu0 %v309, 112
      %v533 = vpop.permute.xlu0 %532
      %534 = vrot.lane.b32.xlu0 %v311, 112
      %v535 = vpop.permute.xlu0 %534
      %536 = vrot.lane.b32.xlu0 %v313, 112
      %v537 = vpop.permute.xlu0 %536
      %538 = vrot.lane.b32.xlu0 %v315, 112
      %v539 = vpop.permute.xlu0 %538
      %vm540 = vcmp.lt.s32.totalorder %v333, 112
      %v541 = vsel %vm540, %v525, %v533
      %v542 = vsel %vm540, %v527, %v535
      %v543 = vsel %vm540, %v529, %v537
      %v544 = vsel %vm540, %v531, %v539
      %v545 = vsel %vm540, %v533, %v525
      %v546 = vsel %vm540, %v535, %v527
      %v547 = vsel %vm540, %v537, %v529
      %v548 = vsel %vm540, %v539, %v531
      %v549 = vpack.c.bf16 %v542, %v541
      %v550 = vpack.c.bf16 %v546, %v545
      %v551 = vpack.c.bf16 %v544, %v543
      %v552 = vpack.c.bf16 %v548, %v547
      %553 = vst [vmem:[#allocation2 + $0xe0] sm:$0xff] %v549
      %554 = vst [vmem:[#allocation2 + $0xe8] sm:$0xff] %v550
      %555 = vst [vmem:[#allocation2 + $0xf0] sm:$0xff] %v551
      %556 = vst [vmem:[#allocation2 + $0xf8] sm:$0xff] %v552
      %557 = vrot.lane.b32.xlu0 %v308, 111
      %v558 = vpop.permute.xlu0 %557
      %559 = vrot.lane.b32.xlu0 %v310, 111
      %v560 = vpop.permute.xlu0 %559
      %561 = vrot.lane.b32.xlu0 %v312, 111
      %v562 = vpop.permute.xlu0 %561
      %563 = vrot.lane.b32.xlu0 %v314, 111
      %v564 = vpop.permute.xlu0 %563
      %565 = vrot.lane.b32.xlu0 %v309, 111
      %v566 = vpop.permute.xlu0 %565
      %567 = vrot.lane.b32.xlu0 %v311, 111
      %v568 = vpop.permute.xlu0 %567
      %569 = vrot.lane.b32.xlu0 %v313, 111
      %v570 = vpop.permute.xlu0 %569
      %571 = vrot.lane.b32.xlu0 %v315, 111
      %v572 = vpop.permute.xlu0 %571
      %vm573 = vcmp.lt.s32.totalorder %v333, 111
      %v574 = vsel %vm573, %v558, %v566
      %v575 = vsel %vm573, %v560, %v568
      %v576 = vsel %vm573, %v562, %v570
      %v577 = vsel %vm573, %v564, %v572
      %v578 = vsel %vm573, %v566, %v558
      %v579 = vsel %vm573, %v568, %v560
      %v580 = vsel %vm573, %v570, %v562
      %v581 = vsel %vm573, %v572, %v564
      %v582 = vpack.c.bf16 %v575, %v574
      %v583 = vpack.c.bf16 %v579, %v578
      %v584 = vpack.c.bf16 %v577, %v576
      %v585 = vpack.c.bf16 %v581, %v580
      %586 = vst [vmem:[#allocation2 + $0x100] sm:$0xff] %v582
      %587 = vst [vmem:[#allocation2 + $0x108] sm:$0xff] %v583
      %588 = vst [vmem:[#allocation2 + $0x110] sm:$0xff] %v584
      %589 = vst [vmem:[#allocation2 + $0x118] sm:$0xff] %v585
      %v590 = vld [vmem:[%s1] sm:$0xff]
      %v591 = vld [vmem:[%s1 + $0x8] sm:$0xf]
      %v592 = vld [vmem:[%s1 + $0xc] sm:$0xff]
      %v593 = vld [vmem:[%s1 + $0x14] sm:$0xf]
      %v594 = vld [vmem:[%s1 + $0x18] sm:$0xff]
      %v595 = vld [vmem:[%s1 + $0x20] sm:$0xf]
      %v596 = vld [vmem:[%s1 + $0x24] sm:$0xff]
      %v597 = vld [vmem:[%s1 + $0x2c] sm:$0xf]
      %v598 = vld [vmem:[%s1 + $0x30] sm:$0xff]
      %v599 = vld [vmem:[%s1 + $0x38] sm:$0xf]
      %v600 = vld [vmem:[%s1 + $0x3c] sm:$0xff]
      %v601 = vld [vmem:[%s1 + $0x44] sm:$0xf]
      %v602 = vld [vmem:[%s1 + $0x48] sm:$0xff]
      %v603 = vld [vmem:[%s1 + $0x50] sm:$0xf]
      %v604 = vld [vmem:[%s1 + $0x54] sm:$0xff]
      %v605 = vld [vmem:[%s1 + $0x5c] sm:$0xf]
      %v606 = vld [vmem:[%s1 + $0x60] sm:$0xff]
      %v607 = vld [vmem:[%s1 + $0x68] sm:$0xf]
      %v608 = vld [vmem:[%s1 + $0x6c] sm:$0xff]
      %v609 = vld [vmem:[%s1 + $0x74] sm:$0xf]
      %v610 = vld [vmem:[%s1 + $0x78] sm:$0xff]
      %v611 = vld [vmem:[%s1 + $0x80] sm:$0xf]
      %v612 = vld [vmem:[%s1 + $0x84] sm:$0xff]
      %v613 = vld [vmem:[%s1 + $0x8c] sm:$0xf]
      %v614 = vld [vmem:[#allocation2] sm:$0xff]
      %v615 = vld [vmem:[#allocation2 + $0x8] sm:$0xff]
      %v616 = vld [vmem:[#allocation2 + $0x10] sm:$0xff]
      %v617 = vld [vmem:[#allocation2 + $0x18] sm:$0xff]
      %v618 = vld [vmem:[#allocation2 + $0x20] sm:$0xff]
      %v619 = vld [vmem:[#allocation2 + $0x28] sm:$0xff]
      %v620 = vld [vmem:[#allocation2 + $0x30] sm:$0xff]
      %v621 = vld [vmem:[#allocation2 + $0x38] sm:$0xff]
      %v622 = vld [vmem:[#allocation2 + $0x40] sm:$0xff]
      %v623 = vld [vmem:[#allocation2 + $0x48] sm:$0xff]
      %v624 = vld [vmem:[#allocation2 + $0x50] sm:$0xff]
      %v625 = vld [vmem:[#allocation2 + $0x58] sm:$0xff]
      %v626 = vld [vmem:[#allocation2 + $0x60] sm:$0xff]
      %v627 = vld [vmem:[#allocation2 + $0x68] sm:$0xff]
      %v628 = vld [vmem:[#allocation2 + $0x70] sm:$0xff]
      %v629 = vld [vmem:[#allocation2 + $0x78] sm:$0xff]
      %v630 = vld [vmem:[#allocation2 + $0x80] sm:$0xff]
      %v631 = vld [vmem:[#allocation2 + $0x88] sm:$0xff]
      %v632 = vld [vmem:[#allocation2 + $0x90] sm:$0xff]
      %v633 = vld [vmem:[#allocation2 + $0x98] sm:$0xff]
      %v634 = vld [vmem:[#allocation2 + $0xa0] sm:$0xff]
      %v635 = vld [vmem:[#allocation2 + $0xa8] sm:$0xff]
      %v636 = vld [vmem:[#allocation2 + $0xb0] sm:$0xff]
      %v637 = vld [vmem:[#allocation2 + $0xb8] sm:$0xff]
      %v638 = vld [vmem:[#allocation2 + $0xc0] sm:$0xff]
      %v639 = vld [vmem:[#allocation2 + $0xc8] sm:$0xff]
      %v640 = vld [vmem:[#allocation2 + $0xd0] sm:$0xff]
      %v641 = vld [vmem:[#allocation2 + $0xd8] sm:$0xff]
      %v642 = vld [vmem:[#allocation2 + $0xe0] sm:$0xff]
      %v643 = vld [vmem:[#allocation2 + $0xe8] sm:$0xff]
      %v644 = vld [vmem:[#allocation2 + $0xf0] sm:$0xff]
      %v645 = vld [vmem:[#allocation2 + $0xf8] sm:$0xff]
      %v646 = vld [vmem:[#allocation2 + $0x100] sm:$0xff]
      %v647 = vld [vmem:[#allocation2 + $0x108] sm:$0xff]
      %v648 = vld [vmem:[#allocation2 + $0x110] sm:$0xff]
      %v649 = vld [vmem:[#allocation2 + $0x118] sm:$0xff]
      %v650 = vld [vmem:[%s2] sm:$0xff]
      %v651 = vld [vmem:[%s2 + $0x8] sm:$0xff]
      %v652 = vld [vmem:[%s2 + $0x10] sm:$0xff]
      %v653 = vld [vmem:[%s2 + $0x18] sm:$0xff]
      %v654 = vld [vmem:[%s2 + $0x20] sm:$0xff]
      %v655 = vld [vmem:[%s2 + $0x28] sm:$0xff]
      %v656 = vld [vmem:[%s2 + $0x30] sm:$0xff]
      %v657 = vld [vmem:[%s2 + $0x38] sm:$0xff]
      %v658 = vld [vmem:[%s2 + $0x40] sm:$0xff]
      %v659 = vld [vmem:[%s2 + $0x48] sm:$0xff]
      %v660 = vld [vmem:[%s2 + $0x50] sm:$0xff]
      %v661 = vld [vmem:[%s2 + $0x58] sm:$0xff]
      %663 = vset.pattern.permute.xlu0 0
      %664 = vperm.xlu0 %663, %v650
      %v665 = vpop.permute.xlu0 %664
      %668 = vset.pattern.permute.xlu0 0
      %669 = vperm.xlu0 %668, %v651
      %v670 = vpop.permute.xlu0 %669
      %673 = vset.pattern.permute.xlu0 0
      %674 = vperm.xlu0 %673, %v652
      %v675 = vpop.permute.xlu0 %674
      %678 = vset.pattern.permute.xlu0 0
      %679 = vperm.xlu0 %678, %v653
      %v680 = vpop.permute.xlu0 %679
      %683 = vset.pattern.permute.xlu0 0
      %684 = vperm.xlu0 %683, %v654
      %v685 = vpop.permute.xlu0 %684
      %688 = vset.pattern.permute.xlu0 0
      %689 = vperm.xlu0 %688, %v655
      %v690 = vpop.permute.xlu0 %689
      %693 = vset.pattern.permute.xlu0 0
      %694 = vperm.xlu0 %693, %v656
      %v695 = vpop.permute.xlu0 %694
      %698 = vset.pattern.permute.xlu0 0
      %699 = vperm.xlu0 %698, %v657
      %v700 = vpop.permute.xlu0 %699
      %703 = vset.pattern.permute.xlu0 0
      %704 = vperm.xlu0 %703, %v658
      %v705 = vpop.permute.xlu0 %704
      %708 = vset.pattern.permute.xlu0 0
      %709 = vperm.xlu0 %708, %v659
      %v710 = vpop.permute.xlu0 %709
      %713 = vset.pattern.permute.xlu0 0
      %714 = vperm.xlu0 %713, %v660
      %v715 = vpop.permute.xlu0 %714
      %718 = vset.pattern.permute.xlu0 0
      %719 = vperm.xlu0 %718, %v661
      %v720 = vpop.permute.xlu0 %719
      %v746 = vunpack.c.l.b16 %v590
      %v747 = vunpack.c.h.b16 %v590
      %v748 = vunpack.c.l.b16 %v591
      %v749 = vunpack.c.l.b16 %v592
      %v750 = vunpack.c.h.b16 %v592
      %v751 = vunpack.c.l.b16 %v593
      %v752 = vunpack.c.l.b16 %v594
      %v753 = vunpack.c.h.b16 %v594
      %v754 = vunpack.c.l.b16 %v595
      %v755 = vunpack.c.l.b16 %v596
      %v756 = vunpack.c.h.b16 %v596
      %v757 = vunpack.c.l.b16 %v597
      %v758 = vunpack.c.l.b16 %v598
      %v759 = vunpack.c.h.b16 %v598
      %v760 = vunpack.c.l.b16 %v599
      %v761 = vunpack.c.l.b16 %v600
      %v762 = vunpack.c.h.b16 %v600
      %v763 = vunpack.c.l.b16 %v601
      %v764 = vunpack.c.l.b16 %v602
      %v765 = vunpack.c.h.b16 %v602
      %v766 = vunpack.c.l.b16 %v603
      %v767 = vunpack.c.l.b16 %v604
      %v768 = vunpack.c.h.b16 %v604
      %v769 = vunpack.c.l.b16 %v605
      %v770 = vunpack.c.l.b16 %v606
      %v771 = vunpack.c.h.b16 %v606
      %v772 = vunpack.c.l.b16 %v607
      %v773 = vunpack.c.l.b16 %v608
      %v774 = vunpack.c.h.b16 %v608
      %v775 = vunpack.c.l.b16 %v609
      %v776 = vunpack.c.l.b16 %v610
      %v777 = vunpack.c.h.b16 %v610
      %v778 = vunpack.c.l.b16 %v611
      %v779 = vunpack.c.l.b16 %v612
      %v780 = vunpack.c.h.b16 %v612
      %v781 = vunpack.c.l.b16 %v613
      %v782 = vpack.c.b16 %v749, %v746
      %v783 = vpack.c.b16 %v750, %v747
      %v784 = vpack.c.b16 %v751, %v748
      %v785 = vpack.c.b16 %v755, %v752
      %v786 = vpack.c.b16 %v756, %v753
      %v787 = vpack.c.b16 %v757, %v754
      %v788 = vpack.c.b16 %v761, %v758
      %v789 = vpack.c.b16 %v762, %v759
      %v790 = vpack.c.b16 %v763, %v760
      %v791 = vpack.c.b16 %v767, %v764
      %v792 = vpack.c.b16 %v768, %v765
      %v793 = vpack.c.b16 %v769, %v766
      %v794 = vpack.c.b16 %v773, %v770
      %v795 = vpack.c.b16 %v774, %v771
      %v796 = vpack.c.b16 %v775, %v772
      %v797 = vpack.c.b16 %v779, %v776
      %v798 = vpack.c.b16 %v780, %v777
      %v799 = vpack.c.b16 %v781, %v778
      %vm812 = vcmask 261120
      %v814 = vsel %vm812, %v784, 0
      %v817 = vsel %vm812, %v787, 0
      %v820 = vsel %vm812, %v790, 0
      %v823 = vsel %vm812, %v793, 0
      %v826 = vsel %vm812, %v796, 0
      %v829 = vsel %vm812, %v799, 0
      %831 = vmatprep.subr.bf16.mxu0 %v615
      %832 = vmatpush1.bf16.msra.mxu0 %v614
      %833 = vmatprep.subr.bf16.mxu0 %v617
      %834 = vmatpush1.bf16.msra.mxu0 %v616
      %835 = vmatprep.subr.bf16.mxu0 %v619
      %836 = vmatpush1.bf16.msra.mxu0 %v618
      %837 = vmatprep.subr.bf16.mxu0 %v621
      %838 = vmatpush1.bf16.msra.mxu0 %v620
      %839 = vmatprep.subr.bf16.mxu0 %v623
      %840 = vmatpush1.bf16.msra.mxu0 %v622
      %841 = vmatprep.subr.bf16.mxu0 %v625
      %842 = vmatpush1.bf16.msra.mxu0 %v624
      %843 = vmatprep.subr.bf16.mxu0 %v627
      %844 = vmatpush1.bf16.msra.mxu0 %v626
      %845 = vmatprep.subr.bf16.mxu0 %v629
      %846 = vmatpush1.bf16.msra.mxu0 %v628
      %847 = vmatprep.subr.bf16.mxu0 %v631
      %848 = vmatpush1.bf16.msra.mxu0 %v630
      %849 = vmatprep.subr.bf16.mxu0 %v633
      %850 = vmatpush1.bf16.msra.mxu0 %v632
      %851 = vmatprep.subr.bf16.mxu0 %v635
      %852 = vmatpush1.bf16.msra.mxu0 %v634
      %853 = vmatprep.subr.bf16.mxu0 %v637
      %854 = vmatpush1.bf16.msra.mxu0 %v636
      %855 = vmatprep.subr.bf16.mxu0 %v639
      %856 = vmatpush1.bf16.msra.mxu0 %v638
      %857 = vmatprep.subr.bf16.mxu0 %v641
      %858 = vmatpush1.bf16.msra.mxu0 %v640
      %859 = vmatprep.subr.bf16.mxu0 %v643
      %860 = vmatpush1.bf16.msra.mxu0 %v642
      %861 = vmatprep.subr.bf16.mxu0 %v645
      %862 = vmatpush1.bf16.msra.mxu0 %v644
      %863 = vmatprep.mubr.bf16.mxu0 %v783
      %864 = vmatmul.mubr.bf16.gmra.mrb[0].mxu0 %v782
      %v865 = vpop.f32.mrb[0].mxu0
      %v866 = vadd.f32 %v665, %v865
      %v867 = vpop.f32.mrb[0].mxu0
      %v868 = vadd.f32 %v665, %v867
      %v869 = vpop.f32.mrb[0].mxu0
      %v870 = vadd.f32 %v670, %v869
      %v871 = vpop.f32.mrb[0].mxu0
      %v872 = vadd.f32 %v670, %v871
      %873 = vmatprep.mubr.bf16.mxu0 %v786
      %874 = vmatmul.mubr.bf16.gmra.mrb[0].mxu0 %v785
      %v875 = vpop.f32.mrb[0].mxu0
      %v876 = vadd.f32 %v675, %v875
      %v877 = vpop.f32.mrb[0].mxu0
      %v878 = vadd.f32 %v675, %v877
      %v879 = vpop.f32.mrb[0].mxu0
      %v880 = vadd.f32 %v680, %v879
      %v881 = vpop.f32.mrb[0].mxu0
      %v882 = vadd.f32 %v680, %v881
      %883 = vmatprep.mubr.bf16.mxu0 %v789
      %884 = vmatmul.mubr.bf16.gmra.mrb[0].mxu0 %v788
      %v885 = vpop.f32.mrb[0].mxu0
      %v886 = vadd.f32 %v685, %v885
      %v887 = vpop.f32.mrb[0].mxu0
      %v888 = vadd.f32 %v685, %v887
      %v889 = vpop.f32.mrb[0].mxu0
      %v890 = vadd.f32 %v690, %v889
      %v891 = vpop.f32.mrb[0].mxu0
      %v892 = vadd.f32 %v690, %v891
      %893 = vmatprep.mubr.bf16.mxu0 %v792
      %894 = vmatmul.mubr.bf16.gmra.mrb[0].mxu0 %v791
      %v895 = vpop.f32.mrb[0].mxu0
      %v896 = vadd.f32 %v695, %v895
      %v897 = vpop.f32.mrb[0].mxu0
      %v898 = vadd.f32 %v695, %v897
      %v899 = vpop.f32.mrb[0].mxu0
      %v900 = vadd.f32 %v700, %v899
      %v901 = vpop.f32.mrb[0].mxu0
      %v902 = vadd.f32 %v700, %v901
      %903 = vmatprep.mubr.bf16.mxu0 %v795
      %904 = vmatmul.mubr.bf16.gmra.mrb[0].mxu0 %v794
      %v905 = vpop.f32.mrb[0].mxu0
      %v906 = vadd.f32 %v705, %v905
      %v907 = vpop.f32.mrb[0].mxu0
      %v908 = vadd.f32 %v705, %v907
      %v909 = vpop.f32.mrb[0].mxu0
      %v910 = vadd.f32 %v710, %v909
      %v911 = vpop.f32.mrb[0].mxu0
      %v912 = vadd.f32 %v710, %v911
      %913 = vmatprep.mubr.bf16.mxu0 %v798
      %914 = vmatmul.mubr.bf16.gmra.mrb[0].mxu0 %v797
      %v915 = vpop.f32.mrb[0].mxu0
      %v916 = vadd.f32 %v715, %v915
      %v917 = vpop.f32.mrb[0].mxu0
      %v918 = vadd.f32 %v715, %v917
      %v919 = vpop.f32.mrb[0].mxu0
      %v920 = vadd.f32 %v720, %v919
      %v921 = vpop.f32.mrb[0].mxu0
      %v922 = vadd.f32 %v720, %v921
      %923 = vdwg.mxu0
      %924 = vmatprep.subr.bf16.mxu0 %v647
      %925 = vmatpush1.bf16.msra.mxu0 %v646
      %926 = vmatprep.subr.bf16.mxu0 %v649
      %927 = vmatpush1.bf16.msra.mxu0 %v648
      %928 = vmatprep.subr.bf16.mxu0 0
      %929 = vmatpush1.bf16.msra.mxu0 0
      %930 = vmatprep.subr.bf16.mxu0 0
      %931 = vmatpush1.bf16.msra.mxu0 0
      %932 = vmatprep.subr.bf16.mxu0 0
      %933 = vmatpush1.bf16.msra.mxu0 0
      %934 = vmatprep.subr.bf16.mxu0 0
      %935 = vmatpush1.bf16.msra.mxu0 0
      %936 = vmatprep.subr.bf16.mxu0 0
      %937 = vmatpush1.bf16.msra.mxu0 0
      %938 = vmatprep.subr.bf16.mxu0 0
      %939 = vmatpush1.bf16.msra.mxu0 0
      %940 = vmatprep.subr.bf16.mxu0 0
      %941 = vmatpush1.bf16.msra.mxu0 0
      %942 = vmatprep.subr.bf16.mxu0 0
      %943 = vmatpush1.bf16.msra.mxu0 0
      %944 = vmatprep.subr.bf16.mxu0 0
      %945 = vmatpush1.bf16.msra.mxu0 0
      %946 = vmatprep.subr.bf16.mxu0 0
      %947 = vmatpush1.bf16.msra.mxu0 0
      %948 = vmatprep.subr.bf16.mxu0 0
      %949 = vmatpush1.bf16.msra.mxu0 0
      %950 = vmatprep.subr.bf16.mxu0 0
      %951 = vmatpush1.bf16.msra.mxu0 0
      %952 = vmatprep.subr.bf16.mxu0 0
      %953 = vmatpush1.bf16.msra.mxu0 0
      %954 = vmatprep.subr.bf16.mxu0 0
      %955 = vmatpush1.bf16.msra.mxu0 0
      %956 = vmatprep.mubr.bf16.mxu0 0
      %957 = vmatmul.mubr.bf16.gmra.mrb[0].mxu0 %v814
      %v958 = vpop.f32.mrb[0].mxu0
      %v959 = vadd.f32 %v866, %v958
      %v960 = vpop.f32.mrb[0].mxu0
      %v961 = vadd.f32 %v868, %v960
      %v962 = vpop.f32.mrb[0].mxu0
      %v963 = vadd.f32 %v870, %v962
      %v964 = vpop.f32.mrb[0].mxu0
      %v965 = vadd.f32 %v872, %v964
      %966 = vmatprep.mubr.bf16.mxu0 0
      %967 = vmatmul.mubr.bf16.gmra.mrb[0].mxu0 %v817
      %v968 = vpop.f32.mrb[0].mxu0
      %v969 = vadd.f32 %v876, %v968
      %v970 = vpop.f32.mrb[0].mxu0
      %v971 = vadd.f32 %v878, %v970
      %v972 = vpop.f32.mrb[0].mxu0
      %v973 = vadd.f32 %v880, %v972
      %v974 = vpop.f32.mrb[0].mxu0
      %v975 = vadd.f32 %v882, %v974
      %976 = vmatprep.mubr.bf16.mxu0 0
      %977 = vmatmul.mubr.bf16.gmra.mrb[0].mxu0 %v820
      %v978 = vpop.f32.mrb[0].mxu0
      %v979 = vadd.f32 %v886, %v978
      %v980 = vpop.f32.mrb[0].mxu0
      %v981 = vadd.f32 %v888, %v980
      %v982 = vpop.f32.mrb[0].mxu0
      %v983 = vadd.f32 %v890, %v982
      %v984 = vpop.f32.mrb[0].mxu0
      %v985 = vadd.f32 %v892, %v984
      %986 = vmatprep.mubr.bf16.mxu0 0
      %987 = vmatmul.mubr.bf16.gmra.mrb[0].mxu0 %v823
      %v988 = vpop.f32.mrb[0].mxu0
      %v989 = vadd.f32 %v896, %v988
      %v990 = vpop.f32.mrb[0].mxu0
      %v991 = vadd.f32 %v898, %v990
      %v992 = vpop.f32.mrb[0].mxu0
      %v993 = vadd.f32 %v900, %v992
      %v994 = vpop.f32.mrb[0].mxu0
      %v995 = vadd.f32 %v902, %v994
      %996 = vmatprep.mubr.bf16.mxu0 0
      %997 = vmatmul.mubr.bf16.gmra.mrb[0].mxu0 %v826
      %v998 = vpop.f32.mrb[0].mxu0
      %v999 = vadd.f32 %v906, %v998
      %v1000 = vpop.f32.mrb[0].mxu0
      %v1001 = vadd.f32 %v908, %v1000
      %v1002 = vpop.f32.mrb[0].mxu0
      %v1003 = vadd.f32 %v910, %v1002
      %v1004 = vpop.f32.mrb[0].mxu0
      %v1005 = vadd.f32 %v912, %v1004
      %1006 = vmatprep.mubr.bf16.mxu0 0
      %1007 = vmatmul.mubr.bf16.gmra.mrb[0].mxu0 %v829
      %v1008 = vpop.f32.mrb[0].mxu0
      %v1009 = vadd.f32 %v916, %v1008
      %v1010 = vpop.f32.mrb[0].mxu0
      %v1011 = vadd.f32 %v918, %v1010
      %v1012 = vpop.f32.mrb[0].mxu0
      %v1013 = vadd.f32 %v920, %v1012
      %v1014 = vpop.f32.mrb[0].mxu0
      %v1015 = vadd.f32 %v922, %v1014
      %1016 = vdwg.mxu0
      %v1018 = vlaneseq
      %v1019 = vshrl.u32 %v1018, 7
      %v1020 = vsub.s32 0, %v1019
      %v1021 = vrot.slane %v307, %v1020
      %v1022 = vlaneseq
      %v1023 = vshrl.u32 %v1022, 7
      %v1024 = vsub.s32 1, %v1023
      %v1025 = vrot.slane %v307, %v1024
      %v1028 = vmul.f32 %v959, %v1021
      %v1029 = vmul.f32 %v961, %v1025
      %v1030 = vmul.f32 %v963, %v1021
      %v1031 = vmul.f32 %v965, %v1025
      %v1032 = vmul.f32 %v969, %v1021
      %v1033 = vmul.f32 %v971, %v1025
      %v1034 = vmul.f32 %v973, %v1021
      %v1035 = vmul.f32 %v975, %v1025
      %v1036 = vmul.f32 %v979, %v1021
      %v1037 = vmul.f32 %v981, %v1025
      %v1038 = vmul.f32 %v983, %v1021
      %v1039 = vmul.f32 %v985, %v1025
      %v1040 = vmul.f32 %v989, %v1021
      %v1041 = vmul.f32 %v991, %v1025
      %v1042 = vmul.f32 %v993, %v1021
      %v1043 = vmul.f32 %v995, %v1025
      %v1044 = vmul.f32 %v999, %v1021
      %v1045 = vmul.f32 %v1001, %v1025
      %v1046 = vmul.f32 %v1003, %v1021
      %v1047 = vmul.f32 %v1005, %v1025
      %v1048 = vmul.f32 %v1009, %v1021
      %v1049 = vmul.f32 %v1011, %v1025
      %v1050 = vmul.f32 %v1013, %v1021
      %v1051 = vmul.f32 %v1015, %v1025
      %v1052 = vadd.f32 %v1028, %v1029
      %v1053 = vadd.f32 %v1052, %v1030
      %v1054 = vadd.f32 %v1053, %v1031
      %v1055 = vadd.f32 %v1054, %v1032
      %v1056 = vadd.f32 %v1055, %v1033
      %v1057 = vadd.f32 %v1056, %v1034
      %v1058 = vadd.f32 %v1057, %v1035
      %1059 = vadd.xlane.f32.xlu0 %v1058
      %v1060 = vpop.xlane.xlu0 %1059
      %v1061 = vrot.slane %v1060, 4
      %v1062 = vadd.f32 %v1060, %v1061
      %v1063 = vrot.slane %v1062, 2
      %v1064 = vadd.f32 %v1062, %v1063
      %v1065 = vrot.slane %v1064, 1
      %v1066 = vadd.f32 %v1064, %v1065
      %s1067 = vtos %v1066
      %v1068 = vmul.f32 %v1028, %v1028
      %v1069 = vmul.f32 %v1029, %v1029
      %v1070 = vmul.f32 %v1030, %v1030
      %v1071 = vmul.f32 %v1031, %v1031
      %v1072 = vmul.f32 %v1032, %v1032
      %v1073 = vmul.f32 %v1033, %v1033
      %v1074 = vmul.f32 %v1034, %v1034
      %v1075 = vmul.f32 %v1035, %v1035
      %v1076 = vadd.f32 %v1068, %v1069
      %v1077 = vadd.f32 %v1076, %v1070
      %v1078 = vadd.f32 %v1077, %v1071
      %v1079 = vadd.f32 %v1078, %v1072
      %v1080 = vadd.f32 %v1079, %v1073
      %v1081 = vadd.f32 %v1080, %v1074
      %v1082 = vadd.f32 %v1081, %v1075
      %1083 = vadd.xlane.f32.xlu0 %v1082
      %v1084 = vpop.xlane.xlu0 %1083
      %v1085 = vrot.slane %v1084, 4
      %v1086 = vadd.f32 %v1084, %v1085
      %v1087 = vrot.slane %v1086, 2
      %v1088 = vadd.f32 %v1086, %v1087
      %v1089 = vrot.slane %v1088, 1
      %v1090 = vadd.f32 %v1088, %v1089
      %s1091 = vtos %v1090
      %s1092 = smul.f32 %s1067, 0.00015943877
      %s1093 = smul.f32 %s1091, 0.00015943877
      %s1094 = smul.f32 %s1092, %s1092
      %s1095 = ssub.f32 %s1093, %s1094
      %s1096 = sadd.f32 %s1095, 1e-05
      %v1097 = vstv %s1096
      %v1098 = vrsqrt.pop %v1097
      %s1099 = vtos %v1098
      %v1100 = vstv %s1092
      %v1101 = vsub.f32 %v1028, %v1100
      %v1102 = vsub.f32 %v1029, %v1100
      %v1103 = vsub.f32 %v1030, %v1100
      %v1104 = vsub.f32 %v1031, %v1100
      %v1105 = vsub.f32 %v1032, %v1100
      %v1106 = vsub.f32 %v1033, %v1100
      %v1107 = vsub.f32 %v1034, %v1100
      %v1108 = vsub.f32 %v1035, %v1100
      %v1109 = vstv %s1099
      %v1110 = vmul.f32 %v1101, %v1109
      %v1111 = vmul.f32 %v1102, %v1109
      %v1112 = vmul.f32 %v1103, %v1109
      %v1113 = vmul.f32 %v1104, %v1109
      %v1114 = vmul.f32 %v1105, %v1109
      %v1115 = vmul.f32 %v1106, %v1109
      %v1116 = vmul.f32 %v1107, %v1109
      %v1117 = vmul.f32 %v1108, %v1109
      %v1118 = vld [vmem:[%s3] sm:$0xff]
      %v1119 = vld [vmem:[%s3 + $0x8] sm:$0xff]
      %v1120 = vld [vmem:[%s3 + $0x10] sm:$0xff]
      %v1121 = vld [vmem:[%s3 + $0x18] sm:$0xff]
      %v1122 = vld [vmem:[%s3 + $0x20] sm:$0xff]
      %v1123 = vld [vmem:[%s3 + $0x28] sm:$0xff]
      %v1124 = vld [vmem:[%s3 + $0x30] sm:$0xff]
      %v1125 = vld [vmem:[%s3 + $0x38] sm:$0xff]
      %v1126 = vmul.f32 %v1110, %v1118
      %v1127 = vmul.f32 %v1111, %v1119
      %v1128 = vmul.f32 %v1112, %v1120
      %v1129 = vmul.f32 %v1113, %v1121
      %v1130 = vmul.f32 %v1114, %v1122
      %v1131 = vmul.f32 %v1115, %v1123
      %v1132 = vmul.f32 %v1116, %v1124
      %v1133 = vmul.f32 %v1117, %v1125
      %v1134 = vld [vmem:[%s4] sm:$0xff]
      %v1135 = vld [vmem:[%s4 + $0x8] sm:$0xff]
      %v1136 = vld [vmem:[%s4 + $0x10] sm:$0xff]
      %v1137 = vld [vmem:[%s4 + $0x18] sm:$0xff]
      %v1138 = vld [vmem:[%s4 + $0x20] sm:$0xff]
      %v1139 = vld [vmem:[%s4 + $0x28] sm:$0xff]
      %v1140 = vld [vmem:[%s4 + $0x30] sm:$0xff]
      %v1141 = vld [vmem:[%s4 + $0x38] sm:$0xff]
      %v1142 = vadd.f32 %v1126, %v1134
      %v1143 = vadd.f32 %v1127, %v1135
      %v1144 = vadd.f32 %v1128, %v1136
      %v1145 = vadd.f32 %v1129, %v1137
      %v1146 = vadd.f32 %v1130, %v1138
      %v1147 = vadd.f32 %v1131, %v1139
      %v1148 = vadd.f32 %v1132, %v1140
      %v1149 = vadd.f32 %v1133, %v1141
      %v1150 = vmax.f32 %v1142, 0.0
      %v1151 = vmax.f32 %v1143, 0.0
      %v1152 = vmax.f32 %v1144, 0.0
      %v1153 = vmax.f32 %v1145, 0.0
      %v1154 = vmax.f32 %v1146, 0.0
      %v1155 = vmax.f32 %v1147, 0.0
      %v1156 = vmax.f32 %v1148, 0.0
      %v1157 = vmax.f32 %v1149, 0.0
      %1158 = vrot.lane.b32.xlu0 %v1150, 17
      %v1159 = vpop.permute.xlu0 %1158
      %1160 = vrot.lane.b32.xlu0 %v1152, 17
      %v1161 = vpop.permute.xlu0 %1160
      %1162 = vrot.lane.b32.xlu0 %v1154, 17
      %v1163 = vpop.permute.xlu0 %1162
      %1164 = vrot.lane.b32.xlu0 %v1156, 17
      %v1165 = vpop.permute.xlu0 %1164
      %1166 = vrot.lane.b32.xlu0 %v1151, 17
      %v1167 = vpop.permute.xlu0 %1166
      %1168 = vrot.lane.b32.xlu0 %v1153, 17
      %v1169 = vpop.permute.xlu0 %1168
      %1170 = vrot.lane.b32.xlu0 %v1155, 17
      %v1171 = vpop.permute.xlu0 %1170
      %1172 = vrot.lane.b32.xlu0 %v1157, 17
      %v1173 = vpop.permute.xlu0 %1172
      %v1174 = vsel %vm334, %v1159, %v1167
      %v1175 = vsel %vm334, %v1161, %v1169
      %v1176 = vsel %vm334, %v1163, %v1171
      %v1177 = vsel %vm334, %v1165, %v1173
      %v1178 = vsel %vm334, %v1167, %v1159
      %v1179 = vsel %vm334, %v1169, %v1161
      %v1180 = vsel %vm334, %v1171, %v1163
      %v1181 = vsel %vm334, %v1173, %v1165
      %v1182 = vpack.c.bf16 %v1179, %v1178
      %v1183 = vpack.c.bf16 %v1175, %v1174
      %v1184 = vpack.c.bf16 %v1181, %v1180
      %v1185 = vpack.c.bf16 %v1177, %v1176
      %1186 = vst [vmem:[#allocation3] sm:$0xff] %v1182
      %1187 = vst [vmem:[#allocation3 + $0x8] sm:$0xff] %v1183
      %1188 = vst [vmem:[#allocation3 + $0x10] sm:$0xff] %v1184
      %1189 = vst [vmem:[#allocation3 + $0x18] sm:$0xff] %v1185
      %1190 = vrot.lane.b32.xlu0 %v1150, 16
      %v1191 = vpop.permute.xlu0 %1190
      %1192 = vrot.lane.b32.xlu0 %v1152, 16
      %v1193 = vpop.permute.xlu0 %1192
      %1194 = vrot.lane.b32.xlu0 %v1154, 16
      %v1195 = vpop.permute.xlu0 %1194
      %1196 = vrot.lane.b32.xlu0 %v1156, 16
      %v1197 = vpop.permute.xlu0 %1196
      %1198 = vrot.lane.b32.xlu0 %v1151, 16
      %v1199 = vpop.permute.xlu0 %1198
      %1200 = vrot.lane.b32.xlu0 %v1153, 16
      %v1201 = vpop.permute.xlu0 %1200
      %1202 = vrot.lane.b32.xlu0 %v1155, 16
      %v1203 = vpop.permute.xlu0 %1202
      %1204 = vrot.lane.b32.xlu0 %v1157, 16
      %v1205 = vpop.permute.xlu0 %1204
      %v1206 = vsel %vm367, %v1191, %v1199
      %v1207 = vsel %vm367, %v1193, %v1201
      %v1208 = vsel %vm367, %v1195, %v1203
      %v1209 = vsel %vm367, %v1197, %v1205
      %v1210 = vsel %vm367, %v1199, %v1191
      %v1211 = vsel %vm367, %v1201, %v1193
      %v1212 = vsel %vm367, %v1203, %v1195
      %v1213 = vsel %vm367, %v1205, %v1197
      %v1214 = vpack.c.bf16 %v1211, %v1210
      %v1215 = vpack.c.bf16 %v1207, %v1206
      %v1216 = vpack.c.bf16 %v1213, %v1212
      %v1217 = vpack.c.bf16 %v1209, %v1208
      %1218 = vst [vmem:[#allocation3 + $0x60] sm:$0xff] %v1214
      %1219 = vst [vmem:[#allocation3 + $0x68] sm:$0xff] %v1215
      %1220 = vst [vmem:[#allocation3 + $0x70] sm:$0xff] %v1216
      %1221 = vst [vmem:[#allocation3 + $0x78] sm:$0xff] %v1217
      %1222 = vrot.lane.b32.xlu0 %v1150, 15
      %v1223 = vpop.permute.xlu0 %1222
      %1224 = vrot.lane.b32.xlu0 %v1152, 15
      %v1225 = vpop.permute.xlu0 %1224
      %1226 = vrot.lane.b32.xlu0 %v1154, 15
      %v1227 = vpop.permute.xlu0 %1226
      %1228 = vrot.lane.b32.xlu0 %v1156, 15
      %v1229 = vpop.permute.xlu0 %1228
      %1230 = vrot.lane.b32.xlu0 %v1151, 15
      %v1231 = vpop.permute.xlu0 %1230
      %1232 = vrot.lane.b32.xlu0 %v1153, 15
      %v1233 = vpop.permute.xlu0 %1232
      %1234 = vrot.lane.b32.xlu0 %v1155, 15
      %v1235 = vpop.permute.xlu0 %1234
      %1236 = vrot.lane.b32.xlu0 %v1157, 15
      %v1237 = vpop.permute.xlu0 %1236
      %v1238 = vsel %vm400, %v1223, %v1231
      %v1239 = vsel %vm400, %v1225, %v1233
      %v1240 = vsel %vm400, %v1227, %v1235
      %v1241 = vsel %vm400, %v1229, %v1237
      %v1242 = vsel %vm400, %v1231, %v1223
      %v1243 = vsel %vm400, %v1233, %v1225
      %v1244 = vsel %vm400, %v1235, %v1227
      %v1245 = vsel %vm400, %v1237, %v1229
      %v1246 = vpack.c.bf16 %v1243, %v1242
      %v1247 = vpack.c.bf16 %v1239, %v1238
      %v1248 = vpack.c.bf16 %v1245, %v1244
      %v1249 = vpack.c.bf16 %v1241, %v1240
      %1250 = vst [vmem:[#allocation3 + $0xc0] sm:$0xff] %v1246
      %1251 = vst [vmem:[#allocation3 + $0xc8] sm:$0xff] %v1247
      %1252 = vst [vmem:[#allocation3 + $0xd0] sm:$0xff] %v1248
      %1253 = vst [vmem:[#allocation3 + $0xd8] sm:$0xff] %v1249
      %1254 = vrot.lane.b32.xlu0 %v1150, 1
      %v1255 = vpop.permute.xlu0 %1254
      %1256 = vrot.lane.b32.xlu0 %v1152, 1
      %v1257 = vpop.permute.xlu0 %1256
      %1258 = vrot.lane.b32.xlu0 %v1154, 1
      %v1259 = vpop.permute.xlu0 %1258
      %1260 = vrot.lane.b32.xlu0 %v1156, 1
      %v1261 = vpop.permute.xlu0 %1260
      %1262 = vrot.lane.b32.xlu0 %v1151, 1
      %v1263 = vpop.permute.xlu0 %1262
      %1264 = vrot.lane.b32.xlu0 %v1153, 1
      %v1265 = vpop.permute.xlu0 %1264
      %1266 = vrot.lane.b32.xlu0 %v1155, 1
      %v1267 = vpop.permute.xlu0 %1266
      %1268 = vrot.lane.b32.xlu0 %v1157, 1
      %v1269 = vpop.permute.xlu0 %1268
      %v1270 = vsel %vm433, %v1255, %v1263
      %v1271 = vsel %vm433, %v1257, %v1265
      %v1272 = vsel %vm433, %v1259, %v1267
      %v1273 = vsel %vm433, %v1261, %v1269
      %v1274 = vsel %vm433, %v1263, %v1255
      %v1275 = vsel %vm433, %v1265, %v1257
      %v1276 = vsel %vm433, %v1267, %v1259
      %v1277 = vsel %vm433, %v1269, %v1261
      %v1278 = vpack.c.bf16 %v1275, %v1274
      %v1279 = vpack.c.bf16 %v1271, %v1270
      %v1280 = vpack.c.bf16 %v1277, %v1276
      %v1281 = vpack.c.bf16 %v1273, %v1272
      %1282 = vst [vmem:[#allocation3 + $0x120] sm:$0xff] %v1278
      %1283 = vst [vmem:[#allocation3 + $0x128] sm:$0xff] %v1279
      %1284 = vst [vmem:[#allocation3 + $0x130] sm:$0xff] %v1280
      %1285 = vst [vmem:[#allocation3 + $0x138] sm:$0xff] %v1281
      %v1286 = vpack.c.bf16 %v1152, %v1150
      %v1287 = vpack.c.bf16 %v1153, %v1151
      %v1288 = vpack.c.bf16 %v1156, %v1154
      %v1289 = vpack.c.bf16 %v1157, %v1155
      %1290 = vst [vmem:[#allocation3 + $0x180] sm:$0xff] %v1286
      %1291 = vst [vmem:[#allocation3 + $0x188] sm:$0xff] %v1287
      %1292 = vst [vmem:[#allocation3 + $0x190] sm:$0xff] %v1288
      %1293 = vst [vmem:[#allocation3 + $0x198] sm:$0xff] %v1289
      %1294 = vrot.lane.b32.xlu0 %v1150, 127
      %v1295 = vpop.permute.xlu0 %1294
      %1296 = vrot.lane.b32.xlu0 %v1152, 127
      %v1297 = vpop.permute.xlu0 %1296
      %1298 = vrot.lane.b32.xlu0 %v1154, 127
      %v1299 = vpop.permute.xlu0 %1298
      %1300 = vrot.lane.b32.xlu0 %v1156, 127
      %v1301 = vpop.permute.xlu0 %1300
      %1302 = vrot.lane.b32.xlu0 %v1151, 127
      %v1303 = vpop.permute.xlu0 %1302
      %1304 = vrot.lane.b32.xlu0 %v1153, 127
      %v1305 = vpop.permute.xlu0 %1304
      %1306 = vrot.lane.b32.xlu0 %v1155, 127
      %v1307 = vpop.permute.xlu0 %1306
      %1308 = vrot.lane.b32.xlu0 %v1157, 127
      %v1309 = vpop.permute.xlu0 %1308
      %v1310 = vsel %vm474, %v1295, %v1303
      %v1311 = vsel %vm474, %v1297, %v1305
      %v1312 = vsel %vm474, %v1299, %v1307
      %v1313 = vsel %vm474, %v1301, %v1309
      %v1314 = vsel %vm474, %v1303, %v1295
      %v1315 = vsel %vm474, %v1305, %v1297
      %v1316 = vsel %vm474, %v1307, %v1299
      %v1317 = vsel %vm474, %v1309, %v1301
      %v1318 = vpack.c.bf16 %v1311, %v1310
      %v1319 = vpack.c.bf16 %v1315, %v1314
      %v1320 = vpack.c.bf16 %v1313, %v1312
      %v1321 = vpack.c.bf16 %v1317, %v1316
      %1322 = vst [vmem:[#allocation3 + $0x1e0] sm:$0xff] %v1318
      %1323 = vst [vmem:[#allocation3 + $0x1e8] sm:$0xff] %v1319
      %1324 = vst [vmem:[#allocation3 + $0x1f0] sm:$0xff] %v1320
      %1325 = vst [vmem:[#allocation3 + $0x1f8] sm:$0xff] %v1321
      %1326 = vrot.lane.b32.xlu0 %v1150, 113
      %v1327 = vpop.permute.xlu0 %1326
      %1328 = vrot.lane.b32.xlu0 %v1152, 113
      %v1329 = vpop.permute.xlu0 %1328
      %1330 = vrot.lane.b32.xlu0 %v1154, 113
      %v1331 = vpop.permute.xlu0 %1330
      %1332 = vrot.lane.b32.xlu0 %v1156, 113
      %v1333 = vpop.permute.xlu0 %1332
      %1334 = vrot.lane.b32.xlu0 %v1151, 113
      %v1335 = vpop.permute.xlu0 %1334
      %1336 = vrot.lane.b32.xlu0 %v1153, 113
      %v1337 = vpop.permute.xlu0 %1336
      %1338 = vrot.lane.b32.xlu0 %v1155, 113
      %v1339 = vpop.permute.xlu0 %1338
      %1340 = vrot.lane.b32.xlu0 %v1157, 113
      %v1341 = vpop.permute.xlu0 %1340
      %v1342 = vsel %vm507, %v1327, %v1335
      %v1343 = vsel %vm507, %v1329, %v1337
      %v1344 = vsel %vm507, %v1331, %v1339
      %v1345 = vsel %vm507, %v1333, %v1341
      %v1346 = vsel %vm507, %v1335, %v1327
      %v1347 = vsel %vm507, %v1337, %v1329
      %v1348 = vsel %vm507, %v1339, %v1331
      %v1349 = vsel %vm507, %v1341, %v1333
      %v1350 = vpack.c.bf16 %v1343, %v1342
      %v1351 = vpack.c.bf16 %v1347, %v1346
      %v1352 = vpack.c.bf16 %v1345, %v1344
      %v1353 = vpack.c.bf16 %v1349, %v1348
      %1354 = vst [vmem:[#allocation3 + $0x240] sm:$0xff] %v1350
      %1355 = vst [vmem:[#allocation3 + $0x248] sm:$0xff] %v1351
      %1356 = vst [vmem:[#allocation3 + $0x250] sm:$0xff] %v1352
      %1357 = vst [vmem:[#allocation3 + $0x258] sm:$0xff] %v1353
      %1358 = vrot.lane.b32.xlu0 %v1150, 112
      %v1359 = vpop.permute.xlu0 %1358
      %1360 = vrot.lane.b32.xlu0 %v1152, 112
      %v1361 = vpop.permute.xlu0 %1360
      %1362 = vrot.lane.b32.xlu0 %v1154, 112
      %v1363 = vpop.permute.xlu0 %1362
      %1364 = vrot.lane.b32.xlu0 %v1156, 112
      %v1365 = vpop.permute.xlu0 %1364
      %1366 = vrot.lane.b32.xlu0 %v1151, 112
      %v1367 = vpop.permute.xlu0 %1366
      %1368 = vrot.lane.b32.xlu0 %v1153, 112
      %v1369 = vpop.permute.xlu0 %1368
      %1370 = vrot.lane.b32.xlu0 %v1155, 112
      %v1371 = vpop.permute.xlu0 %1370
      %1372 = vrot.lane.b32.xlu0 %v1157, 112
      %v1373 = vpop.permute.xlu0 %1372
      %v1374 = vsel %vm540, %v1359, %v1367
      %v1375 = vsel %vm540, %v1361, %v1369
      %v1376 = vsel %vm540, %v1363, %v1371
      %v1377 = vsel %vm540, %v1365, %v1373
      %v1378 = vsel %vm540, %v1367, %v1359
      %v1379 = vsel %vm540, %v1369, %v1361
      %v1380 = vsel %vm540, %v1371, %v1363
      %v1381 = vsel %vm540, %v1373, %v1365
      %v1382 = vpack.c.bf16 %v1375, %v1374
      %v1383 = vpack.c.bf16 %v1379, %v1378
      %v1384 = vpack.c.bf16 %v1377, %v1376
      %v1385 = vpack.c.bf16 %v1381, %v1380
      %1386 = vst [vmem:[#allocation3 + $0x2a0] sm:$0xff] %v1382
      %1387 = vst [vmem:[#allocation3 + $0x2a8] sm:$0xff] %v1383
      %1388 = vst [vmem:[#allocation3 + $0x2b0] sm:$0xff] %v1384
      %1389 = vst [vmem:[#allocation3 + $0x2b8] sm:$0xff] %v1385
      %1390 = vrot.lane.b32.xlu0 %v1150, 111
      %v1391 = vpop.permute.xlu0 %1390
      %1392 = vrot.lane.b32.xlu0 %v1152, 111
      %v1393 = vpop.permute.xlu0 %1392
      %1394 = vrot.lane.b32.xlu0 %v1154, 111
      %v1395 = vpop.permute.xlu0 %1394
      %1396 = vrot.lane.b32.xlu0 %v1156, 111
      %v1397 = vpop.permute.xlu0 %1396
      %1398 = vrot.lane.b32.xlu0 %v1151, 111
      %v1399 = vpop.permute.xlu0 %1398
      %1400 = vrot.lane.b32.xlu0 %v1153, 111
      %v1401 = vpop.permute.xlu0 %1400
      %1402 = vrot.lane.b32.xlu0 %v1155, 111
      %v1403 = vpop.permute.xlu0 %1402
      %1404 = vrot.lane.b32.xlu0 %v1157, 111
      %v1405 = vpop.permute.xlu0 %1404
      %v1406 = vsel %vm573, %v1391, %v1399
      %v1407 = vsel %vm573, %v1393, %v1401
      %v1408 = vsel %vm573, %v1395, %v1403
      %v1409 = vsel %vm573, %v1397, %v1405
      %v1410 = vsel %vm573, %v1399, %v1391
      %v1411 = vsel %vm573, %v1401, %v1393
      %v1412 = vsel %vm573, %v1403, %v1395
      %v1413 = vsel %vm573, %v1405, %v1397
      %v1414 = vpack.c.bf16 %v1407, %v1406
      %v1415 = vpack.c.bf16 %v1411, %v1410
      %v1416 = vpack.c.bf16 %v1409, %v1408
      %v1417 = vpack.c.bf16 %v1413, %v1412
      %1418 = vst [vmem:[#allocation3 + $0x300] sm:$0xff] %v1414
      %1419 = vst [vmem:[#allocation3 + $0x308] sm:$0xff] %v1415
      %1420 = vst [vmem:[#allocation3 + $0x310] sm:$0xff] %v1416
      %1421 = vst [vmem:[#allocation3 + $0x318] sm:$0xff] %v1417
      %v1422 = vadd.f32 %v1036, %v1037
      %v1423 = vadd.f32 %v1422, %v1038
      %v1424 = vadd.f32 %v1423, %v1039
      %v1425 = vadd.f32 %v1424, %v1040
      %v1426 = vadd.f32 %v1425, %v1041
      %v1427 = vadd.f32 %v1426, %v1042
      %v1428 = vadd.f32 %v1427, %v1043
      %1429 = vadd.xlane.f32.xlu0 %v1428
      %v1430 = vpop.xlane.xlu0 %1429
      %v1431 = vrot.slane %v1430, 4
      %v1432 = vadd.f32 %v1430, %v1431
      %v1433 = vrot.slane %v1432, 2
      %v1434 = vadd.f32 %v1432, %v1433
      %v1435 = vrot.slane %v1434, 1
      %v1436 = vadd.f32 %v1434, %v1435
      %s1437 = vtos %v1436
      %v1438 = vmul.f32 %v1036, %v1036
      %v1439 = vmul.f32 %v1037, %v1037
      %v1440 = vmul.f32 %v1038, %v1038
      %v1441 = vmul.f32 %v1039, %v1039
      %v1442 = vmul.f32 %v1040, %v1040
      %v1443 = vmul.f32 %v1041, %v1041
      %v1444 = vmul.f32 %v1042, %v1042
      %v1445 = vmul.f32 %v1043, %v1043
      %v1446 = vadd.f32 %v1438, %v1439
      %v1447 = vadd.f32 %v1446, %v1440
      %v1448 = vadd.f32 %v1447, %v1441
      %v1449 = vadd.f32 %v1448, %v1442
      %v1450 = vadd.f32 %v1449, %v1443
      %v1451 = vadd.f32 %v1450, %v1444
      %v1452 = vadd.f32 %v1451, %v1445
      %1453 = vadd.xlane.f32.xlu0 %v1452
      %v1454 = vpop.xlane.xlu0 %1453
      %v1455 = vrot.slane %v1454, 4
      %v1456 = vadd.f32 %v1454, %v1455
      %v1457 = vrot.slane %v1456, 2
      %v1458 = vadd.f32 %v1456, %v1457
      %v1459 = vrot.slane %v1458, 1
      %v1460 = vadd.f32 %v1458, %v1459
      %s1461 = vtos %v1460
      %s1462 = smul.f32 %s1437, 0.00015943877
      %s1463 = smul.f32 %s1461, 0.00015943877
      %s1464 = smul.f32 %s1462, %s1462
      %s1465 = ssub.f32 %s1463, %s1464
      %s1466 = sadd.f32 %s1465, 1e-05
      %v1467 = vstv %s1466
      %v1468 = vrsqrt.pop %v1467
      %s1469 = vtos %v1468
      %v1470 = vstv %s1462
      %v1471 = vsub.f32 %v1036, %v1470
      %v1472 = vsub.f32 %v1037, %v1470
      %v1473 = vsub.f32 %v1038, %v1470
      %v1474 = vsub.f32 %v1039, %v1470
      %v1475 = vsub.f32 %v1040, %v1470
      %v1476 = vsub.f32 %v1041, %v1470
      %v1477 = vsub.f32 %v1042, %v1470
      %v1478 = vsub.f32 %v1043, %v1470
      %v1479 = vstv %s1469
      %v1480 = vmul.f32 %v1471, %v1479
      %v1481 = vmul.f32 %v1472, %v1479
      %v1482 = vmul.f32 %v1473, %v1479
      %v1483 = vmul.f32 %v1474, %v1479
      %v1484 = vmul.f32 %v1475, %v1479
      %v1485 = vmul.f32 %v1476, %v1479
      %v1486 = vmul.f32 %v1477, %v1479
      %v1487 = vmul.f32 %v1478, %v1479
      %v1488 = vld [vmem:[%s3 + $0x40] sm:$0xff]
      %v1489 = vld [vmem:[%s3 + $0x48] sm:$0xff]
      %v1490 = vld [vmem:[%s3 + $0x50] sm:$0xff]
      %v1491 = vld [vmem:[%s3 + $0x58] sm:$0xff]
      %v1492 = vld [vmem:[%s3 + $0x60] sm:$0xff]
      %v1493 = vld [vmem:[%s3 + $0x68] sm:$0xff]
      %v1494 = vld [vmem:[%s3 + $0x70] sm:$0xff]
      %v1495 = vld [vmem:[%s3 + $0x78] sm:$0xff]
      %v1496 = vmul.f32 %v1480, %v1488
      %v1497 = vmul.f32 %v1481, %v1489
      %v1498 = vmul.f32 %v1482, %v1490
      %v1499 = vmul.f32 %v1483, %v1491
      %v1500 = vmul.f32 %v1484, %v1492
      %v1501 = vmul.f32 %v1485, %v1493
      %v1502 = vmul.f32 %v1486, %v1494
      %v1503 = vmul.f32 %v1487, %v1495
      %v1504 = vld [vmem:[%s4 + $0x40] sm:$0xff]
      %v1505 = vld [vmem:[%s4 + $0x48] sm:$0xff]
      %v1506 = vld [vmem:[%s4 + $0x50] sm:$0xff]
      %v1507 = vld [vmem:[%s4 + $0x58] sm:$0xff]
      %v1508 = vld [vmem:[%s4 + $0x60] sm:$0xff]
      %v1509 = vld [vmem:[%s4 + $0x68] sm:$0xff]
      %v1510 = vld [vmem:[%s4 + $0x70] sm:$0xff]
      %v1511 = vld [vmem:[%s4 + $0x78] sm:$0xff]
      %v1512 = vadd.f32 %v1496, %v1504
      %v1513 = vadd.f32 %v1497, %v1505
      %v1514 = vadd.f32 %v1498, %v1506
      %v1515 = vadd.f32 %v1499, %v1507
      %v1516 = vadd.f32 %v1500, %v1508
      %v1517 = vadd.f32 %v1501, %v1509
      %v1518 = vadd.f32 %v1502, %v1510
      %v1519 = vadd.f32 %v1503, %v1511
      %v1520 = vmax.f32 %v1512, 0.0
      %v1521 = vmax.f32 %v1513, 0.0
      %v1522 = vmax.f32 %v1514, 0.0
      %v1523 = vmax.f32 %v1515, 0.0
      %v1524 = vmax.f32 %v1516, 0.0
      %v1525 = vmax.f32 %v1517, 0.0
      %v1526 = vmax.f32 %v1518, 0.0
      %v1527 = vmax.f32 %v1519, 0.0
      %1528 = vrot.lane.b32.xlu0 %v1520, 17
      %v1529 = vpop.permute.xlu0 %1528
      %1530 = vrot.lane.b32.xlu0 %v1522, 17
      %v1531 = vpop.permute.xlu0 %1530
      %1532 = vrot.lane.b32.xlu0 %v1524, 17
      %v1533 = vpop.permute.xlu0 %1532
      %1534 = vrot.lane.b32.xlu0 %v1526, 17
      %v1535 = vpop.permute.xlu0 %1534
      %1536 = vrot.lane.b32.xlu0 %v1521, 17
      %v1537 = vpop.permute.xlu0 %1536
      %1538 = vrot.lane.b32.xlu0 %v1523, 17
      %v1539 = vpop.permute.xlu0 %1538
      %1540 = vrot.lane.b32.xlu0 %v1525, 17
      %v1541 = vpop.permute.xlu0 %1540
      %1542 = vrot.lane.b32.xlu0 %v1527, 17
      %v1543 = vpop.permute.xlu0 %1542
      %v1544 = vsel %vm334, %v1529, %v1537
      %v1545 = vsel %vm334, %v1531, %v1539
      %v1546 = vsel %vm334, %v1533, %v1541
      %v1547 = vsel %vm334, %v1535, %v1543
      %v1548 = vsel %vm334, %v1537, %v1529
      %v1549 = vsel %vm334, %v1539, %v1531
      %v1550 = vsel %vm334, %v1541, %v1533
      %v1551 = vsel %vm334, %v1543, %v1535
      %v1552 = vpack.c.bf16 %v1549, %v1548
      %v1553 = vpack.c.bf16 %v1545, %v1544
      %v1554 = vpack.c.bf16 %v1551, %v1550
      %v1555 = vpack.c.bf16 %v1547, %v1546
      %1556 = vst [vmem:[#allocation3 + $0x20] sm:$0xff] %v1552
      %1557 = vst [vmem:[#allocation3 + $0x28] sm:$0xff] %v1553
      %1558 = vst [vmem:[#allocation3 + $0x30] sm:$0xff] %v1554
      %1559 = vst [vmem:[#allocation3 + $0x38] sm:$0xff] %v1555
      %1560 = vrot.lane.b32.xlu0 %v1520, 16
      %v1561 = vpop.permute.xlu0 %1560
      %1562 = vrot.lane.b32.xlu0 %v1522, 16
      %v1563 = vpop.permute.xlu0 %1562
      %1564 = vrot.lane.b32.xlu0 %v1524, 16
      %v1565 = vpop.permute.xlu0 %1564
      %1566 = vrot.lane.b32.xlu0 %v1526, 16
      %v1567 = vpop.permute.xlu0 %1566
      %1568 = vrot.lane.b32.xlu0 %v1521, 16
      %v1569 = vpop.permute.xlu0 %1568
      %1570 = vrot.lane.b32.xlu0 %v1523, 16
      %v1571 = vpop.permute.xlu0 %1570
      %1572 = vrot.lane.b32.xlu0 %v1525, 16
      %v1573 = vpop.permute.xlu0 %1572
      %1574 = vrot.lane.b32.xlu0 %v1527, 16
      %v1575 = vpop.permute.xlu0 %1574
      %v1576 = vsel %vm367, %v1561, %v1569
      %v1577 = vsel %vm367, %v1563, %v1571
      %v1578 = vsel %vm367, %v1565, %v1573
      %v1579 = vsel %vm367, %v1567, %v1575
      %v1580 = vsel %vm367, %v1569, %v1561
      %v1581 = vsel %vm367, %v1571, %v1563
      %v1582 = vsel %vm367, %v1573, %v1565
      %v1583 = vsel %vm367, %v1575, %v1567
      %v1584 = vpack.c.bf16 %v1581, %v1580
      %v1585 = vpack.c.bf16 %v1577, %v1576
      %v1586 = vpack.c.bf16 %v1583, %v1582
      %v1587 = vpack.c.bf16 %v1579, %v1578
      %1588 = vst [vmem:[#allocation3 + $0x80] sm:$0xff] %v1584
      %1589 = vst [vmem:[#allocation3 + $0x88] sm:$0xff] %v1585
      %1590 = vst [vmem:[#allocation3 + $0x90] sm:$0xff] %v1586
      %1591 = vst [vmem:[#allocation3 + $0x98] sm:$0xff] %v1587
      %1592 = vrot.lane.b32.xlu0 %v1520, 15
      %v1593 = vpop.permute.xlu0 %1592
      %1594 = vrot.lane.b32.xlu0 %v1522, 15
      %v1595 = vpop.permute.xlu0 %1594
      %1596 = vrot.lane.b32.xlu0 %v1524, 15
      %v1597 = vpop.permute.xlu0 %1596
      %1598 = vrot.lane.b32.xlu0 %v1526, 15
      %v1599 = vpop.permute.xlu0 %1598
      %1600 = vrot.lane.b32.xlu0 %v1521, 15
      %v1601 = vpop.permute.xlu0 %1600
      %1602 = vrot.lane.b32.xlu0 %v1523, 15
      %v1603 = vpop.permute.xlu0 %1602
      %1604 = vrot.lane.b32.xlu0 %v1525, 15
      %v1605 = vpop.permute.xlu0 %1604
      %1606 = vrot.lane.b32.xlu0 %v1527, 15
      %v1607 = vpop.permute.xlu0 %1606
      %v1608 = vsel %vm400, %v1593, %v1601
      %v1609 = vsel %vm400, %v1595, %v1603
      %v1610 = vsel %vm400, %v1597, %v1605
      %v1611 = vsel %vm400, %v1599, %v1607
      %v1612 = vsel %vm400, %v1601, %v1593
      %v1613 = vsel %vm400, %v1603, %v1595
      %v1614 = vsel %vm400, %v1605, %v1597
      %v1615 = vsel %vm400, %v1607, %v1599
      %v1616 = vpack.c.bf16 %v1613, %v1612
      %v1617 = vpack.c.bf16 %v1609, %v1608
      %v1618 = vpack.c.bf16 %v1615, %v1614
      %v1619 = vpack.c.bf16 %v1611, %v1610
      %1620 = vst [vmem:[#allocation3 + $0xe0] sm:$0xff] %v1616
      %1621 = vst [vmem:[#allocation3 + $0xe8] sm:$0xff] %v1617
      %1622 = vst [vmem:[#allocation3 + $0xf0] sm:$0xff] %v1618
      %1623 = vst [vmem:[#allocation3 + $0xf8] sm:$0xff] %v1619
      %1624 = vrot.lane.b32.xlu0 %v1520, 1
      %v1625 = vpop.permute.xlu0 %1624
      %1626 = vrot.lane.b32.xlu0 %v1522, 1
      %v1627 = vpop.permute.xlu0 %1626
      %1628 = vrot.lane.b32.xlu0 %v1524, 1
      %v1629 = vpop.permute.xlu0 %1628
      %1630 = vrot.lane.b32.xlu0 %v1526, 1
      %v1631 = vpop.permute.xlu0 %1630
      %1632 = vrot.lane.b32.xlu0 %v1521, 1
      %v1633 = vpop.permute.xlu0 %1632
      %1634 = vrot.lane.b32.xlu0 %v1523, 1
      %v1635 = vpop.permute.xlu0 %1634
      %1636 = vrot.lane.b32.xlu0 %v1525, 1
      %v1637 = vpop.permute.xlu0 %1636
      %1638 = vrot.lane.b32.xlu0 %v1527, 1
      %v1639 = vpop.permute.xlu0 %1638
      %v1640 = vsel %vm433, %v1625, %v1633
      %v1641 = vsel %vm433, %v1627, %v1635
      %v1642 = vsel %vm433, %v1629, %v1637
      %v1643 = vsel %vm433, %v1631, %v1639
      %v1644 = vsel %vm433, %v1633, %v1625
      %v1645 = vsel %vm433, %v1635, %v1627
      %v1646 = vsel %vm433, %v1637, %v1629
      %v1647 = vsel %vm433, %v1639, %v1631
      %v1648 = vpack.c.bf16 %v1645, %v1644
      %v1649 = vpack.c.bf16 %v1641, %v1640
      %v1650 = vpack.c.bf16 %v1647, %v1646
      %v1651 = vpack.c.bf16 %v1643, %v1642
      %1652 = vst [vmem:[#allocation3 + $0x140] sm:$0xff] %v1648
      %1653 = vst [vmem:[#allocation3 + $0x148] sm:$0xff] %v1649
      %1654 = vst [vmem:[#allocation3 + $0x150] sm:$0xff] %v1650
      %1655 = vst [vmem:[#allocation3 + $0x158] sm:$0xff] %v1651
      %v1656 = vpack.c.bf16 %v1522, %v1520
      %v1657 = vpack.c.bf16 %v1523, %v1521
      %v1658 = vpack.c.bf16 %v1526, %v1524
      %v1659 = vpack.c.bf16 %v1527, %v1525
      %1660 = vst [vmem:[#allocation3 + $0x1a0] sm:$0xff] %v1656
      %1661 = vst [vmem:[#allocation3 + $0x1a8] sm:$0xff] %v1657
      %1662 = vst [vmem:[#allocation3 + $0x1b0] sm:$0xff] %v1658
      %1663 = vst [vmem:[#allocation3 + $0x1b8] sm:$0xff] %v1659
      %1664 = vrot.lane.b32.xlu0 %v1520, 127
      %v1665 = vpop.permute.xlu0 %1664
      %1666 = vrot.lane.b32.xlu0 %v1522, 127
      %v1667 = vpop.permute.xlu0 %1666
      %1668 = vrot.lane.b32.xlu0 %v1524, 127
      %v1669 = vpop.permute.xlu0 %1668
      %1670 = vrot.lane.b32.xlu0 %v1526, 127
      %v1671 = vpop.permute.xlu0 %1670
      %1672 = vrot.lane.b32.xlu0 %v1521, 127
      %v1673 = vpop.permute.xlu0 %1672
      %1674 = vrot.lane.b32.xlu0 %v1523, 127
      %v1675 = vpop.permute.xlu0 %1674
      %1676 = vrot.lane.b32.xlu0 %v1525, 127
      %v1677 = vpop.permute.xlu0 %1676
      %1678 = vrot.lane.b32.xlu0 %v1527, 127
      %v1679 = vpop.permute.xlu0 %1678
      %v1680 = vsel %vm474, %v1665, %v1673
      %v1681 = vsel %vm474, %v1667, %v1675
      %v1682 = vsel %vm474, %v1669, %v1677
      %v1683 = vsel %vm474, %v1671, %v1679
      %v1684 = vsel %vm474, %v1673, %v1665
      %v1685 = vsel %vm474, %v1675, %v1667
      %v1686 = vsel %vm474, %v1677, %v1669
      %v1687 = vsel %vm474, %v1679, %v1671
      %v1688 = vpack.c.bf16 %v1681, %v1680
      %v1689 = vpack.c.bf16 %v1685, %v1684
      %v1690 = vpack.c.bf16 %v1683, %v1682
      %v1691 = vpack.c.bf16 %v1687, %v1686
      %1692 = vst [vmem:[#allocation3 + $0x200] sm:$0xff] %v1688
      %1693 = vst [vmem:[#allocation3 + $0x208] sm:$0xff] %v1689
      %1694 = vst [vmem:[#allocation3 + $0x210] sm:$0xff] %v1690
      %1695 = vst [vmem:[#allocation3 + $0x218] sm:$0xff] %v1691
      %1696 = vrot.lane.b32.xlu0 %v1520, 113
      %v1697 = vpop.permute.xlu0 %1696
      %1698 = vrot.lane.b32.xlu0 %v1522, 113
      %v1699 = vpop.permute.xlu0 %1698
      %1700 = vrot.lane.b32.xlu0 %v1524, 113
      %v1701 = vpop.permute.xlu0 %1700
      %1702 = vrot.lane.b32.xlu0 %v1526, 113
      %v1703 = vpop.permute.xlu0 %1702
      %1704 = vrot.lane.b32.xlu0 %v1521, 113
      %v1705 = vpop.permute.xlu0 %1704
      %1706 = vrot.lane.b32.xlu0 %v1523, 113
      %v1707 = vpop.permute.xlu0 %1706
      %1708 = vrot.lane.b32.xlu0 %v1525, 113
      %v1709 = vpop.permute.xlu0 %1708
      %1710 = vrot.lane.b32.xlu0 %v1527, 113
      %v1711 = vpop.permute.xlu0 %1710
      %v1712 = vsel %vm507, %v1697, %v1705
      %v1713 = vsel %vm507, %v1699, %v1707
      %v1714 = vsel %vm507, %v1701, %v1709
      %v1715 = vsel %vm507, %v1703, %v1711
      %v1716 = vsel %vm507, %v1705, %v1697
      %v1717 = vsel %vm507, %v1707, %v1699
      %v1718 = vsel %vm507, %v1709, %v1701
      %v1719 = vsel %vm507, %v1711, %v1703
      %v1720 = vpack.c.bf16 %v1713, %v1712
      %v1721 = vpack.c.bf16 %v1717, %v1716
      %v1722 = vpack.c.bf16 %v1715, %v1714
      %v1723 = vpack.c.bf16 %v1719, %v1718
      %1724 = vst [vmem:[#allocation3 + $0x260] sm:$0xff] %v1720
      %1725 = vst [vmem:[#allocation3 + $0x268] sm:$0xff] %v1721
      %1726 = vst [vmem:[#allocation3 + $0x270] sm:$0xff] %v1722
      %1727 = vst [vmem:[#allocation3 + $0x278] sm:$0xff] %v1723
      %1728 = vrot.lane.b32.xlu0 %v1520, 112
      %v1729 = vpop.permute.xlu0 %1728
      %1730 = vrot.lane.b32.xlu0 %v1522, 112
      %v1731 = vpop.permute.xlu0 %1730
      %1732 = vrot.lane.b32.xlu0 %v1524, 112
      %v1733 = vpop.permute.xlu0 %1732
      %1734 = vrot.lane.b32.xlu0 %v1526, 112
      %v1735 = vpop.permute.xlu0 %1734
      %1736 = vrot.lane.b32.xlu0 %v1521, 112
      %v1737 = vpop.permute.xlu0 %1736
      %1738 = vrot.lane.b32.xlu0 %v1523, 112
      %v1739 = vpop.permute.xlu0 %1738
      %1740 = vrot.lane.b32.xlu0 %v1525, 112
      %v1741 = vpop.permute.xlu0 %1740
      %1742 = vrot.lane.b32.xlu0 %v1527, 112
      %v1743 = vpop.permute.xlu0 %1742
      %v1744 = vsel %vm540, %v1729, %v1737
      %v1745 = vsel %vm540, %v1731, %v1739
      %v1746 = vsel %vm540, %v1733, %v1741
      %v1747 = vsel %vm540, %v1735, %v1743
      %v1748 = vsel %vm540, %v1737, %v1729
      %v1749 = vsel %vm540, %v1739, %v1731
      %v1750 = vsel %vm540, %v1741, %v1733
      %v1751 = vsel %vm540, %v1743, %v1735
      %v1752 = vpack.c.bf16 %v1745, %v1744
      %v1753 = vpack.c.bf16 %v1749, %v1748
      %v1754 = vpack.c.bf16 %v1747, %v1746
      %v1755 = vpack.c.bf16 %v1751, %v1750
      %1756 = vst [vmem:[#allocation3 + $0x2c0] sm:$0xff] %v1752
      %1757 = vst [vmem:[#allocation3 + $0x2c8] sm:$0xff] %v1753
      %1758 = vst [vmem:[#allocation3 + $0x2d0] sm:$0xff] %v1754
      %1759 = vst [vmem:[#allocation3 + $0x2d8] sm:$0xff] %v1755
      %1760 = vrot.lane.b32.xlu0 %v1520, 111
      %v1761 = vpop.permute.xlu0 %1760
      %1762 = vrot.lane.b32.xlu0 %v1522, 111
      %v1763 = vpop.permute.xlu0 %1762
      %1764 = vrot.lane.b32.xlu0 %v1524, 111
      %v1765 = vpop.permute.xlu0 %1764
      %1766 = vrot.lane.b32.xlu0 %v1526, 111
      %v1767 = vpop.permute.xlu0 %1766
      %1768 = vrot.lane.b32.xlu0 %v1521, 111
      %v1769 = vpop.permute.xlu0 %1768
      %1770 = vrot.lane.b32.xlu0 %v1523, 111
      %v1771 = vpop.permute.xlu0 %1770
      %1772 = vrot.lane.b32.xlu0 %v1525, 111
      %v1773 = vpop.permute.xlu0 %1772
      %1774 = vrot.lane.b32.xlu0 %v1527, 111
      %v1775 = vpop.permute.xlu0 %1774
      %v1776 = vsel %vm573, %v1761, %v1769
      %v1777 = vsel %vm573, %v1763, %v1771
      %v1778 = vsel %vm573, %v1765, %v1773
      %v1779 = vsel %vm573, %v1767, %v1775
      %v1780 = vsel %vm573, %v1769, %v1761
      %v1781 = vsel %vm573, %v1771, %v1763
      %v1782 = vsel %vm573, %v1773, %v1765
      %v1783 = vsel %vm573, %v1775, %v1767
      %v1784 = vpack.c.bf16 %v1777, %v1776
      %v1785 = vpack.c.bf16 %v1781, %v1780
      %v1786 = vpack.c.bf16 %v1779, %v1778
      %v1787 = vpack.c.bf16 %v1783, %v1782
      %1788 = vst [vmem:[#allocation3 + $0x320] sm:$0xff] %v1784
      %1789 = vst [vmem:[#allocation3 + $0x328] sm:$0xff] %v1785
      %1790 = vst [vmem:[#allocation3 + $0x330] sm:$0xff] %v1786
      %1791 = vst [vmem:[#allocation3 + $0x338] sm:$0xff] %v1787
      %v1792 = vadd.f32 %v1044, %v1045
      %v1793 = vadd.f32 %v1792, %v1046
      %v1794 = vadd.f32 %v1793, %v1047
      %v1795 = vadd.f32 %v1794, %v1048
      %v1796 = vadd.f32 %v1795, %v1049
      %v1797 = vadd.f32 %v1796, %v1050
      %v1798 = vadd.f32 %v1797, %v1051
      %1799 = vadd.xlane.f32.xlu0 %v1798
      %v1800 = vpop.xlane.xlu0 %1799
      %v1801 = vrot.slane %v1800, 4
      %v1802 = vadd.f32 %v1800, %v1801
      %v1803 = vrot.slane %v1802, 2
      %v1804 = vadd.f32 %v1802, %v1803
      %v1805 = vrot.slane %v1804, 1
      %v1806 = vadd.f32 %v1804, %v1805
      %s1807 = vtos %v1806
      %v1808 = vmul.f32 %v1044, %v1044
      %v1809 = vmul.f32 %v1045, %v1045
      %v1810 = vmul.f32 %v1046, %v1046
      %v1811 = vmul.f32 %v1047, %v1047
      %v1812 = vmul.f32 %v1048, %v1048
      %v1813 = vmul.f32 %v1049, %v1049
      %v1814 = vmul.f32 %v1050, %v1050
      %v1815 = vmul.f32 %v1051, %v1051
      %v1816 = vadd.f32 %v1808, %v1809
      %v1817 = vadd.f32 %v1816, %v1810
      %v1818 = vadd.f32 %v1817, %v1811
      %v1819 = vadd.f32 %v1818, %v1812
      %v1820 = vadd.f32 %v1819, %v1813
      %v1821 = vadd.f32 %v1820, %v1814
      %v1822 = vadd.f32 %v1821, %v1815
      %1823 = vadd.xlane.f32.xlu0 %v1822
      %v1824 = vpop.xlane.xlu0 %1823
      %v1825 = vrot.slane %v1824, 4
      %v1826 = vadd.f32 %v1824, %v1825
      %v1827 = vrot.slane %v1826, 2
      %v1828 = vadd.f32 %v1826, %v1827
      %v1829 = vrot.slane %v1828, 1
      %v1830 = vadd.f32 %v1828, %v1829
      %s1831 = vtos %v1830
      %s1832 = smul.f32 %s1807, 0.00015943877
      %s1833 = smul.f32 %s1831, 0.00015943877
      %s1834 = smul.f32 %s1832, %s1832
      %s1835 = ssub.f32 %s1833, %s1834
      %s1836 = sadd.f32 %s1835, 1e-05
      %v1837 = vstv %s1836
      %v1838 = vrsqrt.pop %v1837
      %s1839 = vtos %v1838
      %v1840 = vstv %s1832
      %v1841 = vsub.f32 %v1044, %v1840
      %v1842 = vsub.f32 %v1045, %v1840
      %v1843 = vsub.f32 %v1046, %v1840
      %v1844 = vsub.f32 %v1047, %v1840
      %v1845 = vsub.f32 %v1048, %v1840
      %v1846 = vsub.f32 %v1049, %v1840
      %v1847 = vsub.f32 %v1050, %v1840
      %v1848 = vsub.f32 %v1051, %v1840
      %v1849 = vstv %s1839
      %v1850 = vmul.f32 %v1841, %v1849
      %v1851 = vmul.f32 %v1842, %v1849
      %v1852 = vmul.f32 %v1843, %v1849
      %v1853 = vmul.f32 %v1844, %v1849
      %v1854 = vmul.f32 %v1845, %v1849
      %v1855 = vmul.f32 %v1846, %v1849
      %v1856 = vmul.f32 %v1847, %v1849
      %v1857 = vmul.f32 %v1848, %v1849
      %v1858 = vld [vmem:[%s3 + $0x80] sm:$0xff]
      %v1859 = vld [vmem:[%s3 + $0x88] sm:$0xff]
      %v1860 = vld [vmem:[%s3 + $0x90] sm:$0xff]
      %v1861 = vld [vmem:[%s3 + $0x98] sm:$0xff]
      %v1862 = vld [vmem:[%s3 + $0xa0] sm:$0xff]
      %v1863 = vld [vmem:[%s3 + $0xa8] sm:$0xff]
      %v1864 = vld [vmem:[%s3 + $0xb0] sm:$0xff]
      %v1865 = vld [vmem:[%s3 + $0xb8] sm:$0xff]
      %v1866 = vmul.f32 %v1850, %v1858
      %v1867 = vmul.f32 %v1851, %v1859
      %v1868 = vmul.f32 %v1852, %v1860
      %v1869 = vmul.f32 %v1853, %v1861
      %v1870 = vmul.f32 %v1854, %v1862
      %v1871 = vmul.f32 %v1855, %v1863
      %v1872 = vmul.f32 %v1856, %v1864
      %v1873 = vmul.f32 %v1857, %v1865
      %v1874 = vld [vmem:[%s4 + $0x80] sm:$0xff]
      %v1875 = vld [vmem:[%s4 + $0x88] sm:$0xff]
      %v1876 = vld [vmem:[%s4 + $0x90] sm:$0xff]
      %v1877 = vld [vmem:[%s4 + $0x98] sm:$0xff]
      %v1878 = vld [vmem:[%s4 + $0xa0] sm:$0xff]
      %v1879 = vld [vmem:[%s4 + $0xa8] sm:$0xff]
      %v1880 = vld [vmem:[%s4 + $0xb0] sm:$0xff]
      %v1881 = vld [vmem:[%s4 + $0xb8] sm:$0xff]
      %v1882 = vadd.f32 %v1866, %v1874
      %v1883 = vadd.f32 %v1867, %v1875
      %v1884 = vadd.f32 %v1868, %v1876
      %v1885 = vadd.f32 %v1869, %v1877
      %v1886 = vadd.f32 %v1870, %v1878
      %v1887 = vadd.f32 %v1871, %v1879
      %v1888 = vadd.f32 %v1872, %v1880
      %v1889 = vadd.f32 %v1873, %v1881
      %v1890 = vmax.f32 %v1882, 0.0
      %v1891 = vmax.f32 %v1883, 0.0
      %v1892 = vmax.f32 %v1884, 0.0
      %v1893 = vmax.f32 %v1885, 0.0
      %v1894 = vmax.f32 %v1886, 0.0
      %v1895 = vmax.f32 %v1887, 0.0
      %v1896 = vmax.f32 %v1888, 0.0
      %v1897 = vmax.f32 %v1889, 0.0
      %1898 = vrot.lane.b32.xlu0 %v1890, 17
      %v1899 = vpop.permute.xlu0 %1898
      %1900 = vrot.lane.b32.xlu0 %v1892, 17
      %v1901 = vpop.permute.xlu0 %1900
      %1902 = vrot.lane.b32.xlu0 %v1894, 17
      %v1903 = vpop.permute.xlu0 %1902
      %1904 = vrot.lane.b32.xlu0 %v1896, 17
      %v1905 = vpop.permute.xlu0 %1904
      %1906 = vrot.lane.b32.xlu0 %v1891, 17
      %v1907 = vpop.permute.xlu0 %1906
      %1908 = vrot.lane.b32.xlu0 %v1893, 17
      %v1909 = vpop.permute.xlu0 %1908
      %1910 = vrot.lane.b32.xlu0 %v1895, 17
      %v1911 = vpop.permute.xlu0 %1910
      %1912 = vrot.lane.b32.xlu0 %v1897, 17
      %v1913 = vpop.permute.xlu0 %1912
      %v1914 = vsel %vm334, %v1899, %v1907
      %v1915 = vsel %vm334, %v1901, %v1909
      %v1916 = vsel %vm334, %v1903, %v1911
      %v1917 = vsel %vm334, %v1905, %v1913
      %v1918 = vsel %vm334, %v1907, %v1899
      %v1919 = vsel %vm334, %v1909, %v1901
      %v1920 = vsel %vm334, %v1911, %v1903
      %v1921 = vsel %vm334, %v1913, %v1905
      %v1922 = vpack.c.bf16 %v1919, %v1918
      %v1923 = vpack.c.bf16 %v1915, %v1914
      %v1924 = vpack.c.bf16 %v1921, %v1920
      %v1925 = vpack.c.bf16 %v1917, %v1916
      %1926 = vst [vmem:[#allocation3 + $0x40] sm:$0xff] %v1922
      %1927 = vst [vmem:[#allocation3 + $0x48] sm:$0xff] %v1923
      %1928 = vst [vmem:[#allocation3 + $0x50] sm:$0xff] %v1924
      %1929 = vst [vmem:[#allocation3 + $0x58] sm:$0xff] %v1925
      %1930 = vrot.lane.b32.xlu0 %v1890, 16
      %v1931 = vpop.permute.xlu0 %1930
      %1932 = vrot.lane.b32.xlu0 %v1892, 16
      %v1933 = vpop.permute.xlu0 %1932
      %1934 = vrot.lane.b32.xlu0 %v1894, 16
      %v1935 = vpop.permute.xlu0 %1934
      %1936 = vrot.lane.b32.xlu0 %v1896, 16
      %v1937 = vpop.permute.xlu0 %1936
      %1938 = vrot.lane.b32.xlu0 %v1891, 16
      %v1939 = vpop.permute.xlu0 %1938
      %1940 = vrot.lane.b32.xlu0 %v1893, 16
      %v1941 = vpop.permute.xlu0 %1940
      %1942 = vrot.lane.b32.xlu0 %v1895, 16
      %v1943 = vpop.permute.xlu0 %1942
      %1944 = vrot.lane.b32.xlu0 %v1897, 16
      %v1945 = vpop.permute.xlu0 %1944
      %v1946 = vsel %vm367, %v1931, %v1939
      %v1947 = vsel %vm367, %v1933, %v1941
      %v1948 = vsel %vm367, %v1935, %v1943
      %v1949 = vsel %vm367, %v1937, %v1945
      %v1950 = vsel %vm367, %v1939, %v1931
      %v1951 = vsel %vm367, %v1941, %v1933
      %v1952 = vsel %vm367, %v1943, %v1935
      %v1953 = vsel %vm367, %v1945, %v1937
      %v1954 = vpack.c.bf16 %v1951, %v1950
      %v1955 = vpack.c.bf16 %v1947, %v1946
      %v1956 = vpack.c.bf16 %v1953, %v1952
      %v1957 = vpack.c.bf16 %v1949, %v1948
      %1958 = vst [vmem:[#allocation3 + $0xa0] sm:$0xff] %v1954
      %1959 = vst [vmem:[#allocation3 + $0xa8] sm:$0xff] %v1955
      %1960 = vst [vmem:[#allocation3 + $0xb0] sm:$0xff] %v1956
      %1961 = vst [vmem:[#allocation3 + $0xb8] sm:$0xff] %v1957
      %1962 = vrot.lane.b32.xlu0 %v1890, 15
      %v1963 = vpop.permute.xlu0 %1962
      %1964 = vrot.lane.b32.xlu0 %v1892, 15
      %v1965 = vpop.permute.xlu0 %1964
      %1966 = vrot.lane.b32.xlu0 %v1894, 15
      %v1967 = vpop.permute.xlu0 %1966
      %1968 = vrot.lane.b32.xlu0 %v1896, 15
      %v1969 = vpop.permute.xlu0 %1968
      %1970 = vrot.lane.b32.xlu0 %v1891, 15
      %v1971 = vpop.permute.xlu0 %1970
      %1972 = vrot.lane.b32.xlu0 %v1893, 15
      %v1973 = vpop.permute.xlu0 %1972
      %1974 = vrot.lane.b32.xlu0 %v1895, 15
      %v1975 = vpop.permute.xlu0 %1974
      %1976 = vrot.lane.b32.xlu0 %v1897, 15
      %v1977 = vpop.permute.xlu0 %1976
      %v1978 = vsel %vm400, %v1963, %v1971
      %v1979 = vsel %vm400, %v1965, %v1973
      %v1980 = vsel %vm400, %v1967, %v1975
      %v1981 = vsel %vm400, %v1969, %v1977
      %v1982 = vsel %vm400, %v1971, %v1963
      %v1983 = vsel %vm400, %v1973, %v1965
      %v1984 = vsel %vm400, %v1975, %v1967
      %v1985 = vsel %vm400, %v1977, %v1969
      %v1986 = vpack.c.bf16 %v1983, %v1982
      %v1987 = vpack.c.bf16 %v1979, %v1978
      %v1988 = vpack.c.bf16 %v1985, %v1984
      %v1989 = vpack.c.bf16 %v1981, %v1980
      %1990 = vst [vmem:[#allocation3 + $0x100] sm:$0xff] %v1986
      %1991 = vst [vmem:[#allocation3 + $0x108] sm:$0xff] %v1987
      %1992 = vst [vmem:[#allocation3 + $0x110] sm:$0xff] %v1988
      %1993 = vst [vmem:[#allocation3 + $0x118] sm:$0xff] %v1989
      %1994 = vrot.lane.b32.xlu0 %v1890, 1
      %v1995 = vpop.permute.xlu0 %1994
      %1996 = vrot.lane.b32.xlu0 %v1892, 1
      %v1997 = vpop.permute.xlu0 %1996
      %1998 = vrot.lane.b32.xlu0 %v1894, 1
      %v1999 = vpop.permute.xlu0 %1998
      %2000 = vrot.lane.b32.xlu0 %v1896, 1
      %v2001 = vpop.permute.xlu0 %2000
      %2002 = vrot.lane.b32.xlu0 %v1891, 1
      %v2003 = vpop.permute.xlu0 %2002
      %2004 = vrot.lane.b32.xlu0 %v1893, 1
      %v2005 = vpop.permute.xlu0 %2004
      %2006 = vrot.lane.b32.xlu0 %v1895, 1
      %v2007 = vpop.permute.xlu0 %2006
      %2008 = vrot.lane.b32.xlu0 %v1897, 1
      %v2009 = vpop.permute.xlu0 %2008
      %v2010 = vsel %vm433, %v1995, %v2003
      %v2011 = vsel %vm433, %v1997, %v2005
      %v2012 = vsel %vm433, %v1999, %v2007
      %v2013 = vsel %vm433, %v2001, %v2009
      %v2014 = vsel %vm433, %v2003, %v1995
      %v2015 = vsel %vm433, %v2005, %v1997
      %v2016 = vsel %vm433, %v2007, %v1999
      %v2017 = vsel %vm433, %v2009, %v2001
      %v2018 = vpack.c.bf16 %v2015, %v2014
      %v2019 = vpack.c.bf16 %v2011, %v2010
      %v2020 = vpack.c.bf16 %v2017, %v2016
      %v2021 = vpack.c.bf16 %v2013, %v2012
      %2022 = vst [vmem:[#allocation3 + $0x160] sm:$0xff] %v2018
      %2023 = vst [vmem:[#allocation3 + $0x168] sm:$0xff] %v2019
      %2024 = vst [vmem:[#allocation3 + $0x170] sm:$0xff] %v2020
      %2025 = vst [vmem:[#allocation3 + $0x178] sm:$0xff] %v2021
      %v2026 = vpack.c.bf16 %v1892, %v1890
      %v2027 = vpack.c.bf16 %v1893, %v1891
      %v2028 = vpack.c.bf16 %v1896, %v1894
      %v2029 = vpack.c.bf16 %v1897, %v1895
      %2030 = vst [vmem:[#allocation3 + $0x1c0] sm:$0xff] %v2026
      %2031 = vst [vmem:[#allocation3 + $0x1c8] sm:$0xff] %v2027
      %2032 = vst [vmem:[#allocation3 + $0x1d0] sm:$0xff] %v2028
      %2033 = vst [vmem:[#allocation3 + $0x1d8] sm:$0xff] %v2029
      %2034 = vrot.lane.b32.xlu0 %v1890, 127
      %v2035 = vpop.permute.xlu0 %2034
      %2036 = vrot.lane.b32.xlu0 %v1892, 127
      %v2037 = vpop.permute.xlu0 %2036
      %2038 = vrot.lane.b32.xlu0 %v1894, 127
      %v2039 = vpop.permute.xlu0 %2038
      %2040 = vrot.lane.b32.xlu0 %v1896, 127
      %v2041 = vpop.permute.xlu0 %2040
      %2042 = vrot.lane.b32.xlu0 %v1891, 127
      %v2043 = vpop.permute.xlu0 %2042
      %2044 = vrot.lane.b32.xlu0 %v1893, 127
      %v2045 = vpop.permute.xlu0 %2044
      %2046 = vrot.lane.b32.xlu0 %v1895, 127
      %v2047 = vpop.permute.xlu0 %2046
      %2048 = vrot.lane.b32.xlu0 %v1897, 127
      %v2049 = vpop.permute.xlu0 %2048
      %v2050 = vsel %vm474, %v2035, %v2043
      %v2051 = vsel %vm474, %v2037, %v2045
      %v2052 = vsel %vm474, %v2039, %v2047
      %v2053 = vsel %vm474, %v2041, %v2049
      %v2054 = vsel %vm474, %v2043, %v2035
      %v2055 = vsel %vm474, %v2045, %v2037
      %v2056 = vsel %vm474, %v2047, %v2039
      %v2057 = vsel %vm474, %v2049, %v2041
      %v2058 = vpack.c.bf16 %v2051, %v2050
      %v2059 = vpack.c.bf16 %v2055, %v2054
      %v2060 = vpack.c.bf16 %v2053, %v2052
      %v2061 = vpack.c.bf16 %v2057, %v2056
      %2062 = vst [vmem:[#allocation3 + $0x220] sm:$0xff] %v2058
      %2063 = vst [vmem:[#allocation3 + $0x228] sm:$0xff] %v2059
      %2064 = vst [vmem:[#allocation3 + $0x230] sm:$0xff] %v2060
      %2065 = vst [vmem:[#allocation3 + $0x238] sm:$0xff] %v2061
      %2066 = vrot.lane.b32.xlu0 %v1890, 113
      %v2067 = vpop.permute.xlu0 %2066
      %2068 = vrot.lane.b32.xlu0 %v1892, 113
      %v2069 = vpop.permute.xlu0 %2068
      %2070 = vrot.lane.b32.xlu0 %v1894, 113
      %v2071 = vpop.permute.xlu0 %2070
      %2072 = vrot.lane.b32.xlu0 %v1896, 113
      %v2073 = vpop.permute.xlu0 %2072
      %2074 = vrot.lane.b32.xlu0 %v1891, 113
      %v2075 = vpop.permute.xlu0 %2074
      %2076 = vrot.lane.b32.xlu0 %v1893, 113
      %v2077 = vpop.permute.xlu0 %2076
      %2078 = vrot.lane.b32.xlu0 %v1895, 113
      %v2079 = vpop.permute.xlu0 %2078
      %2080 = vrot.lane.b32.xlu0 %v1897, 113
      %v2081 = vpop.permute.xlu0 %2080
      %v2082 = vsel %vm507, %v2067, %v2075
      %v2083 = vsel %vm507, %v2069, %v2077
      %v2084 = vsel %vm507, %v2071, %v2079
      %v2085 = vsel %vm507, %v2073, %v2081
      %v2086 = vsel %vm507, %v2075, %v2067
      %v2087 = vsel %vm507, %v2077, %v2069
      %v2088 = vsel %vm507, %v2079, %v2071
      %v2089 = vsel %vm507, %v2081, %v2073
      %v2090 = vpack.c.bf16 %v2083, %v2082
      %v2091 = vpack.c.bf16 %v2087, %v2086
      %v2092 = vpack.c.bf16 %v2085, %v2084
      %v2093 = vpack.c.bf16 %v2089, %v2088
      %2094 = vst [vmem:[#allocation3 + $0x280] sm:$0xff] %v2090
      %2095 = vst [vmem:[#allocation3 + $0x288] sm:$0xff] %v2091
      %2096 = vst [vmem:[#allocation3 + $0x290] sm:$0xff] %v2092
      %2097 = vst [vmem:[#allocation3 + $0x298] sm:$0xff] %v2093
      %2098 = vrot.lane.b32.xlu0 %v1890, 112
      %v2099 = vpop.permute.xlu0 %2098
      %2100 = vrot.lane.b32.xlu0 %v1892, 112
      %v2101 = vpop.permute.xlu0 %2100
      %2102 = vrot.lane.b32.xlu0 %v1894, 112
      %v2103 = vpop.permute.xlu0 %2102
      %2104 = vrot.lane.b32.xlu0 %v1896, 112
      %v2105 = vpop.permute.xlu0 %2104
      %2106 = vrot.lane.b32.xlu0 %v1891, 112
      %v2107 = vpop.permute.xlu0 %2106
      %2108 = vrot.lane.b32.xlu0 %v1893, 112
      %v2109 = vpop.permute.xlu0 %2108
      %2110 = vrot.lane.b32.xlu0 %v1895, 112
      %v2111 = vpop.permute.xlu0 %2110
      %2112 = vrot.lane.b32.xlu0 %v1897, 112
      %v2113 = vpop.permute.xlu0 %2112
      %v2114 = vsel %vm540, %v2099, %v2107
      %v2115 = vsel %vm540, %v2101, %v2109
      %v2116 = vsel %vm540, %v2103, %v2111
      %v2117 = vsel %vm540, %v2105, %v2113
      %v2118 = vsel %vm540, %v2107, %v2099
      %v2119 = vsel %vm540, %v2109, %v2101
      %v2120 = vsel %vm540, %v2111, %v2103
      %v2121 = vsel %vm540, %v2113, %v2105
      %v2122 = vpack.c.bf16 %v2115, %v2114
      %v2123 = vpack.c.bf16 %v2119, %v2118
      %v2124 = vpack.c.bf16 %v2117, %v2116
      %v2125 = vpack.c.bf16 %v2121, %v2120
      %2126 = vst [vmem:[#allocation3 + $0x2e0] sm:$0xff] %v2122
      %2127 = vst [vmem:[#allocation3 + $0x2e8] sm:$0xff] %v2123
      %2128 = vst [vmem:[#allocation3 + $0x2f0] sm:$0xff] %v2124
      %2129 = vst [vmem:[#allocation3 + $0x2f8] sm:$0xff] %v2125
      %2130 = vrot.lane.b32.xlu0 %v1890, 111
      %v2131 = vpop.permute.xlu0 %2130
      %2132 = vrot.lane.b32.xlu0 %v1892, 111
      %v2133 = vpop.permute.xlu0 %2132
      %2134 = vrot.lane.b32.xlu0 %v1894, 111
      %v2135 = vpop.permute.xlu0 %2134
      %2136 = vrot.lane.b32.xlu0 %v1896, 111
      %v2137 = vpop.permute.xlu0 %2136
      %2138 = vrot.lane.b32.xlu0 %v1891, 111
      %v2139 = vpop.permute.xlu0 %2138
      %2140 = vrot.lane.b32.xlu0 %v1893, 111
      %v2141 = vpop.permute.xlu0 %2140
      %2142 = vrot.lane.b32.xlu0 %v1895, 111
      %v2143 = vpop.permute.xlu0 %2142
      %2144 = vrot.lane.b32.xlu0 %v1897, 111
      %v2145 = vpop.permute.xlu0 %2144
      %v2146 = vsel %vm573, %v2131, %v2139
      %v2147 = vsel %vm573, %v2133, %v2141
      %v2148 = vsel %vm573, %v2135, %v2143
      %v2149 = vsel %vm573, %v2137, %v2145
      %v2150 = vsel %vm573, %v2139, %v2131
      %v2151 = vsel %vm573, %v2141, %v2133
      %v2152 = vsel %vm573, %v2143, %v2135
      %v2153 = vsel %vm573, %v2145, %v2137
      %v2154 = vpack.c.bf16 %v2147, %v2146
      %v2155 = vpack.c.bf16 %v2151, %v2150
      %v2156 = vpack.c.bf16 %v2149, %v2148
      %v2157 = vpack.c.bf16 %v2153, %v2152
      %2158 = vst [vmem:[#allocation3 + $0x340] sm:$0xff] %v2154
      %2159 = vst [vmem:[#allocation3 + $0x348] sm:$0xff] %v2155
      %2160 = vst [vmem:[#allocation3 + $0x350] sm:$0xff] %v2156
      %2161 = vst [vmem:[#allocation3 + $0x358] sm:$0xff] %v2157
      %v2162 = vld [vmem:[%s5] sm:$0xff]
      %v2163 = vld [vmem:[%s5 + $0x8] sm:$0xff]
      %v2164 = vld [vmem:[%s5 + $0x10] sm:$0xff]
      %v2165 = vld [vmem:[%s5 + $0x18] sm:$0xf]
      %v2166 = vld [vmem:[%s5 + $0x1c] sm:$0xff]
      %v2167 = vld [vmem:[%s5 + $0x24] sm:$0xff]
      %v2168 = vld [vmem:[%s5 + $0x2c] sm:$0xff]
      %v2169 = vld [vmem:[%s5 + $0x34] sm:$0xf]
      %v2170 = vld [vmem:[%s5 + $0x38] sm:$0xff]
      %v2171 = vld [vmem:[%s5 + $0x40] sm:$0xff]
      %v2172 = vld [vmem:[%s5 + $0x48] sm:$0xff]
      %v2173 = vld [vmem:[%s5 + $0x50] sm:$0xf]
      %v2174 = vld [vmem:[#allocation3] sm:$0xff]
      %v2175 = vld [vmem:[#allocation3 + $0x8] sm:$0xff]
      %v2176 = vld [vmem:[#allocation3 + $0x10] sm:$0xff]
      %v2177 = vld [vmem:[#allocation3 + $0x18] sm:$0xff]
      %v2178 = vld [vmem:[#allocation3 + $0x20] sm:$0xff]
      %v2179 = vld [vmem:[#allocation3 + $0x28] sm:$0xff]
      %v2180 = vld [vmem:[#allocation3 + $0x30] sm:$0xff]
      %v2181 = vld [vmem:[#allocation3 + $0x38] sm:$0xff]
      %v2182 = vld [vmem:[#allocation3 + $0x40] sm:$0xff]
      %v2183 = vld [vmem:[#allocation3 + $0x48] sm:$0xff]
      %v2184 = vld [vmem:[#allocation3 + $0x50] sm:$0xff]
      %v2185 = vld [vmem:[#allocation3 + $0x58] sm:$0xff]
      %v2186 = vld [vmem:[#allocation3 + $0x60] sm:$0xff]
      %v2187 = vld [vmem:[#allocation3 + $0x68] sm:$0xff]
      %v2188 = vld [vmem:[#allocation3 + $0x70] sm:$0xff]
      %v2189 = vld [vmem:[#allocation3 + $0x78] sm:$0xff]
      %v2190 = vld [vmem:[#allocation3 + $0x80] sm:$0xff]
      %v2191 = vld [vmem:[#allocation3 + $0x88] sm:$0xff]
      %v2192 = vld [vmem:[#allocation3 + $0x90] sm:$0xff]
      %v2193 = vld [vmem:[#allocation3 + $0x98] sm:$0xff]
      %v2194 = vld [vmem:[#allocation3 + $0xa0] sm:$0xff]
      %v2195 = vld [vmem:[#allocation3 + $0xa8] sm:$0xff]
      %v2196 = vld [vmem:[#allocation3 + $0xb0] sm:$0xff]
      %v2197 = vld [vmem:[#allocation3 + $0xb8] sm:$0xff]
      %v2198 = vld [vmem:[#allocation3 + $0xc0] sm:$0xff]
      %v2199 = vld [vmem:[#allocation3 + $0xc8] sm:$0xff]
      %v2200 = vld [vmem:[#allocation3 + $0xd0] sm:$0xff]
      %v2201 = vld [vmem:[#allocation3 + $0xd8] sm:$0xff]
      %v2202 = vld [vmem:[#allocation3 + $0xe0] sm:$0xff]
      %v2203 = vld [vmem:[#allocation3 + $0xe8] sm:$0xff]
      %v2204 = vld [vmem:[#allocation3 + $0xf0] sm:$0xff]
      %v2205 = vld [vmem:[#allocation3 + $0xf8] sm:$0xff]
      %v2206 = vld [vmem:[#allocation3 + $0x100] sm:$0xff]
      %v2207 = vld [vmem:[#allocation3 + $0x108] sm:$0xff]
      %v2208 = vld [vmem:[#allocation3 + $0x110] sm:$0xff]
      %v2209 = vld [vmem:[#allocation3 + $0x118] sm:$0xff]
      %v2210 = vld [vmem:[#allocation3 + $0x120] sm:$0xff]
      %v2211 = vld [vmem:[#allocation3 + $0x128] sm:$0xff]
      %v2212 = vld [vmem:[#allocation3 + $0x130] sm:$0xff]
      %v2213 = vld [vmem:[#allocation3 + $0x138] sm:$0xff]
      %v2214 = vld [vmem:[#allocation3 + $0x140] sm:$0xff]
      %v2215 = vld [vmem:[#allocation3 + $0x148] sm:$0xff]
      %v2216 = vld [vmem:[#allocation3 + $0x150] sm:$0xff]
      %v2217 = vld [vmem:[#allocation3 + $0x158] sm:$0xff]
      %v2218 = vld [vmem:[#allocation3 + $0x160] sm:$0xff]
      %v2219 = vld [vmem:[#allocation3 + $0x168] sm:$0xff]
      %v2220 = vld [vmem:[#allocation3 + $0x170] sm:$0xff]
      %v2221 = vld [vmem:[#allocation3 + $0x178] sm:$0xff]
      %v2222 = vld [vmem:[#allocation3 + $0x180] sm:$0xff]
      %v2223 = vld [vmem:[#allocation3 + $0x188] sm:$0xff]
      %v2224 = vld [vmem:[#allocation3 + $0x190] sm:$0xff]
      %v2225 = vld [vmem:[#allocation3 + $0x198] sm:$0xff]
      %v2226 = vld [vmem:[#allocation3 + $0x1a0] sm:$0xff]
      %v2227 = vld [vmem:[#allocation3 + $0x1a8] sm:$0xff]
      %v2228 = vld [vmem:[#allocation3 + $0x1b0] sm:$0xff]
      %v2229 = vld [vmem:[#allocation3 + $0x1b8] sm:$0xff]
      %v2230 = vld [vmem:[#allocation3 + $0x1c0] sm:$0xff]
      %v2231 = vld [vmem:[#allocation3 + $0x1c8] sm:$0xff]
      %v2232 = vld [vmem:[#allocation3 + $0x1d0] sm:$0xff]
      %v2233 = vld [vmem:[#allocation3 + $0x1d8] sm:$0xff]
      %v2234 = vld [vmem:[#allocation3 + $0x1e0] sm:$0xff]
      %v2235 = vld [vmem:[#allocation3 + $0x1e8] sm:$0xff]
      %v2236 = vld [vmem:[#allocation3 + $0x1f0] sm:$0xff]
      %v2237 = vld [vmem:[#allocation3 + $0x1f8] sm:$0xff]
      %v2238 = vld [vmem:[#allocation3 + $0x200] sm:$0xff]
      %v2239 = vld [vmem:[#allocation3 + $0x208] sm:$0xff]
      %v2240 = vld [vmem:[#allocation3 + $0x210] sm:$0xff]
      %v2241 = vld [vmem:[#allocation3 + $0x218] sm:$0xff]
      %v2242 = vld [vmem:[#allocation3 + $0x220] sm:$0xff]
      %v2243 = vld [vmem:[#allocation3 + $0x228] sm:$0xff]
      %v2244 = vld [vmem:[#allocation3 + $0x230] sm:$0xff]
      %v2245 = vld [vmem:[#allocation3 + $0x238] sm:$0xff]
      %v2246 = vld [vmem:[#allocation3 + $0x240] sm:$0xff]
      %v2247 = vld [vmem:[#allocation3 + $0x248] sm:$0xff]
      %v2248 = vld [vmem:[#allocation3 + $0x250] sm:$0xff]
      %v2249 = vld [vmem:[#allocation3 + $0x258] sm:$0xff]
      %v2250 = vld [vmem:[#allocation3 + $0x260] sm:$0xff]
      %v2251 = vld [vmem:[#allocation3 + $0x268] sm:$0xff]
      %v2252 = vld [vmem:[#allocation3 + $0x270] sm:$0xff]
      %v2253 = vld [vmem:[#allocation3 + $0x278] sm:$0xff]
      %v2254 = vld [vmem:[#allocation3 + $0x280] sm:$0xff]
      %v2255 = vld [vmem:[#allocation3 + $0x288] sm:$0xff]
      %v2256 = vld [vmem:[#allocation3 + $0x290] sm:$0xff]
      %v2257 = vld [vmem:[#allocation3 + $0x298] sm:$0xff]
      %v2258 = vld [vmem:[#allocation3 + $0x2a0] sm:$0xff]
      %v2259 = vld [vmem:[#allocation3 + $0x2a8] sm:$0xff]
      %v2260 = vld [vmem:[#allocation3 + $0x2b0] sm:$0xff]
      %v2261 = vld [vmem:[#allocation3 + $0x2b8] sm:$0xff]
      %v2262 = vld [vmem:[#allocation3 + $0x2c0] sm:$0xff]
      %v2263 = vld [vmem:[#allocation3 + $0x2c8] sm:$0xff]
      %v2264 = vld [vmem:[#allocation3 + $0x2d0] sm:$0xff]
      %v2265 = vld [vmem:[#allocation3 + $0x2d8] sm:$0xff]
      %v2266 = vld [vmem:[#allocation3 + $0x2e0] sm:$0xff]
      %v2267 = vld [vmem:[#allocation3 + $0x2e8] sm:$0xff]
      %v2268 = vld [vmem:[#allocation3 + $0x2f0] sm:$0xff]
      %v2269 = vld [vmem:[#allocation3 + $0x2f8] sm:$0xff]
      %v2270 = vld [vmem:[#allocation3 + $0x300] sm:$0xff]
      %v2271 = vld [vmem:[#allocation3 + $0x308] sm:$0xff]
      %v2272 = vld [vmem:[#allocation3 + $0x310] sm:$0xff]
      %v2273 = vld [vmem:[#allocation3 + $0x318] sm:$0xff]
      %v2274 = vld [vmem:[#allocation3 + $0x320] sm:$0xff]
      %v2275 = vld [vmem:[#allocation3 + $0x328] sm:$0xff]
      %v2276 = vld [vmem:[#allocation3 + $0x330] sm:$0xff]
      %v2277 = vld [vmem:[#allocation3 + $0x338] sm:$0xff]
      %v2278 = vld [vmem:[#allocation3 + $0x340] sm:$0xff]
      %v2279 = vld [vmem:[#allocation3 + $0x348] sm:$0xff]
      %v2280 = vld [vmem:[#allocation3 + $0x350] sm:$0xff]
      %v2281 = vld [vmem:[#allocation3 + $0x358] sm:$0xff]
      %v2282 = vld [vmem:[%s6] sm:$0xff]
      %v2283 = vld [vmem:[%s6 + $0x8] sm:$0xff]
      %v2284 = vld [vmem:[%s6 + $0x10] sm:$0xff]
      %2286 = vset.pattern.permute.xlu0 0
      %2287 = vperm.xlu0 %2286, %v2282
      %v2288 = vpop.permute.xlu0 %2287
      %2291 = vset.pattern.permute.xlu0 0
      %2292 = vperm.xlu0 %2291, %v2283
      %v2293 = vpop.permute.xlu0 %2292
      %2296 = vset.pattern.permute.xlu0 0
      %2297 = vperm.xlu0 %2296, %v2284
      %v2298 = vpop.permute.xlu0 %2297
      %v2312 = vunpack.c.l.b16 %v2162
      %v2313 = vunpack.c.h.b16 %v2162
      %v2314 = vunpack.c.l.b16 %v2163
      %v2315 = vunpack.c.h.b16 %v2163
      %v2316 = vunpack.c.l.b16 %v2164
      %v2317 = vunpack.c.h.b16 %v2164
      %v2318 = vunpack.c.l.b16 %v2165
      %v2319 = vunpack.c.l.b16 %v2166
      %v2320 = vunpack.c.h.b16 %v2166
      %v2321 = vunpack.c.l.b16 %v2167
      %v2322 = vunpack.c.h.b16 %v2167
      %v2323 = vunpack.c.l.b16 %v2168
      %v2324 = vunpack.c.h.b16 %v2168
      %v2325 = vunpack.c.l.b16 %v2169
      %v2326 = vunpack.c.l.b16 %v2170
      %v2327 = vunpack.c.h.b16 %v2170
      %v2328 = vunpack.c.l.b16 %v2171
      %v2329 = vunpack.c.h.b16 %v2171
      %v2330 = vunpack.c.l.b16 %v2172
      %v2331 = vunpack.c.h.b16 %v2172
      %v2332 = vunpack.c.l.b16 %v2173
      %v2333 = vpack.c.b16 %v2319, %v2312
      %v2334 = vpack.c.b16 %v2320, %v2313
      %v2335 = vpack.c.b16 %v2321, %v2314
      %v2336 = vpack.c.b16 %v2322, %v2315
      %v2337 = vpack.c.b16 %v2323, %v2316
      %v2338 = vpack.c.b16 %v2324, %v2317
      %v2339 = vpack.c.b16 %v2325, %v2318
      %v2340 = vpack.c.b16 %v2326, %v2326
      %v2341 = vpack.c.b16 %v2327, %v2327
      %v2342 = vpack.c.b16 %v2328, %v2328
      %v2343 = vpack.c.b16 %v2329, %v2329
      %v2344 = vpack.c.b16 %v2330, %v2330
      %v2345 = vpack.c.b16 %v2331, %v2331
      %v2346 = vpack.c.b16 %v2332, %v2332
      %vm2359 = vcmask 785408
      %v2361 = vsel %vm2359, %v2339, 0
      %v2364 = vsel %vm2359, %v2346, 0
      %2366 = vmatprep.subr.bf16.mxu0 %v2175
      %2367 = vmatpush1.bf16.msra.mxu0 %v2174
      %2368 = vmatprep.subr.bf16.mxu0 %v2177
      %2369 = vmatpush1.bf16.msra.mxu0 %v2176
      %2370 = vmatprep.subr.bf16.mxu0 %v2179
      %2371 = vmatpush1.bf16.msra.mxu0 %v2178
      %2372 = vmatprep.subr.bf16.mxu0 %v2181
      %2373 = vmatpush1.bf16.msra.mxu0 %v2180
      %2374 = vmatprep.subr.bf16.mxu0 %v2183
      %2375 = vmatpush1.bf16.msra.mxu0 %v2182
      %2376 = vmatprep.subr.bf16.mxu0 %v2185
      %2377 = vmatpush1.bf16.msra.mxu0 %v2184
      %2378 = vmatprep.subr.bf16.mxu0 %v2187
      %2379 = vmatpush1.bf16.msra.mxu0 %v2186
      %2380 = vmatprep.subr.bf16.mxu0 %v2189
      %2381 = vmatpush1.bf16.msra.mxu0 %v2188
      %2382 = vmatprep.subr.bf16.mxu0 %v2191
      %2383 = vmatpush1.bf16.msra.mxu0 %v2190
      %2384 = vmatprep.subr.bf16.mxu0 %v2193
      %2385 = vmatpush1.bf16.msra.mxu0 %v2192
      %2386 = vmatprep.subr.bf16.mxu0 %v2195
      %2387 = vmatpush1.bf16.msra.mxu0 %v2194
      %2388 = vmatprep.subr.bf16.mxu0 %v2197
      %2389 = vmatpush1.bf16.msra.mxu0 %v2196
      %2390 = vmatprep.subr.bf16.mxu0 %v2199
      %2391 = vmatpush1.bf16.msra.mxu0 %v2198
      %2392 = vmatprep.subr.bf16.mxu0 %v2201
      %2393 = vmatpush1.bf16.msra.mxu0 %v2200
      %2394 = vmatprep.subr.bf16.mxu0 %v2203
      %2395 = vmatpush1.bf16.msra.mxu0 %v2202
      %2396 = vmatprep.subr.bf16.mxu0 %v2205
      %2397 = vmatpush1.bf16.msra.mxu0 %v2204
      %2398 = vmatprep.mubr.bf16.mxu0 %v2334
      %2399 = vmatmul.mubr.bf16.gmra.mrb[0].mxu0 %v2333
      %v2400 = vpop.f32.mrb[0].mxu0
      %v2401 = vadd.f32 %v2288, %v2400
      %v2402 = vpop.f32.mrb[0].mxu0
      %v2403 = vadd.f32 %v2288, %v2402
      %v2404 = vpop.f32.mrb[0].mxu0
      %v2405 = vadd.f32 %v2293, %v2404
      %v2406 = vpop.f32.mrb[0].mxu0
      %v2407 = vadd.f32 %v2293, %v2406
      %2408 = vmatprep.mubr.bf16.mxu0 %v2341
      %2409 = vmatmul.mubr.bf16.gmra.mrb[0].mxu0 %v2340
      %v2410 = vpop.f32.mrb[0].mxu0
      %v2411 = vadd.f32 %v2298, %v2410
      %v2412 = vpop.f32.mrb[0].mxu0
      %v2413 = vadd.f32 %v2298, %v2412
      %v2414 = vpop.f32.mrb[0].mxu0
      %v2415 = vpop.f32.mrb[0].mxu0
      %2416 = vdwg.mxu0
      %2417 = vmatprep.subr.bf16.mxu0 %v2207
      %2418 = vmatpush1.bf16.msra.mxu0 %v2206
      %2419 = vmatprep.subr.bf16.mxu0 %v2209
      %2420 = vmatpush1.bf16.msra.mxu0 %v2208
      %2421 = vmatprep.subr.bf16.mxu0 %v2211
      %2422 = vmatpush1.bf16.msra.mxu0 %v2210
      %2423 = vmatprep.subr.bf16.mxu0 %v2213
      %2424 = vmatpush1.bf16.msra.mxu0 %v2212
      %2425 = vmatprep.subr.bf16.mxu0 %v2215
      %2426 = vmatpush1.bf16.msra.mxu0 %v2214
      %2427 = vmatprep.subr.bf16.mxu0 %v2217
      %2428 = vmatpush1.bf16.msra.mxu0 %v2216
      %2429 = vmatprep.subr.bf16.mxu0 %v2219
      %2430 = vmatpush1.bf16.msra.mxu0 %v2218
      %2431 = vmatprep.subr.bf16.mxu0 %v2221
      %2432 = vmatpush1.bf16.msra.mxu0 %v2220
      %2433 = vmatprep.subr.bf16.mxu0 %v2223
      %2434 = vmatpush1.bf16.msra.mxu0 %v2222
      %2435 = vmatprep.subr.bf16.mxu0 %v2225
      %2436 = vmatpush1.bf16.msra.mxu0 %v2224
      %2437 = vmatprep.subr.bf16.mxu0 %v2227
      %2438 = vmatpush1.bf16.msra.mxu0 %v2226
      %2439 = vmatprep.subr.bf16.mxu0 %v2229
      %2440 = vmatpush1.bf16.msra.mxu0 %v2228
      %2441 = vmatprep.subr.bf16.mxu0 %v2231
      %2442 = vmatpush1.bf16.msra.mxu0 %v2230
      %2443 = vmatprep.subr.bf16.mxu0 %v2233
      %2444 = vmatpush1.bf16.msra.mxu0 %v2232
      %2445 = vmatprep.subr.bf16.mxu0 %v2235
      %2446 = vmatpush1.bf16.msra.mxu0 %v2234
      %2447 = vmatprep.subr.bf16.mxu0 %v2237
      %2448 = vmatpush1.bf16.msra.mxu0 %v2236
      %2449 = vmatprep.mubr.bf16.mxu0 %v2336
      %2450 = vmatmul.mubr.bf16.gmra.mrb[0].mxu0 %v2335
      %v2451 = vpop.f32.mrb[0].mxu0
      %v2452 = vadd.f32 %v2401, %v2451
      %v2453 = vpop.f32.mrb[0].mxu0
      %v2454 = vadd.f32 %v2403, %v2453
      %v2455 = vpop.f32.mrb[0].mxu0
      %v2456 = vadd.f32 %v2405, %v2455
      %v2457 = vpop.f32.mrb[0].mxu0
      %v2458 = vadd.f32 %v2407, %v2457
      %2459 = vmatprep.mubr.bf16.mxu0 %v2343
      %2460 = vmatmul.mubr.bf16.gmra.mrb[0].mxu0 %v2342
      %v2461 = vpop.f32.mrb[0].mxu0
      %v2462 = vadd.f32 %v2411, %v2461
      %v2463 = vpop.f32.mrb[0].mxu0
      %v2464 = vadd.f32 %v2413, %v2463
      %v2465 = vpop.f32.mrb[0].mxu0
      %v2466 = vpop.f32.mrb[0].mxu0
      %2467 = vdwg.mxu0
      %2468 = vmatprep.subr.bf16.mxu0 %v2239
      %2469 = vmatpush1.bf16.msra.mxu0 %v2238
      %2470 = vmatprep.subr.bf16.mxu0 %v2241
      %2471 = vmatpush1.bf16.msra.mxu0 %v2240
      %2472 = vmatprep.subr.bf16.mxu0 %v2243
      %2473 = vmatpush1.bf16.msra.mxu0 %v2242
      %2474 = vmatprep.subr.bf16.mxu0 %v2245
      %2475 = vmatpush1.bf16.msra.mxu0 %v2244
      %2476 = vmatprep.subr.bf16.mxu0 %v2247
      %2477 = vmatpush1.bf16.msra.mxu0 %v2246
      %2478 = vmatprep.subr.bf16.mxu0 %v2249
      %2479 = vmatpush1.bf16.msra.mxu0 %v2248
      %2480 = vmatprep.subr.bf16.mxu0 %v2251
      %2481 = vmatpush1.bf16.msra.mxu0 %v2250
      %2482 = vmatprep.subr.bf16.mxu0 %v2253
      %2483 = vmatpush1.bf16.msra.mxu0 %v2252
      %2484 = vmatprep.subr.bf16.mxu0 %v2255
      %2485 = vmatpush1.bf16.msra.mxu0 %v2254
      %2486 = vmatprep.subr.bf16.mxu0 %v2257
      %2487 = vmatpush1.bf16.msra.mxu0 %v2256
      %2488 = vmatprep.subr.bf16.mxu0 %v2259
      %2489 = vmatpush1.bf16.msra.mxu0 %v2258
      %2490 = vmatprep.subr.bf16.mxu0 %v2261
      %2491 = vmatpush1.bf16.msra.mxu0 %v2260
      %2492 = vmatprep.subr.bf16.mxu0 %v2263
      %2493 = vmatpush1.bf16.msra.mxu0 %v2262
      %2494 = vmatprep.subr.bf16.mxu0 %v2265
      %2495 = vmatpush1.bf16.msra.mxu0 %v2264
      %2496 = vmatprep.subr.bf16.mxu0 %v2267
      %2497 = vmatpush1.bf16.msra.mxu0 %v2266
      %2498 = vmatprep.subr.bf16.mxu0 %v2269
      %2499 = vmatpush1.bf16.msra.mxu0 %v2268
      %2500 = vmatprep.mubr.bf16.mxu0 %v2338
      %2501 = vmatmul.mubr.bf16.gmra.mrb[0].mxu0 %v2337
      %v2502 = vpop.f32.mrb[0].mxu0
      %v2503 = vadd.f32 %v2452, %v2502
      %v2504 = vpop.f32.mrb[0].mxu0
      %v2505 = vadd.f32 %v2454, %v2504
      %v2506 = vpop.f32.mrb[0].mxu0
      %v2507 = vadd.f32 %v2456, %v2506
      %v2508 = vpop.f32.mrb[0].mxu0
      %v2509 = vadd.f32 %v2458, %v2508
      %2510 = vmatprep.mubr.bf16.mxu0 %v2345
      %2511 = vmatmul.mubr.bf16.gmra.mrb[0].mxu0 %v2344
      %v2512 = vpop.f32.mrb[0].mxu0
      %v2513 = vadd.f32 %v2462, %v2512
      %v2514 = vpop.f32.mrb[0].mxu0
      %v2515 = vadd.f32 %v2464, %v2514
      %v2516 = vpop.f32.mrb[0].mxu0
      %v2517 = vpop.f32.mrb[0].mxu0
      %2518 = vdwg.mxu0
      %2519 = vmatprep.subr.bf16.mxu0 %v2271
      %2520 = vmatpush1.bf16.msra.mxu0 %v2270
      %2521 = vmatprep.subr.bf16.mxu0 %v2273
      %2522 = vmatpush1.bf16.msra.mxu0 %v2272
      %2523 = vmatprep.subr.bf16.mxu0 %v2275
      %2524 = vmatpush1.bf16.msra.mxu0 %v2274
      %2525 = vmatprep.subr.bf16.mxu0 %v2277
      %2526 = vmatpush1.bf16.msra.mxu0 %v2276
      %2527 = vmatprep.subr.bf16.mxu0 %v2279
      %2528 = vmatpush1.bf16.msra.mxu0 %v2278
      %2529 = vmatprep.subr.bf16.mxu0 %v2281
      %2530 = vmatpush1.bf16.msra.mxu0 %v2280
      %2531 = vmatprep.subr.bf16.mxu0 0
      %2532 = vmatpush1.bf16.msra.mxu0 0
      %2533 = vmatprep.subr.bf16.mxu0 0
      %2534 = vmatpush1.bf16.msra.mxu0 0
      %2535 = vmatprep.subr.bf16.mxu0 0
      %2536 = vmatpush1.bf16.msra.mxu0 0
      %2537 = vmatprep.subr.bf16.mxu0 0
      %2538 = vmatpush1.bf16.msra.mxu0 0
      %2539 = vmatprep.subr.bf16.mxu0 0
      %2540 = vmatpush1.bf16.msra.mxu0 0
      %2541 = vmatprep.subr.bf16.mxu0 0
      %2542 = vmatpush1.bf16.msra.mxu0 0
      %2543 = vmatprep.subr.bf16.mxu0 0
      %2544 = vmatpush1.bf16.msra.mxu0 0
      %2545 = vmatprep.subr.bf16.mxu0 0
      %2546 = vmatpush1.bf16.msra.mxu0 0
      %2547 = vmatprep.subr.bf16.mxu0 0
      %2548 = vmatpush1.bf16.msra.mxu0 0
      %2549 = vmatprep.subr.bf16.mxu0 0
      %2550 = vmatpush1.bf16.msra.mxu0 0
      %2551 = vmatprep.mubr.bf16.mxu0 0
      %2552 = vmatmul.mubr.bf16.gmra.mrb[0].mxu0 %v2361
      %v2553 = vpop.f32.mrb[0].mxu0
      %v2554 = vadd.f32 %v2503, %v2553
      %v2555 = vpop.f32.mrb[0].mxu0
      %v2556 = vadd.f32 %v2505, %v2555
      %v2557 = vpop.f32.mrb[0].mxu0
      %v2558 = vadd.f32 %v2507, %v2557
      %v2559 = vpop.f32.mrb[0].mxu0
      %v2560 = vadd.f32 %v2509, %v2559
      %2561 = vmatprep.mubr.bf16.mxu0 0
      %2562 = vmatmul.mubr.bf16.gmra.mrb[0].mxu0 %v2364
      %v2563 = vpop.f32.mrb[0].mxu0
      %v2564 = vadd.f32 %v2513, %v2563
      %v2565 = vpop.f32.mrb[0].mxu0
      %v2566 = vadd.f32 %v2515, %v2565
      %v2567 = vpop.f32.mrb[0].mxu0
      %v2568 = vpop.f32.mrb[0].mxu0
      %2569 = vdwg.mxu0
      %v2570 = vrot.slane %v2554, 4
      %v2571 = vmax.f32 %v2554, %v2570
      %v2572 = vrot.slane %v2571, 2
      %v2573 = vmax.f32 %v2571, %v2572
      %v2574 = vrot.slane %v2573, 1
      %v2575 = vmax.f32 %v2573, %v2574
      %v2576 = vrot.slane %v2556, 4
      %v2577 = vmax.f32 %v2556, %v2576
      %v2578 = vrot.slane %v2577, 2
      %v2579 = vmax.f32 %v2577, %v2578
      %v2580 = vrot.slane %v2579, 1
      %v2581 = vmax.f32 %v2579, %v2580
      %v2582 = vsub.f32 %v2554, %v2575
      %v2583 = vsub.f32 %v2556, %v2581
      %v2584 = vmul.f32 %v2582, 1.442695
      %v2585 = vpow.pop %v2584
      %v2586 = vmul.f32 %v2583, 1.442695
      %v2587 = vpow.pop %v2586
      %v2588 = vrot.slane %v2585, 4
      %v2589 = vadd.f32 %v2585, %v2588
      %v2590 = vrot.slane %v2589, 2
      %v2591 = vadd.f32 %v2589, %v2590
      %v2592 = vrot.slane %v2591, 1
      %v2593 = vadd.f32 %v2591, %v2592
      %v2594 = vrot.slane %v2587, 4
      %v2595 = vadd.f32 %v2587, %v2594
      %v2596 = vrot.slane %v2595, 2
      %v2597 = vadd.f32 %v2595, %v2596
      %v2598 = vrot.slane %v2597, 1
      %v2599 = vadd.f32 %v2597, %v2598
      %v2600 = vrcp.pop %v2593
      %v2601 = vrcp.pop %v2599
      %v2602 = vmul.f32 %v2585, %v2600
      %v2603 = vmul.f32 %v2587, %v2601
      %2604 = vst [vmem:[%s305] sm:$0xff] %v2602
      %2605 = vst [vmem:[%s305 + $0x8] sm:$0xff] %v2603
      %v2606 = vrot.slane %v2558, 4
      %v2607 = vmax.f32 %v2558, %v2606
      %v2608 = vrot.slane %v2607, 2
      %v2609 = vmax.f32 %v2607, %v2608
      %v2610 = vrot.slane %v2609, 1
      %v2611 = vmax.f32 %v2609, %v2610
      %v2612 = vrot.slane %v2560, 4
      %v2613 = vmax.f32 %v2560, %v2612
      %v2614 = vrot.slane %v2613, 2
      %v2615 = vmax.f32 %v2613, %v2614
      %v2616 = vrot.slane %v2615, 1
      %v2617 = vmax.f32 %v2615, %v2616
      %v2618 = vsub.f32 %v2558, %v2611
      %v2619 = vsub.f32 %v2560, %v2617
      %v2620 = vmul.f32 %v2618, 1.442695
      %v2621 = vpow.pop %v2620
      %v2622 = vmul.f32 %v2619, 1.442695
      %v2623 = vpow.pop %v2622
      %v2624 = vrot.slane %v2621, 4
      %v2625 = vadd.f32 %v2621, %v2624
      %v2626 = vrot.slane %v2625, 2
      %v2627 = vadd.f32 %v2625, %v2626
      %v2628 = vrot.slane %v2627, 1
      %v2629 = vadd.f32 %v2627, %v2628
      %v2630 = vrot.slane %v2623, 4
      %v2631 = vadd.f32 %v2623, %v2630
      %v2632 = vrot.slane %v2631, 2
      %v2633 = vadd.f32 %v2631, %v2632
      %v2634 = vrot.slane %v2633, 1
      %v2635 = vadd.f32 %v2633, %v2634
      %v2636 = vrcp.pop %v2629
      %v2637 = vrcp.pop %v2635
      %v2638 = vmul.f32 %v2621, %v2636
      %v2639 = vmul.f32 %v2623, %v2637
      %2640 = vst [vmem:[%s305 + $0x10] sm:$0xff] %v2638
      %2641 = vst [vmem:[%s305 + $0x18] sm:$0xff] %v2639
      %v2642 = vrot.slane %v2564, 4
      %v2643 = vmax.f32 %v2564, %v2642
      %v2644 = vrot.slane %v2643, 2
      %v2645 = vmax.f32 %v2643, %v2644
      %v2646 = vrot.slane %v2645, 1
      %v2647 = vmax.f32 %v2645, %v2646
      %v2648 = vrot.slane %v2566, 4
      %v2649 = vmax.f32 %v2566, %v2648
      %v2650 = vrot.slane %v2649, 2
      %v2651 = vmax.f32 %v2649, %v2650
      %v2652 = vrot.slane %v2651, 1
      %v2653 = vmax.f32 %v2651, %v2652
      %v2654 = vsub.f32 %v2564, %v2647
      %v2655 = vsub.f32 %v2566, %v2653
      %v2656 = vmul.f32 %v2654, 1.442695
      %v2657 = vpow.pop %v2656
      %v2658 = vmul.f32 %v2655, 1.442695
      %v2659 = vpow.pop %v2658
      %v2660 = vrot.slane %v2657, 4
      %v2661 = vadd.f32 %v2657, %v2660
      %v2662 = vrot.slane %v2661, 2
      %v2663 = vadd.f32 %v2661, %v2662
      %v2664 = vrot.slane %v2663, 1
      %v2665 = vadd.f32 %v2663, %v2664
      %v2666 = vrot.slane %v2659, 4
      %v2667 = vadd.f32 %v2659, %v2666
      %v2668 = vrot.slane %v2667, 2
      %v2669 = vadd.f32 %v2667, %v2668
      %v2670 = vrot.slane %v2669, 1
      %v2671 = vadd.f32 %v2669, %v2670
      %v2672 = vrcp.pop %v2665
      %v2673 = vrcp.pop %v2671
      %v2674 = vmul.f32 %v2657, %v2672
      %v2675 = vmul.f32 %v2659, %v2673
      %2676 = vst [vmem:[%s305 + $0x20] sm:$0xff] %v2674
      %2677 = vst [vmem:[%s305 + $0x28] sm:$0xff] %v2675
      %p2678 = scmp.lt.s32.totalorder %s19, 1
      %s2679 = scalar_select %p2678, %s19, 1
      %s2680 = smul.addr %s2679, 6
      %s2681 = smul.addr %s2680, 8
      %s2682 = scalar_lea.vmem %s8, %s2681
      // Predicated region
      $region53: #{adversery_forward.1} parent=51 // pred_check
        %p2683 = pneg %p210
      $region54: #{adversery_forward.1} parent=51 // pred_check_branch
        %2685 = sbr.rel (%p2683) target = $region56
      $region55: #{adversery_forward.1} parent=51 // pred_region
        _
      $region56: #{adversery_forward.1} parent=51 // pred_fallthru
        _
    $region52: #{adversery_forward.1} parent=5 // pred_fallthru
      _
    %p2686 = scmp.le.s32.totalorder 2, %s14
    // Predicated region
    $region57: #{adversery_forward.1} parent=5 // pred_check
      %p2687 = pneg %p2686
    $region58: #{adversery_forward.1} parent=5 // pred_check_branch
      %2689 = sbr.rel (%p2687) target = $region60
    $region59: #{adversery_forward.1} parent=5 // pred_region
      %s2690 = ssub.s32 %s14, 2
      // Predicated region
      $region61: #{adversery_forward.1} parent=59 // pred_check
        %p2691 = pneg %p216
      $region62: #{adversery_forward.1} parent=59 // pred_check_branch
        %2693 = sbr.rel (%p2691) target = $region64
      $region63: #{adversery_forward.1} parent=59 // pred_region
        %p2694 = scmp.lt.s32.totalorder %s20, 1
        %s2695 = scalar_select %p2694, %s20, 1
        %s2696 = smul.addr %s2695, 6
        %s2697 = smul.addr %s2696, 8
        %s2698 = scalar_lea.vmem %s8, %s2697
      $region64: #{adversery_forward.1} parent=59 // pred_fallthru
        _
    $region60: #{adversery_forward.1} parent=5 // pred_fallthru
      _
  $region6: #{adversery_forward.1} parent=0 // loop_footer
    %s18 = sadd.s32 1, %s14
  $region7: #{adversery_forward.1} parent=0 // loop_footer_branch
    %13 = sbr.rel target = $region3
  $region8: #{adversery_forward.1} parent=0 // loop_exit
    _

</llo_original>
